<compile_context>
chip_gen: v7x
topology: tpu7x:2x2x1
jax: 0.10.0
libtpu: 0.0.40
codegen_flags: <defaults>
</compile_context>

<pallas_src>
import math
from types import SimpleNamespace

import numpy as np
import jax
import jax.numpy as jnp
from jax.experimental import pallas as pl
from jax.experimental.pallas import tpu as pltpu


# ----------------------------------------------------------------------------
# Order embeddings (matches asg2cap gen_order_embeds)
# ----------------------------------------------------------------------------
def gen_order_embeds(max_len, dim_ft):
    order_embeds = np.zeros((max_len, dim_ft), dtype=np.float32)
    position = np.arange(0, max_len - 1, dtype=np.float32)[:, None]
    div_term = np.exp(
        np.arange(0, dim_ft, 2, dtype=np.float32) * -(math.log(10000.0) / dim_ft)
    )
    order_embeds[1:, 0::2] = np.sin(position * div_term)
    order_embeds[1:, 1::2] = np.cos(position * div_term)
    return order_embeds


def _round_up(x, m):
    return ((x + m - 1) // m) * m


def _pick_batch_block(B, N, target_rows=256):
    """Largest divisor of B with b_blk*N <= target_rows (MXU row fill on
    v6e/v7x), sublane-aligned, while keeping >= 2 grid steps for v7x's 2 TCs."""
    cands = [d for d in range(1, B + 1)
             if B % d == 0 and (d * N) % 8 == 0 and d * N <= target_rows]
    if not cands:
        return B  # single step; block == full array is always layout-legal
    b_blk = max(cands)
    if B >= 2 and B // b_blk < 2:
        smaller = [d for d in cands if B // d >= 2]
        if smaller:
            b_blk = max(smaller)
    return b_blk


# ----------------------------------------------------------------------------
# Fused forward kernel (b_blk batch elements per grid step)
# ----------------------------------------------------------------------------
def _build_fused_kernel(num_layers, num_rels, dh_pad, din, embed_first, compute_dtype):
    R = num_rels
    Dp = dh_pad

    def kernel(*refs):
        if embed_first:
            attn_ref, emb_ref, w1_ref, b1_ref, rel_ref, waug_ref, bias_ref, o_ref = refs
        else:
            attn_ref, emb_ref, rel_ref, waug_ref, bias_ref, o_ref = refs

        # attn/emb : (M_blk, Din)        rel : (R, M_blk, M_blk)  [block-diag]
        # waug     : (L, Dp, (R+1)*Dp)   bias: (L, 1, Dp)         o: (M_blk, Dp)
        x = attn_ref[...] * emb_ref[...]                              # (M_blk, Din)

        if embed_first:
            h = jnp.dot(x.astype(compute_dtype), w1_ref[...],
                        preferred_element_type=jnp.float32)           # (M_blk, Dp)
            h = jnp.maximum(h + b1_ref[...], 0.0)
        else:
            if Dp > din:  # lane-pad the raw features to the padded hidden width
                h = jnp.concatenate(
                    [x, jnp.zeros((x.shape[0], Dp - din), x.dtype)], axis=-1)
            else:
                h = x

        for l in range(num_layers):                                   # static unroll
            # One lane-dense MXU call: self-loop msg + all relation msgs.
            msg = jnp.dot(h.astype(compute_dtype), waug_ref[l],
                          preferred_element_type=jnp.float32)         # (M_blk, (R+1)*Dp)
            out = msg[:, :Dp] + bias_ref[l]                           # self-loop + bias
            # Accumulating relation loop: block-diagonal adjacency keeps it
            # batched (M = K = b_blk*N) with tile-aligned lane slices of msg;
            # nothing is materialized / re-blocked.
            for r in range(R):
                mr = msg[:, (r + 1) * Dp:(r + 2) * Dp]
                out = out + jnp.dot(rel_ref[r], mr.astype(compute_dtype),
                                    preferred_element_type=jnp.float32)
            h = jnp.maximum(out, 0.0)                                 # ReLU; dropout = eval no-op

        o_ref[...] = h.astype(o_ref.dtype)

    return kernel


def role_encoder_forward(params, config, attn_fts, node_types, attr_order_idxs, rel_edges):
    B, N, Din = attn_fts.shape
    R = config.num_rels
    L = config.num_hidden_layers
    Dh = config.dim_hidden
    assert config.embed_first or Din == Dh, "stacked layer weights need uniform dims"

    Dp = _round_up(Dh, 128)                  # lane-dense hidden width
    b_blk = _pick_batch_block(B, N)
    M_blk = b_blk * N
    grid = (B // b_blk,)

    # bf16 operands (f32 accumulate) only at realistic widths; f32 at Dh=32.
    compute_dtype = jnp.bfloat16 if Dh >= 256 else jnp.float32

    # Embedding gathers: plain JAX glue (kept outside the kernel).
    # TODO(synk): optionally move these gathers in-kernel via
    # PrefetchScalarGridSpec (node_types/attr_order_idxs in SMEM) to avoid the
    # (B, N, Din) node_embeds HBM round-trip.
    node_embeds = (
        jnp.take(params["node_emb"], node_types, axis=0)
        + jnp.take(params["order_embeds"], attr_order_idxs, axis=0)
    ).astype(jnp.float32)                                              # (B, N, Din)

    # 2-D views (free reshapes) so the kernel works on lane/sublane-dense slabs.
    attn2 = attn_fts.reshape(B * N, Din).astype(jnp.float32)
    emb2 = node_embeds.reshape(B * N, Din)

    def pad_last2(a, rows, cols):
        pr, pc = rows - a.shape[-2], cols - a.shape[-1]
        if pr == 0 and pc == 0:
            return a
        cfg = [(0, 0)] * (a.ndim - 2) + [(0, pr), (0, pc)]
        return jnp.pad(a, cfg)

    # --- wrapper-side precompute (once) ---------------------------------------
    # Block-diagonal relation operator: rel_blk[r] = kron(I_{b_blk}, rel_r).
    # No identity block: the self-loop term comes straight from msg[:, :Dp].
    rel_blk = jnp.einsum(
        "ij,rts->ritjs", jnp.eye(b_blk, dtype=jnp.float32),
        rel_edges.astype(jnp.float32)
    ).reshape(R, M_blk, M_blk).astype(compute_dtype)                    # (R, M_blk, M_blk)

    w1 = pad_last2(params["W1"], Din, Dp).astype(compute_dtype)         # (Din, Dp)
    b1 = pad_last2(params["b1"], 1, Dp).astype(jnp.float32)             # (1, Dp)

    w_aug_list, bias_list = [], []
    for layer in params["layers"]:
        w_loop_p = pad_last2(layer["W_loop"], Dp, Dp)                   # (Dp, Dp)
        w_rel_p = pad_last2(layer["W"], Dp, Dp)                         # (R, Dp, Dp)
        w_aug = jnp.concatenate([w_loop_p] + [w_rel_p[r] for r in range(R)], axis=-1)
        w_aug_list.append(w_aug)                                        # (Dp, (R+1)*Dp)
        bias_list.append(pad_last2(layer["bias"], 1, Dp))
    w_aug_all = jnp.stack(w_aug_list, axis=0).astype(compute_dtype)     # (L, Dp, (R+1)*Dp)
    bias_all = jnp.stack(bias_list, axis=0).astype(jnp.float32)         # (L, 1, Dp)

    kernel = _build_fused_kernel(L, R, Dp, Din, config.embed_first, compute_dtype)

    def run(single_buffer_constants):
        def const_spec(shape):
            index_map = lambda i, _n=len(shape): (0,) * _n
            if single_buffer_constants:
                # constant index_map => block never changes; single-buffer it.
                return pl.BlockSpec(shape, index_map, pipeline_mode=pl.Buffered(1))
            return pl.BlockSpec(shape, index_map)

        in_specs = [
            pl.BlockSpec((M_blk, Din), lambda i: (i, 0)),   # attn_fts slab
            pl.BlockSpec((M_blk, Din), lambda i: (i, 0)),   # node_embeds slab
        ]
        inputs = [attn2, emb2]
        if config.embed_first:
            in_specs += [const_spec((Din, Dp)), const_spec((1, Dp))]
            inputs += [w1, b1]
        in_specs += [
            const_spec((R, M_blk, M_blk)),                  # block-diag rel
            const_spec((L, Dp, (R + 1) * Dp)),              # all layer weights
            const_spec((L, 1, Dp)),                         # all layer biases
        ]
        inputs += [rel_blk, w_aug_all, bias_all]

        return pl.pallas_call(
            kernel,
            out_shape=jax.ShapeDtypeStruct((B * N, Dp), jnp.float32),
            grid_spec=pltpu.PrefetchScalarGridSpec(
                num_scalar_prefetch=0,
                grid=grid,
                in_specs=in_specs,
                out_specs=pl.BlockSpec((M_blk, Dp), lambda i: (i, 0)),
            ),
            compiler_params=pltpu.CompilerParams(
                dimension_semantics=("parallel",),          # megacore / v7x split
                vmem_limit_bytes=32 * 1024 * 1024,          # explicit VMEM budget
            ),
        )(*inputs)

    try:
        out2 = run(True)
    except Exception:
        # pipeline_mode=pl.Buffered(1) unsupported in this JAX build — fall back.
        out2 = run(False)

    out = out2.reshape(B, N, Dp)
    if Dp != Dh:
        out = out[:, :, :Dh]
    return out


# ----------------------------------------------------------------------------
# Parameter init (deterministic, synthetic — shapes follow the module __init__)
# ----------------------------------------------------------------------------
def init_params(config, key):
    keys = jax.random.split(key, 4 + 3 * config.num_hidden_layers)
    params = {}
    params["node_emb"] = jax.random.normal(
        keys[0], (config.num_node_types, config.dim_input), jnp.float32) * 0.1
    params["order_embeds"] = jnp.asarray(gen_order_embeds(20, config.dim_input))
    params["W1"] = jax.random.normal(
        keys[1], (config.dim_input, config.dim_hidden), jnp.float32) / math.sqrt(config.dim_input)
    params["b1"] = jax.random.normal(keys[2], (1, config.dim_hidden), jnp.float32) * 0.01

    layers = []
    dim_in = config.dim_hidden if config.embed_first else config.dim_input
    for i in range(config.num_hidden_layers):
        k_w, k_l, k_b = keys[3 + 3 * i: 6 + 3 * i]
        layers.append({
            "W": jax.random.normal(
                k_w, (config.num_rels, dim_in, config.dim_hidden), jnp.float32
            ) / math.sqrt(dim_in),
            "W_loop": jax.random.normal(
                k_l, (dim_in, config.dim_hidden), jnp.float32) / math.sqrt(dim_in),
            "bias": jax.random.normal(k_b, (1, config.dim_hidden), jnp.float32) * 0.01,
        })
        dim_in = config.dim_hidden
    params["layers"] = layers
    return params


# ----------------------------------------------------------------------------
# Pure-JAX reference for correctness check
# ----------------------------------------------------------------------------
def role_encoder_reference(params, config, attn_fts, node_types, attr_order_idxs, rel_edges):
    node_embeds = (
        jnp.take(params["node_emb"], node_types, axis=0)
        + jnp.take(params["order_embeds"], attr_order_idxs, axis=0)
    )
    x = attn_fts * node_embeds
    if config.embed_first:
        x = jax.nn.relu(x @ params["W1"] + params["b1"][0])
    for layer in params["layers"]:
        loop_msg = jnp.einsum("bni,io->bno", x, layer["W_loop"])
        neigh = jnp.einsum("rts,bsi,rio->bto", rel_edges, x, layer["W"])
        x = jax.nn.relu(loop_msg + neigh + layer["bias"][0])
    return x


if __name__ == "__main__":
    config = SimpleNamespace(
        dim_input=32,
        dim_hidden=32,
        num_rels=4,
        num_hidden_layers=2,
        num_node_types=10,
        embed_first=True,
        dropout=0.0,   # dropout is a no-op in eval / inference mode
    )

    B, N = 4, 8       # B=4 so the batch-folded grid still has >= 2 steps
    key = jax.random.PRNGKey(0)
    k_par, k_fts, k_types, k_ord, k_rel = jax.random.split(key, 5)

    params = init_params(config, k_par)

    attn_fts = jax.random.normal(k_fts, (B, N, config.dim_input), jnp.float32)
    node_types = jax.random.randint(k_types, (B, N), 0, config.num_node_types)
    attr_order_idxs = jax.random.randint(k_ord, (B, N), 0, 20)
    rel_edges = (
        jax.random.uniform(k_rel, (config.num_rels, N, N), jnp.float32) < 0.3
    ).astype(jnp.float32)

    out = role_encoder_forward(params, config, attn_fts, node_types, attr_order_idxs, rel_edges)
    out = jax.block_until_ready(out)

    ref = role_encoder_reference(params, config, attn_fts, node_types, attr_order_idxs, rel_edges)
    assert out.shape == (B, N, config.dim_hidden)
    assert jnp.allclose(out, ref, atol=1e-4, rtol=1e-4), "mismatch vs. JAX reference"

    print("KERNEL_OK")
</pallas_src>

<mosaic_0001>
module attributes {stable_mosaic.version = 11 : i64} {
  func.func @kernel(%arg0: i32, %arg1: memref<16x32xf32, #tpu.memory_space<vmem>>, %arg2: memref<16x32xf32, #tpu.memory_space<vmem>>, %arg3: memref<32x128xf32, #tpu.memory_space<vmem>>, %arg4: memref<1x128xf32, #tpu.memory_space<vmem>>, %arg5: memref<4x16x16xf32, #tpu.memory_space<vmem>>, %arg6: memref<2x128x640xf32, #tpu.memory_space<vmem>>, %arg7: memref<2x1x128xf32, #tpu.memory_space<vmem>>, %arg8: memref<16x128xf32, #tpu.memory_space<vmem>>) attributes {dimension_semantics = [#tpu.dimension_semantics<parallel>], iteration_bounds = array<i64: 2>, scalar_prefetch = 0 : i64, scratch_operands = 0 : i64, tpu.core_type = #tpu.core_type<tc>, window_params = [{transform_indices = @transform_0, window_bounds = array<i64: 16, 32>}, {transform_indices = @transform_1, window_bounds = array<i64: 16, 32>}, {pipeline_mode = #tpu.pipeline_mode<synchronous>, transform_indices = @transform_2, window_bounds = array<i64: 32, 128>}, {pipeline_mode = #tpu.pipeline_mode<synchronous>, transform_indices = @transform_3, window_bounds = array<i64: 1, 128>}, {pipeline_mode = #tpu.pipeline_mode<synchronous>, transform_indices = @transform_4, window_bounds = array<i64: 4, 16, 16>}, {pipeline_mode = #tpu.pipeline_mode<synchronous>, transform_indices = @transform_5, window_bounds = array<i64: 2, 128, 640>}, {pipeline_mode = #tpu.pipeline_mode<synchronous>, transform_indices = @transform_6, window_bounds = array<i64: 2, 1, 128>}, {transform_indices = @transform_7, window_bounds = array<i64: 16, 128>}]} {
    %c0 = arith.constant 0 : index
    %c0_0 = arith.constant 0 : index
    %0 = vector.load %arg1[%c0, %c0_0] : memref<16x32xf32, #tpu.memory_space<vmem>>, vector<16x32xf32>
    %c0_1 = arith.constant 0 : index
    %c0_2 = arith.constant 0 : index
    %1 = vector.load %arg2[%c0_1, %c0_2] : memref<16x32xf32, #tpu.memory_space<vmem>>, vector<16x32xf32>
    %2 = arith.mulf %0, %1 : vector<16x32xf32>
    %c0_3 = arith.constant 0 : index
    %c0_4 = arith.constant 0 : index
    %3 = vector.load %arg3[%c0_3, %c0_4] : memref<32x128xf32, #tpu.memory_space<vmem>>, vector<32x128xf32>
    %cst = arith.constant dense<0.000000e+00> : vector<16x128xf32>
    %4 = tpu.matmul %2, %3, %cst {dimension_numbers = #tpu.dot_dimension_numbers<[1], [0], [0], [1], [0, 0, 1, 1], [], []>} : vector<16x32xf32>, vector<32x128xf32>, vector<16x128xf32> -> vector<16x128xf32>
    %c0_5 = arith.constant 0 : index
    %c0_6 = arith.constant 0 : index
    %5 = vector.load %arg4[%c0_5, %c0_6] : memref<1x128xf32, #tpu.memory_space<vmem>>, vector<1x128xf32>
    %6 = vector.broadcast %5 : vector<1x128xf32> to vector<16x128xf32>
    %7 = arith.addf %4, %6 : vector<16x128xf32>
    %cst_7 = arith.constant 0.000000e+00 : f32
    %8 = vector.broadcast %cst_7 : f32 to vector<16x128xf32>
    %9 = arith.maximumf %7, %8 : vector<16x128xf32>
    %c0_8 = arith.constant 0 : index
    %c0_9 = arith.constant 0 : index
    %c0_10 = arith.constant 0 : index
    %10 = vector.load %arg6[%c0_8, %c0_9, %c0_10] : memref<2x128x640xf32, #tpu.memory_space<vmem>>, vector<1x128x640xf32>
    %11 = vector.shape_cast %10 : vector<1x128x640xf32> to vector<128x640xf32>
    %cst_11 = arith.constant dense<0.000000e+00> : vector<16x640xf32>
    %12 = tpu.matmul %9, %11, %cst_11 {dimension_numbers = #tpu.dot_dimension_numbers<[1], [0], [0], [1], [0, 0, 1, 1], [], []>} : vector<16x128xf32>, vector<128x640xf32>, vector<16x640xf32> -> vector<16x640xf32>
    %13 = vector.extract_strided_slice %12 {offsets = [0, 0], sizes = [16, 128], strides = [1, 1]} : vector<16x640xf32> to vector<16x128xf32>
    %c0_12 = arith.constant 0 : index
    %c0_13 = arith.constant 0 : index
    %c0_14 = arith.constant 0 : index
    %14 = vector.load %arg7[%c0_12, %c0_13, %c0_14] : memref<2x1x128xf32, #tpu.memory_space<vmem>>, vector<1x1x128xf32>
    %15 = vector.shape_cast %14 : vector<1x1x128xf32> to vector<1x128xf32>
    %16 = vector.broadcast %15 : vector<1x128xf32> to vector<16x128xf32>
    %17 = arith.addf %13, %16 : vector<16x128xf32>
    %18 = vector.extract_strided_slice %12 {offsets = [0, 128], sizes = [16, 128], strides = [1, 1]} : vector<16x640xf32> to vector<16x128xf32>
    %c0_15 = arith.constant 0 : index
    %c0_16 = arith.constant 0 : index
    %c0_17 = arith.constant 0 : index
    %19 = vector.load %arg5[%c0_15, %c0_16, %c0_17] : memref<4x16x16xf32, #tpu.memory_space<vmem>>, vector<1x16x16xf32>
    %20 = vector.shape_cast %19 : vector<1x16x16xf32> to vector<16x16xf32>
    %cst_18 = arith.constant dense<0.000000e+00> : vector<16x128xf32>
    %21 = tpu.matmul %20, %18, %cst_18 {dimension_numbers = #tpu.dot_dimension_numbers<[1], [0], [0], [1], [0, 0, 1, 1], [], []>} : vector<16x16xf32>, vector<16x128xf32>, vector<16x128xf32> -> vector<16x128xf32>
    %22 = arith.addf %17, %21 : vector<16x128xf32>
    %23 = vector.extract_strided_slice %12 {offsets = [0, 256], sizes = [16, 128], strides = [1, 1]} : vector<16x640xf32> to vector<16x128xf32>
    %c1 = arith.constant 1 : index
    %c0_19 = arith.constant 0 : index
    %c0_20 = arith.constant 0 : index
    %24 = vector.load %arg5[%c1, %c0_19, %c0_20] : memref<4x16x16xf32, #tpu.memory_space<vmem>>, vector<1x16x16xf32>
    %25 = vector.shape_cast %24 : vector<1x16x16xf32> to vector<16x16xf32>
    %cst_21 = arith.constant dense<0.000000e+00> : vector<16x128xf32>
    %26 = tpu.matmul %25, %23, %cst_21 {dimension_numbers = #tpu.dot_dimension_numbers<[1], [0], [0], [1], [0, 0, 1, 1], [], []>} : vector<16x16xf32>, vector<16x128xf32>, vector<16x128xf32> -> vector<16x128xf32>
    %27 = arith.addf %22, %26 : vector<16x128xf32>
    %28 = vector.extract_strided_slice %12 {offsets = [0, 384], sizes = [16, 128], strides = [1, 1]} : vector<16x640xf32> to vector<16x128xf32>
    %c2 = arith.constant 2 : index
    %c0_22 = arith.constant 0 : index
    %c0_23 = arith.constant 0 : index
    %29 = vector.load %arg5[%c2, %c0_22, %c0_23] : memref<4x16x16xf32, #tpu.memory_space<vmem>>, vector<1x16x16xf32>
    %30 = vector.shape_cast %29 : vector<1x16x16xf32> to vector<16x16xf32>
    %cst_24 = arith.constant dense<0.000000e+00> : vector<16x128xf32>
    %31 = tpu.matmul %30, %28, %cst_24 {dimension_numbers = #tpu.dot_dimension_numbers<[1], [0], [0], [1], [0, 0, 1, 1], [], []>} : vector<16x16xf32>, vector<16x128xf32>, vector<16x128xf32> -> vector<16x128xf32>
    %32 = arith.addf %27, %31 : vector<16x128xf32>
    %33 = vector.extract_strided_slice %12 {offsets = [0, 512], sizes = [16, 128], strides = [1, 1]} : vector<16x640xf32> to vector<16x128xf32>
    %c3 = arith.constant 3 : index
    %c0_25 = arith.constant 0 : index
    %c0_26 = arith.constant 0 : index
    %34 = vector.load %arg5[%c3, %c0_25, %c0_26] : memref<4x16x16xf32, #tpu.memory_space<vmem>>, vector<1x16x16xf32>
    %35 = vector.shape_cast %34 : vector<1x16x16xf32> to vector<16x16xf32>
    %cst_27 = arith.constant dense<0.000000e+00> : vector<16x128xf32>
    %36 = tpu.matmul %35, %33, %cst_27 {dimension_numbers = #tpu.dot_dimension_numbers<[1], [0], [0], [1], [0, 0, 1, 1], [], []>} : vector<16x16xf32>, vector<16x128xf32>, vector<16x128xf32> -> vector<16x128xf32>
    %37 = arith.addf %32, %36 : vector<16x128xf32>
    %cst_28 = arith.constant 0.000000e+00 : f32
    %38 = vector.broadcast %cst_28 : f32 to vector<16x128xf32>
    %39 = arith.maximumf %37, %38 : vector<16x128xf32>
    %c1_29 = arith.constant 1 : index
    %c0_30 = arith.constant 0 : index
    %c0_31 = arith.constant 0 : index
    %40 = vector.load %arg6[%c1_29, %c0_30, %c0_31] : memref<2x128x640xf32, #tpu.memory_space<vmem>>, vector<1x128x640xf32>
    %41 = vector.shape_cast %40 : vector<1x128x640xf32> to vector<128x640xf32>
    %cst_32 = arith.constant dense<0.000000e+00> : vector<16x640xf32>
    %42 = tpu.matmul %39, %41, %cst_32 {dimension_numbers = #tpu.dot_dimension_numbers<[1], [0], [0], [1], [0, 0, 1, 1], [], []>} : vector<16x128xf32>, vector<128x640xf32>, vector<16x640xf32> -> vector<16x640xf32>
    %43 = vector.extract_strided_slice %42 {offsets = [0, 0], sizes = [16, 128], strides = [1, 1]} : vector<16x640xf32> to vector<16x128xf32>
    %c1_33 = arith.constant 1 : index
    %c0_34 = arith.constant 0 : index
    %c0_35 = arith.constant 0 : index
    %44 = vector.load %arg7[%c1_33, %c0_34, %c0_35] : memref<2x1x128xf32, #tpu.memory_space<vmem>>, vector<1x1x128xf32>
    %45 = vector.shape_cast %44 : vector<1x1x128xf32> to vector<1x128xf32>
    %46 = vector.broadcast %45 : vector<1x128xf32> to vector<16x128xf32>
    %47 = arith.addf %43, %46 : vector<16x128xf32>
    %48 = vector.extract_strided_slice %42 {offsets = [0, 128], sizes = [16, 128], strides = [1, 1]} : vector<16x640xf32> to vector<16x128xf32>
    %c0_36 = arith.constant 0 : index
    %c0_37 = arith.constant 0 : index
    %c0_38 = arith.constant 0 : index
    %49 = vector.load %arg5[%c0_36, %c0_37, %c0_38] : memref<4x16x16xf32, #tpu.memory_space<vmem>>, vector<1x16x16xf32>
    %50 = vector.shape_cast %49 : vector<1x16x16xf32> to vector<16x16xf32>
    %cst_39 = arith.constant dense<0.000000e+00> : vector<16x128xf32>
    %51 = tpu.matmul %50, %48, %cst_39 {dimension_numbers = #tpu.dot_dimension_numbers<[1], [0], [0], [1], [0, 0, 1, 1], [], []>} : vector<16x16xf32>, vector<16x128xf32>, vector<16x128xf32> -> vector<16x128xf32>
    %52 = arith.addf %47, %51 : vector<16x128xf32>
    %53 = vector.extract_strided_slice %42 {offsets = [0, 256], sizes = [16, 128], strides = [1, 1]} : vector<16x640xf32> to vector<16x128xf32>
    %c1_40 = arith.constant 1 : index
    %c0_41 = arith.constant 0 : index
    %c0_42 = arith.constant 0 : index
    %54 = vector.load %arg5[%c1_40, %c0_41, %c0_42] : memref<4x16x16xf32, #tpu.memory_space<vmem>>, vector<1x16x16xf32>
    %55 = vector.shape_cast %54 : vector<1x16x16xf32> to vector<16x16xf32>
    %cst_43 = arith.constant dense<0.000000e+00> : vector<16x128xf32>
    %56 = tpu.matmul %55, %53, %cst_43 {dimension_numbers = #tpu.dot_dimension_numbers<[1], [0], [0], [1], [0, 0, 1, 1], [], []>} : vector<16x16xf32>, vector<16x128xf32>, vector<16x128xf32> -> vector<16x128xf32>
    %57 = arith.addf %52, %56 : vector<16x128xf32>
    %58 = vector.extract_strided_slice %42 {offsets = [0, 384], sizes = [16, 128], strides = [1, 1]} : vector<16x640xf32> to vector<16x128xf32>
    %c2_44 = arith.constant 2 : index
    %c0_45 = arith.constant 0 : index
    %c0_46 = arith.constant 0 : index
    %59 = vector.load %arg5[%c2_44, %c0_45, %c0_46] : memref<4x16x16xf32, #tpu.memory_space<vmem>>, vector<1x16x16xf32>
    %60 = vector.shape_cast %59 : vector<1x16x16xf32> to vector<16x16xf32>
    %cst_47 = arith.constant dense<0.000000e+00> : vector<16x128xf32>
    %61 = tpu.matmul %60, %58, %cst_47 {dimension_numbers = #tpu.dot_dimension_numbers<[1], [0], [0], [1], [0, 0, 1, 1], [], []>} : vector<16x16xf32>, vector<16x128xf32>, vector<16x128xf32> -> vector<16x128xf32>
    %62 = arith.addf %57, %61 : vector<16x128xf32>
    %63 = vector.extract_strided_slice %42 {offsets = [0, 512], sizes = [16, 128], strides = [1, 1]} : vector<16x640xf32> to vector<16x128xf32>
    %c3_48 = arith.constant 3 : index
    %c0_49 = arith.constant 0 : index
    %c0_50 = arith.constant 0 : index
    %64 = vector.load %arg5[%c3_48, %c0_49, %c0_50] : memref<4x16x16xf32, #tpu.memory_space<vmem>>, vector<1x16x16xf32>
    %65 = vector.shape_cast %64 : vector<1x16x16xf32> to vector<16x16xf32>
    %cst_51 = arith.constant dense<0.000000e+00> : vector<16x128xf32>
    %66 = tpu.matmul %65, %63, %cst_51 {dimension_numbers = #tpu.dot_dimension_numbers<[1], [0], [0], [1], [0, 0, 1, 1], [], []>} : vector<16x16xf32>, vector<16x128xf32>, vector<16x128xf32> -> vector<16x128xf32>
    %67 = arith.addf %62, %66 : vector<16x128xf32>
    %cst_52 = arith.constant 0.000000e+00 : f32
    %68 = vector.broadcast %cst_52 : f32 to vector<16x128xf32>
    %69 = arith.maximumf %67, %68 : vector<16x128xf32>
    %c0_53 = arith.constant 0 : index
    %c0_54 = arith.constant 0 : index
    %70 = vector.load %arg8[%c0_53, %c0_54] : memref<16x128xf32, #tpu.memory_space<vmem>>, vector<16x128xf32>
    tpu.vector_store %arg8[%c0_53, %c0_54], %69 {strides = array<i32>} : memref<16x128xf32, #tpu.memory_space<vmem>>, vector<16x128xf32>,
    return
  }
  func.func @transform_0(%arg0: i32) -> (i32, i32) {
    %c0_i32 = arith.constant 0 : i32
    %c0_i32_0 = arith.constant 0 : i32
    return %arg0, %c0_i32 : i32, i32
  }
  func.func @transform_1(%arg0: i32) -> (i32, i32) {
    %c0_i32 = arith.constant 0 : i32
    %c0_i32_0 = arith.constant 0 : i32
    return %arg0, %c0_i32 : i32, i32
  }
  func.func @transform_2(%arg0: i32) -> (i32, i32) {
    %c0_i32 = arith.constant 0 : i32
    %c0_i32_0 = arith.constant 0 : i32
    %c0_i32_1 = arith.constant 0 : i32
    return %c0_i32, %c0_i32_0 : i32, i32
  }
  func.func @transform_3(%arg0: i32) -> (i32, i32) {
    %c0_i32 = arith.constant 0 : i32
    %c0_i32_0 = arith.constant 0 : i32
    %c0_i32_1 = arith.constant 0 : i32
    return %c0_i32, %c0_i32_0 : i32, i32
  }
  func.func @transform_4(%arg0: i32) -> (i32, i32, i32) {
    %c0_i32 = arith.constant 0 : i32
    %c0_i32_0 = arith.constant 0 : i32
    %c0_i32_1 = arith.constant 0 : i32
    %c0_i32_2 = arith.constant 0 : i32
    return %c0_i32, %c0_i32_0, %c0_i32_1 : i32, i32, i32
  }
  func.func @transform_5(%arg0: i32) -> (i32, i32, i32) {
    %c0_i32 = arith.constant 0 : i32
    %c0_i32_0 = arith.constant 0 : i32
    %c0_i32_1 = arith.constant 0 : i32
    %c0_i32_2 = arith.constant 0 : i32
    return %c0_i32, %c0_i32_0, %c0_i32_1 : i32, i32, i32
  }
  func.func @transform_6(%arg0: i32) -> (i32, i32, i32) {
    %c0_i32 = arith.constant 0 : i32
    %c0_i32_0 = arith.constant 0 : i32
    %c0_i32_1 = arith.constant 0 : i32
    %c0_i32_2 = arith.constant 0 : i32
    return %c0_i32, %c0_i32_0, %c0_i32_1 : i32, i32, i32
  }
  func.func @transform_7(%arg0: i32) -> (i32, i32) {
    %c0_i32 = arith.constant 0 : i32
    %c0_i32_0 = arith.constant 0 : i32
    return %arg0, %c0_i32 : i32, i32
  }
}

module attributes {stable_mosaic.version = 11 : i64} {
  func.func @kernel(%arg0: i32, %arg1: memref<16x32xf32, #tpu.memory_space<vmem>>, %arg2: memref<16x32xf32, #tpu.memory_space<vmem>>, %arg3: memref<32x128xf32, #tpu.memory_space<vmem>>, %arg4: memref<1x128xf32, #tpu.memory_space<vmem>>, %arg5: memref<4x16x16xf32, #tpu.memory_space<vmem>>, %arg6: memref<2x128x640xf32, #tpu.memory_space<vmem>>, %arg7: memref<2x1x128xf32, #tpu.memory_space<vmem>>, %arg8: memref<16x128xf32, #tpu.memory_space<vmem>>) attributes {dimension_semantics = [#tpu.dimension_semantics<parallel>], iteration_bounds = array<i64: 2>, scalar_prefetch = 0 : i64, scratch_operands = 0 : i64, tpu.core_type = #tpu.core_type<tc>, window_params = [{transform_indices = @transform_0, window_bounds = array<i64: 16, 32>}, {transform_indices = @transform_1, window_bounds = array<i64: 16, 32>}, {pipeline_mode = #tpu.pipeline_mode<synchronous>, transform_indices = @transform_2, window_bounds = array<i64: 32, 128>}, {pipeline_mode = #tpu.pipeline_mode<synchronous>, transform_indices = @transform_3, window_bounds = array<i64: 1, 128>}, {pipeline_mode = #tpu.pipeline_mode<synchronous>, transform_indices = @transform_4, window_bounds = array<i64: 4, 16, 16>}, {pipeline_mode = #tpu.pipeline_mode<synchronous>, transform_indices = @transform_5, window_bounds = array<i64: 2, 128, 640>}, {pipeline_mode = #tpu.pipeline_mode<synchronous>, transform_indices = @transform_6, window_bounds = array<i64: 2, 1, 128>}, {transform_indices = @transform_7, window_bounds = array<i64: 16, 128>}]} {
    %c0 = arith.constant 0 : index
    %c0_0 = arith.constant 0 : index
    %0 = vector.load %arg1[%c0, %c0_0] : memref<16x32xf32, #tpu.memory_space<vmem>>, vector<16x32xf32>
    %c0_1 = arith.constant 0 : index
    %c0_2 = arith.constant 0 : index
    %1 = vector.load %arg2[%c0_1, %c0_2] : memref<16x32xf32, #tpu.memory_space<vmem>>, vector<16x32xf32>
    %2 = arith.mulf %0, %1 : vector<16x32xf32>
    %c0_3 = arith.constant 0 : index
    %c0_4 = arith.constant 0 : index
    %3 = vector.load %arg3[%c0_3, %c0_4] : memref<32x128xf32, #tpu.memory_space<vmem>>, vector<32x128xf32>
    %cst = arith.constant dense<0.000000e+00> : vector<16x128xf32>
    %4 = tpu.matmul %2, %3, %cst {dimension_numbers = #tpu.dot_dimension_numbers<[1], [0], [0], [1], [0, 0, 1, 1], [], []>} : vector<16x32xf32>, vector<32x128xf32>, vector<16x128xf32> -> vector<16x128xf32>
    %c0_5 = arith.constant 0 : index
    %c0_6 = arith.constant 0 : index
    %5 = vector.load %arg4[%c0_5, %c0_6] : memref<1x128xf32, #tpu.memory_space<vmem>>, vector<1x128xf32>
    %6 = vector.broadcast %5 : vector<1x128xf32> to vector<16x128xf32>
    %7 = arith.addf %4, %6 : vector<16x128xf32>
    %cst_7 = arith.constant 0.000000e+00 : f32
    %8 = vector.broadcast %cst_7 : f32 to vector<16x128xf32>
    %9 = arith.maximumf %7, %8 : vector<16x128xf32>
    %c0_8 = arith.constant 0 : index
    %c0_9 = arith.constant 0 : index
    %c0_10 = arith.constant 0 : index
    %10 = vector.load %arg6[%c0_8, %c0_9, %c0_10] : memref<2x128x640xf32, #tpu.memory_space<vmem>>, vector<1x128x640xf32>
    %11 = vector.shape_cast %10 : vector<1x128x640xf32> to vector<128x640xf32>
    %cst_11 = arith.constant dense<0.000000e+00> : vector<16x640xf32>
    %12 = tpu.matmul %9, %11, %cst_11 {dimension_numbers = #tpu.dot_dimension_numbers<[1], [0], [0], [1], [0, 0, 1, 1], [], []>} : vector<16x128xf32>, vector<128x640xf32>, vector<16x640xf32> -> vector<16x640xf32>
    %13 = vector.extract_strided_slice %12 {offsets = [0, 0], sizes = [16, 128], strides = [1, 1]} : vector<16x640xf32> to vector<16x128xf32>
    %c0_12 = arith.constant 0 : index
    %c0_13 = arith.constant 0 : index
    %c0_14 = arith.constant 0 : index
    %14 = vector.load %arg7[%c0_12, %c0_13, %c0_14] : memref<2x1x128xf32, #tpu.memory_space<vmem>>, vector<1x1x128xf32>
    %15 = vector.shape_cast %14 : vector<1x1x128xf32> to vector<1x128xf32>
    %16 = vector.broadcast %15 : vector<1x128xf32> to vector<16x128xf32>
    %17 = arith.addf %13, %16 : vector<16x128xf32>
    %18 = vector.extract_strided_slice %12 {offsets = [0, 128], sizes = [16, 128], strides = [1, 1]} : vector<16x640xf32> to vector<16x128xf32>
    %c0_15 = arith.constant 0 : index
    %c0_16 = arith.constant 0 : index
    %c0_17 = arith.constant 0 : index
    %19 = vector.load %arg5[%c0_15, %c0_16, %c0_17] : memref<4x16x16xf32, #tpu.memory_space<vmem>>, vector<1x16x16xf32>
    %20 = vector.shape_cast %19 : vector<1x16x16xf32> to vector<16x16xf32>
    %cst_18 = arith.constant dense<0.000000e+00> : vector<16x128xf32>
    %21 = tpu.matmul %20, %18, %cst_18 {dimension_numbers = #tpu.dot_dimension_numbers<[1], [0], [0], [1], [0, 0, 1, 1], [], []>} : vector<16x16xf32>, vector<16x128xf32>, vector<16x128xf32> -> vector<16x128xf32>
    %22 = arith.addf %17, %21 : vector<16x128xf32>
    %23 = vector.extract_strided_slice %12 {offsets = [0, 256], sizes = [16, 128], strides = [1, 1]} : vector<16x640xf32> to vector<16x128xf32>
    %c1 = arith.constant 1 : index
    %c0_19 = arith.constant 0 : index
    %c0_20 = arith.constant 0 : index
    %24 = vector.load %arg5[%c1, %c0_19, %c0_20] : memref<4x16x16xf32, #tpu.memory_space<vmem>>, vector<1x16x16xf32>
    %25 = vector.shape_cast %24 : vector<1x16x16xf32> to vector<16x16xf32>
    %cst_21 = arith.constant dense<0.000000e+00> : vector<16x128xf32>
    %26 = tpu.matmul %25, %23, %cst_21 {dimension_numbers = #tpu.dot_dimension_numbers<[1], [0], [0], [1], [0, 0, 1, 1], [], []>} : vector<16x16xf32>, vector<16x128xf32>, vector<16x128xf32> -> vector<16x128xf32>
    %27 = arith.addf %22, %26 : vector<16x128xf32>
    %28 = vector.extract_strided_slice %12 {offsets = [0, 384], sizes = [16, 128], strides = [1, 1]} : vector<16x640xf32> to vector<16x128xf32>
    %c2 = arith.constant 2 : index
    %c0_22 = arith.constant 0 : index
    %c0_23 = arith.constant 0 : index
    %29 = vector.load %arg5[%c2, %c0_22, %c0_23] : memref<4x16x16xf32, #tpu.memory_space<vmem>>, vector<1x16x16xf32>
    %30 = vector.shape_cast %29 : vector<1x16x16xf32> to vector<16x16xf32>
    %cst_24 = arith.constant dense<0.000000e+00> : vector<16x128xf32>
    %31 = tpu.matmul %30, %28, %cst_24 {dimension_numbers = #tpu.dot_dimension_numbers<[1], [0], [0], [1], [0, 0, 1, 1], [], []>} : vector<16x16xf32>, vector<16x128xf32>, vector<16x128xf32> -> vector<16x128xf32>
    %32 = arith.addf %27, %31 : vector<16x128xf32>
    %33 = vector.extract_strided_slice %12 {offsets = [0, 512], sizes = [16, 128], strides = [1, 1]} : vector<16x640xf32> to vector<16x128xf32>
    %c3 = arith.constant 3 : index
    %c0_25 = arith.constant 0 : index
    %c0_26 = arith.constant 0 : index
    %34 = vector.load %arg5[%c3, %c0_25, %c0_26] : memref<4x16x16xf32, #tpu.memory_space<vmem>>, vector<1x16x16xf32>
    %35 = vector.shape_cast %34 : vector<1x16x16xf32> to vector<16x16xf32>
    %cst_27 = arith.constant dense<0.000000e+00> : vector<16x128xf32>
    %36 = tpu.matmul %35, %33, %cst_27 {dimension_numbers = #tpu.dot_dimension_numbers<[1], [0], [0], [1], [0, 0, 1, 1], [], []>} : vector<16x16xf32>, vector<16x128xf32>, vector<16x128xf32> -> vector<16x128xf32>
    %37 = arith.addf %32, %36 : vector<16x128xf32>
    %cst_28 = arith.constant 0.000000e+00 : f32
    %38 = vector.broadcast %cst_28 : f32 to vector<16x128xf32>
    %39 = arith.maximumf %37, %38 : vector<16x128xf32>
    %c1_29 = arith.constant 1 : index
    %c0_30 = arith.constant 0 : index
    %c0_31 = arith.constant 0 : index
    %40 = vector.load %arg6[%c1_29, %c0_30, %c0_31] : memref<2x128x640xf32, #tpu.memory_space<vmem>>, vector<1x128x640xf32>
    %41 = vector.shape_cast %40 : vector<1x128x640xf32> to vector<128x640xf32>
    %cst_32 = arith.constant dense<0.000000e+00> : vector<16x640xf32>
    %42 = tpu.matmul %39, %41, %cst_32 {dimension_numbers = #tpu.dot_dimension_numbers<[1], [0], [0], [1], [0, 0, 1, 1], [], []>} : vector<16x128xf32>, vector<128x640xf32>, vector<16x640xf32> -> vector<16x640xf32>
    %43 = vector.extract_strided_slice %42 {offsets = [0, 0], sizes = [16, 128], strides = [1, 1]} : vector<16x640xf32> to vector<16x128xf32>
    %c1_33 = arith.constant 1 : index
    %c0_34 = arith.constant 0 : index
    %c0_35 = arith.constant 0 : index
    %44 = vector.load %arg7[%c1_33, %c0_34, %c0_35] : memref<2x1x128xf32, #tpu.memory_space<vmem>>, vector<1x1x128xf32>
    %45 = vector.shape_cast %44 : vector<1x1x128xf32> to vector<1x128xf32>
    %46 = vector.broadcast %45 : vector<1x128xf32> to vector<16x128xf32>
    %47 = arith.addf %43, %46 : vector<16x128xf32>
    %48 = vector.extract_strided_slice %42 {offsets = [0, 128], sizes = [16, 128], strides = [1, 1]} : vector<16x640xf32> to vector<16x128xf32>
    %c0_36 = arith.constant 0 : index
    %c0_37 = arith.constant 0 : index
    %c0_38 = arith.constant 0 : index
    %49 = vector.load %arg5[%c0_36, %c0_37, %c0_38] : memref<4x16x16xf32, #tpu.memory_space<vmem>>, vector<1x16x16xf32>
    %50 = vector.shape_cast %49 : vector<1x16x16xf32> to vector<16x16xf32>
    %cst_39 = arith.constant dense<0.000000e+00> : vector<16x128xf32>
    %51 = tpu.matmul %50, %48, %cst_39 {dimension_numbers = #tpu.dot_dimension_numbers<[1], [0], [0], [1], [0, 0, 1, 1], [], []>} : vector<16x16xf32>, vector<16x128xf32>, vector<16x128xf32> -> vector<16x128xf32>
    %52 = arith.addf %47, %51 : vector<16x128xf32>
    %53 = vector.extract_strided_slice %42 {offsets = [0, 256], sizes = [16, 128], strides = [1, 1]} : vector<16x640xf32> to vector<16x128xf32>
    %c1_40 = arith.constant 1 : index
    %c0_41 = arith.constant 0 : index
    %c0_42 = arith.constant 0 : index
    %54 = vector.load %arg5[%c1_40, %c0_41, %c0_42] : memref<4x16x16xf32, #tpu.memory_space<vmem>>, vector<1x16x16xf32>
    %55 = vector.shape_cast %54 : vector<1x16x16xf32> to vector<16x16xf32>
    %cst_43 = arith.constant dense<0.000000e+00> : vector<16x128xf32>
    %56 = tpu.matmul %55, %53, %cst_43 {dimension_numbers = #tpu.dot_dimension_numbers<[1], [0], [0], [1], [0, 0, 1, 1], [], []>} : vector<16x16xf32>, vector<16x128xf32>, vector<16x128xf32> -> vector<16x128xf32>
    %57 = arith.addf %52, %56 : vector<16x128xf32>
    %58 = vector.extract_strided_slice %42 {offsets = [0, 384], sizes = [16, 128], strides = [1, 1]} : vector<16x640xf32> to vector<16x128xf32>
    %c2_44 = arith.constant 2 : index
    %c0_45 = arith.constant 0 : index
    %c0_46 = arith.constant 0 : index
    %59 = vector.load %arg5[%c2_44, %c0_45, %c0_46] : memref<4x16x16xf32, #tpu.memory_space<vmem>>, vector<1x16x16xf32>
    %60 = vector.shape_cast %59 : vector<1x16x16xf32> to vector<16x16xf32>
    %cst_47 = arith.constant dense<0.000000e+00> : vector<16x128xf32>
    %61 = tpu.matmul %60, %58, %cst_47 {dimension_numbers = #tpu.dot_dimension_numbers<[1], [0], [0], [1], [0, 0, 1, 1], [], []>} : vector<16x16xf32>, vector<16x128xf32>, vector<16x128xf32> -> vector<16x128xf32>
    %62 = arith.addf %57, %61 : vector<16x128xf32>
    %63 = vector.extract_strided_slice %42 {offsets = [0, 512], sizes = [16, 128], strides = [1, 1]} : vector<16x640xf32> to vector<16x128xf32>
    %c3_48 = arith.constant 3 : index
    %c0_49 = arith.constant 0 : index
    %c0_50 = arith.constant 0 : index
    %64 = vector.load %arg5[%c3_48, %c0_49, %c0_50] : memref<4x16x16xf32, #tpu.memory_space<vmem>>, vector<1x16x16xf32>
    %65 = vector.shape_cast %64 : vector<1x16x16xf32> to vector<16x16xf32>
    %cst_51 = arith.constant dense<0.000000e+00> : vector<16x128xf32>
    %66 = tpu.matmul %65, %63, %cst_51 {dimension_numbers = #tpu.dot_dimension_numbers<[1], [0], [0], [1], [0, 0, 1, 1], [], []>} : vector<16x16xf32>, vector<16x128xf32>, vector<16x128xf32> -> vector<16x128xf32>
    %67 = arith.addf %62, %66 : vector<16x128xf32>
    %cst_52 = arith.constant 0.000000e+00 : f32
    %68 = vector.broadcast %cst_52 : f32 to vector<16x128xf32>
    %69 = arith.maximumf %67, %68 : vector<16x128xf32>
    %c0_53 = arith.constant 0 : index
    %c0_54 = arith.constant 0 : index
    %70 = vector.load %arg8[%c0_53, %c0_54] : memref<16x128xf32, #tpu.memory_space<vmem>>, vector<16x128xf32>
    tpu.vector_store %arg8[%c0_53, %c0_54], %69 {strides = array<i32>} : memref<16x128xf32, #tpu.memory_space<vmem>>, vector<16x128xf32>,
    return
  }
  func.func @transform_0(%arg0: i32) -> (i32, i32) {
    %c0_i32 = arith.constant 0 : i32
    %c0_i32_0 = arith.constant 0 : i32
    return %arg0, %c0_i32 : i32, i32
  }
  func.func @transform_1(%arg0: i32) -> (i32, i32) {
    %c0_i32 = arith.constant 0 : i32
    %c0_i32_0 = arith.constant 0 : i32
    return %arg0, %c0_i32 : i32, i32
  }
  func.func @transform_2(%arg0: i32) -> (i32, i32) {
    %c0_i32 = arith.constant 0 : i32
    %c0_i32_0 = arith.constant 0 : i32
    %c0_i32_1 = arith.constant 0 : i32
    return %c0_i32, %c0_i32_0 : i32, i32
  }
  func.func @transform_3(%arg0: i32) -> (i32, i32) {
    %c0_i32 = arith.constant 0 : i32
    %c0_i32_0 = arith.constant 0 : i32
    %c0_i32_1 = arith.constant 0 : i32
    return %c0_i32, %c0_i32_0 : i32, i32
  }
  func.func @transform_4(%arg0: i32) -> (i32, i32, i32) {
    %c0_i32 = arith.constant 0 : i32
    %c0_i32_0 = arith.constant 0 : i32
    %c0_i32_1 = arith.constant 0 : i32
    %c0_i32_2 = arith.constant 0 : i32
    return %c0_i32, %c0_i32_0, %c0_i32_1 : i32, i32, i32
  }
  func.func @transform_5(%arg0: i32) -> (i32, i32, i32) {
    %c0_i32 = arith.constant 0 : i32
    %c0_i32_0 = arith.constant 0 : i32
    %c0_i32_1 = arith.constant 0 : i32
    %c0_i32_2 = arith.constant 0 : i32
    return %c0_i32, %c0_i32_0, %c0_i32_1 : i32, i32, i32
  }
  func.func @transform_6(%arg0: i32) -> (i32, i32, i32) {
    %c0_i32 = arith.constant 0 : i32
    %c0_i32_0 = arith.constant 0 : i32
    %c0_i32_1 = arith.constant 0 : i32
    %c0_i32_2 = arith.constant 0 : i32
    return %c0_i32, %c0_i32_0, %c0_i32_1 : i32, i32, i32
  }
  func.func @transform_7(%arg0: i32) -> (i32, i32) {
    %c0_i32 = arith.constant 0 : i32
    %c0_i32_0 = arith.constant 0 : i32
    return %arg0, %c0_i32 : i32, i32
  }
}

</mosaic_0001>

<llo_original>
// kernel: tpu_custom_call.1
$region0: #{tpu_custom_call.1}
  #allocation0 [shape = 'u32[]', space=smem, size = 0x4, offset = 0x4, fixed_abs, tag = 'smem constant byte address 0x4 - core index']
  #allocation1 [shape = 'u32[144,128]{1,0:T(1,128)}', space=vmem, size = 0x12000, scoped, tag = 'internal scratch']
  %s0 = inlined_call_operand.hbm [shape: f32[32,32], index: 0, kind: input, shape index: {}]
  %s1 = inlined_call_operand.hbm [shape: f32[32,32], index: 1, kind: input, shape index: {}]
  %s2 = inlined_call_operand.hbm [shape: f32[32,128], index: 2, kind: input, shape index: {}]
  %s3 = inlined_call_operand.vmem [shape: f32[1,128], index: 3, kind: input, shape index: {}]
  %s4 = inlined_call_operand.hbm [shape: f32[4,16,16], index: 4, kind: input, shape index: {}]
  %s5 = inlined_call_operand.hbm [shape: f32[2,128,640], index: 5, kind: input, shape index: {}]
  %s6 = inlined_call_operand.vmem [shape: f32[2,1,128], index: 6, kind: input, shape index: {}]
  %s7 = inlined_call_operand.hbm [shape: f32[32,128], index: 7, kind: output, shape index: {}]
  %s8 = sld [smem:[#allocation0]]
  $region81: #{tpu_custom_call.1} parent=0
    _
  %s10 = ssub.s32 1, %s8
  %s11 = scalar_select 0, %s10, %s8
  $region1: #{tpu_custom_call.1} parent=0
    #allocation2 [shape = 'u8[16384]{0}', space=vmem, size = 0x4000, scoped, tag = 'input window, operand 0']
    #allocation3 [shape = 's32[2]{0}', space=sflag, size = 0x8, scoped, tag = 'scoped memory for tpu_custom_call.1']
    #allocation4 [shape = 's32[2]{0}', space=sflag, size = 0x8, scoped, tag = 'scoped memory for tpu_custom_call.1']
    #allocation5 [shape = 'u8[16384]{0}', space=vmem, size = 0x4000, scoped, tag = 'input window, operand 1']
    #allocation6 [shape = 's32[2]{0}', space=sflag, size = 0x8, scoped, tag = 'scoped memory for tpu_custom_call.1']
    #allocation7 [shape = 'u8[16384]{0}', space=vmem, size = 0x4000, scoped, tag = 'input window, operand 2, single buffered']
    #allocation8 [shape = 'u8[32768]{0}', space=vmem, size = 0x8000, scoped, tag = 'input window, operand 4, single buffered']
    #allocation9 [shape = 's32[1]{0}', space=sflag, size = 0x4, scoped, tag = 'scoped memory for tpu_custom_call.1']
    #allocation10 [shape = 'u8[655360]{0}', space=vmem, size = 0xa0000, scoped, tag = 'input window, operand 5, single buffered']
    #allocation11 [shape = 'u8[16384]{0}', space=vmem, size = 0x4000, scoped, tag = 'output window, operand 0']
    %12 = vsyncpa [#allocation3], 0
    %s13 = scalar_lea.sflag [#allocation3], 1
    %14 = vsyncpa %s13, 0
    %15 = vsyncpa [#allocation6], 0
    %s16 = scalar_lea.sflag [#allocation6], 1
    %17 = vsyncpa %s16, 0
    %18 = vsyncpa [#allocation9], 0
    %19 = vsyncpa [#allocation4], 0
    %s20 = scalar_lea.sflag [#allocation4], 1
    %21 = vsyncpa %s20, 0
    loop: start=0, step=1, limit=4
    $region2: #{tpu_custom_call.1} parent=1 // loop_pre_header
      _
    $region3: #{tpu_custom_call.1} parent=1 // loop_header
      %s23 = sphi 0, %s27
      %p24 = scmp.ge.s32.totalorder %s23, 4
      %s33 = sphi 0, %s35
      %s36 = sphi 0, %s33
      %s37 = sphi 0, %s36
      %s53 = sphi 0, %s37
      %s59 = sphi 0, %s61
      %s62 = sphi 0, %s59
      %s63 = sphi 0, %s62
      %s79 = sphi 0, %s63
      %s83 = sphi 0, %s83
      %s85 = sphi 0, %s83
      %s86 = sphi 0, %s85
      %s100 = sphi 0, %s86
      %s104 = sphi 0, %s104
      %s106 = sphi 0, %s104
      %s107 = sphi 0, %s106
      %s121 = sphi 0, %s107
      %s125 = sphi 0, %s125
      %s127 = sphi 0, %s125
      %s128 = sphi 0, %s127
      %s142 = sphi 0, %s128
      %s146 = sphi 0, %s146
      %s148 = sphi 0, %s146
      %s149 = sphi 0, %s148
      %s163 = sphi 0, %s149
      %s167 = sphi 0, %s167
      %s169 = sphi 0, %s167
      %s170 = sphi 0, %s169
      %s184 = sphi 0, %s170
      %s190 = sphi 0, %s192
      %s193 = sphi 0, %s190
      %s194 = sphi 0, %s193
      %s210 = sphi 0, %s194
    $region4: #{tpu_custom_call.1} parent=1 // loop_header_branch
      %26 = sbr.rel (%p24) target = $region8
    $region5: #{tpu_custom_call.1} parent=1 // loop_body
      %s28 = ssub.s32 %s23, 1
      %s29 = ssub.s32 %s23, 2
      %s30 = sadd.s32 %s23, 1
      %s31 = ssub.s32 %s23, %s30
      %p32 = scmp.eq.s32.totalorder %s31, 0
      %s34 = sadd.s32 %s33, 1
      %s35 = scalar_select %p32, %s33, %s34
      %p38 = pneg %p32
      %p39 = scmp.eq.s32.totalorder %s23, 1
      %p40 = por %p38, %p39
      %p41 = scmp.ne.s32.totalorder %s33, %s36
      %p42 = scmp.eq.s32.totalorder %s23, 0
      %p43 = por %p41, %p42
      %p44 = scmp.ne.s32.totalorder %s33, %s36
      %p45 = scmp.eq.s32.totalorder %s28, 1
      %p46 = por %p44, %p45
      %p47 = scmp.ne.s32.totalorder %s36, %s37
      %p48 = scmp.eq.s32.totalorder %s28, 0
      %p49 = por %p47, %p48
      %p50 = scmp.ne.s32.totalorder %s36, %s37
      %p51 = scmp.eq.s32.totalorder %s29, 1
      %p52 = por %p50, %p51
      %p54 = scmp.ne.s32.totalorder %s37, %s53
      %p55 = scmp.eq.s32.totalorder %s29, 0
      %p56 = por %p54, %p55
      %s57 = ssub.s32 %s23, %s30
      %p58 = scmp.eq.s32.totalorder %s57, 0
      %s60 = sadd.s32 %s59, 1
      %s61 = scalar_select %p58, %s59, %s60
      %p64 = pneg %p58
      %p65 = scmp.eq.s32.totalorder %s23, 1
      %p66 = por %p64, %p65
      %p67 = scmp.ne.s32.totalorder %s59, %s62
      %p68 = scmp.eq.s32.totalorder %s23, 0
      %p69 = por %p67, %p68
      %p70 = scmp.ne.s32.totalorder %s59, %s62
      %p71 = scmp.eq.s32.totalorder %s28, 1
      %p72 = por %p70, %p71
      %p73 = scmp.ne.s32.totalorder %s62, %s63
      %p74 = scmp.eq.s32.totalorder %s28, 0
      %p75 = por %p73, %p74
      %p76 = scmp.ne.s32.totalorder %s62, %s63
      %p77 = scmp.eq.s32.totalorder %s29, 1
      %p78 = por %p76, %p77
      %p80 = scmp.ne.s32.totalorder %s63, %s79
      %p81 = scmp.eq.s32.totalorder %s29, 0
      %p82 = por %p80, %p81
      %s84 = sadd.s32 %s83, 1
      %p87 = scmp.eq.s32.totalorder %s23, 1
      %p88 = scmp.ne.s32.totalorder %s83, %s85
      %p89 = scmp.eq.s32.totalorder %s23, 0
      %p90 = por %p88, %p89
      %p91 = scmp.ne.s32.totalorder %s83, %s85
      %p92 = scmp.eq.s32.totalorder %s28, 1
      %p93 = por %p91, %p92
      %p94 = scmp.ne.s32.totalorder %s85, %s86
      %p95 = scmp.eq.s32.totalorder %s28, 0
      %p96 = por %p94, %p95
      %p97 = scmp.ne.s32.totalorder %s85, %s86
      %p98 = scmp.eq.s32.totalorder %s29, 1
      %p99 = por %p97, %p98
      %p101 = scmp.ne.s32.totalorder %s86, %s100
      %p102 = scmp.eq.s32.totalorder %s29, 0
      %p103 = por %p101, %p102
      %s105 = sadd.s32 %s104, 1
      %p108 = scmp.eq.s32.totalorder %s23, 1
      %p109 = scmp.ne.s32.totalorder %s104, %s106
      %p110 = scmp.eq.s32.totalorder %s23, 0
      %p111 = por %p109, %p110
      %p112 = scmp.ne.s32.totalorder %s104, %s106
      %p113 = scmp.eq.s32.totalorder %s28, 1
      %p114 = por %p112, %p113
      %p115 = scmp.ne.s32.totalorder %s106, %s107
      %p116 = scmp.eq.s32.totalorder %s28, 0
      %p117 = por %p115, %p116
      %p118 = scmp.ne.s32.totalorder %s106, %s107
      %p119 = scmp.eq.s32.totalorder %s29, 1
      %p120 = por %p118, %p119
      %p122 = scmp.ne.s32.totalorder %s107, %s121
      %p123 = scmp.eq.s32.totalorder %s29, 0
      %p124 = por %p122, %p123
      %s126 = sadd.s32 %s125, 1
      %p129 = scmp.eq.s32.totalorder %s23, 1
      %p130 = scmp.ne.s32.totalorder %s125, %s127
      %p131 = scmp.eq.s32.totalorder %s23, 0
      %p132 = por %p130, %p131
      %p133 = scmp.ne.s32.totalorder %s125, %s127
      %p134 = scmp.eq.s32.totalorder %s28, 1
      %p135 = por %p133, %p134
      %p136 = scmp.ne.s32.totalorder %s127, %s128
      %p137 = scmp.eq.s32.totalorder %s28, 0
      %p138 = por %p136, %p137
      %p139 = scmp.ne.s32.totalorder %s127, %s128
      %p140 = scmp.eq.s32.totalorder %s29, 1
      %p141 = por %p139, %p140
      %p143 = scmp.ne.s32.totalorder %s128, %s142
      %p144 = scmp.eq.s32.totalorder %s29, 0
      %p145 = por %p143, %p144
      %s147 = sadd.s32 %s146, 1
      %p150 = scmp.eq.s32.totalorder %s23, 1
      %p151 = scmp.ne.s32.totalorder %s146, %s148
      %p152 = scmp.eq.s32.totalorder %s23, 0
      %p153 = por %p151, %p152
      %p154 = scmp.ne.s32.totalorder %s146, %s148
      %p155 = scmp.eq.s32.totalorder %s28, 1
      %p156 = por %p154, %p155
      %p157 = scmp.ne.s32.totalorder %s148, %s149
      %p158 = scmp.eq.s32.totalorder %s28, 0
      %p159 = por %p157, %p158
      %p160 = scmp.ne.s32.totalorder %s148, %s149
      %p161 = scmp.eq.s32.totalorder %s29, 1
      %p162 = por %p160, %p161
      %p164 = scmp.ne.s32.totalorder %s149, %s163
      %p165 = scmp.eq.s32.totalorder %s29, 0
      %p166 = por %p164, %p165
      %s168 = sadd.s32 %s167, 1
      %p171 = scmp.eq.s32.totalorder %s23, 1
      %p172 = scmp.ne.s32.totalorder %s167, %s169
      %p173 = scmp.eq.s32.totalorder %s23, 0
      %p174 = por %p172, %p173
      %p175 = scmp.ne.s32.totalorder %s167, %s169
      %p176 = scmp.eq.s32.totalorder %s28, 1
      %p177 = por %p175, %p176
      %p178 = scmp.ne.s32.totalorder %s169, %s170
      %p179 = scmp.eq.s32.totalorder %s28, 0
      %p180 = por %p178, %p179
      %p181 = scmp.ne.s32.totalorder %s169, %s170
      %p182 = scmp.eq.s32.totalorder %s29, 1
      %p183 = por %p181, %p182
      %p185 = scmp.ne.s32.totalorder %s170, %s184
      %p186 = scmp.eq.s32.totalorder %s29, 0
      %p187 = por %p185, %p186
      %s188 = ssub.s32 %s23, %s30
      %p189 = scmp.eq.s32.totalorder %s188, 0
      %s191 = sadd.s32 %s190, 1
      %s192 = scalar_select %p189, %s190, %s191
      %p195 = pneg %p189
      %p196 = scmp.eq.s32.totalorder %s23, 1
      %p197 = por %p195, %p196
      %p198 = scmp.ne.s32.totalorder %s190, %s193
      %p199 = scmp.eq.s32.totalorder %s23, 0
      %p200 = por %p198, %p199
      %p201 = scmp.ne.s32.totalorder %s190, %s193
      %p202 = scmp.eq.s32.totalorder %s28, 1
      %p203 = por %p201, %p202
      %p204 = scmp.ne.s32.totalorder %s193, %s194
      %p205 = scmp.eq.s32.totalorder %s28, 0
      %p206 = por %p204, %p205
      %p207 = scmp.ne.s32.totalorder %s193, %s194
      %p208 = scmp.eq.s32.totalorder %s29, 1
      %p209 = por %p207, %p208
      %p211 = scmp.ne.s32.totalorder %s194, %s210
      %p212 = scmp.eq.s32.totalorder %s29, 0
      %p213 = por %p211, %p212
      %p214 = scmp.le.s32.totalorder 1, %s23
      %p215 = scmp.lt.s32.totalorder %s23, 3
      %p216 = pnand %p214, %p215
      %p217 = pneg %p216
      // Predicated region
      $region9: #{tpu_custom_call.1} parent=5 // pred_check
        _
      $region10: #{tpu_custom_call.1} parent=5 // pred_check_branch
        %219 = sbr.rel (%p216) target = $region12
      $region11: #{tpu_custom_call.1} parent=5 // pred_region
        %s220 = ssub.s32 %s23, 1
        // Predicated region
        $region13: #{tpu_custom_call.1} parent=11 // pred_check
          %p221 = pneg %p96
        $region14: #{tpu_custom_call.1} parent=11 // pred_check_branch
          %223 = sbr.rel (%p221) target = $region16
        $region15: #{tpu_custom_call.1} parent=11 // pred_region
          %s225 = ssub.s32 512, 512
          %226 = vsyncadd [#allocation6], %s225
          %s227 = sshll.u32 [#allocation7], 4
          %s228 = int_to_ptr.vmem [resolvable:$true] %s227
          %233 = dma.hbm_to_vmem [thread:$0]  %s2, 512, %s228, [#allocation6], 128, 128, 8
        $region16: #{tpu_custom_call.1} parent=11 // pred_fallthru
          _
        // Predicated region
        $region17: #{tpu_custom_call.1} parent=11 // pred_check
          %p234 = pneg %p117
        $region18: #{tpu_custom_call.1} parent=11 // pred_check_branch
          %236 = sbr.rel (%p234) target = $region20
        $region19: #{tpu_custom_call.1} parent=11 // pred_region
          _
        $region20: #{tpu_custom_call.1} parent=11 // pred_fallthru
          _
        // Predicated region
        $region21: #{tpu_custom_call.1} parent=11 // pred_check
          %p237 = pneg %p138
        $region22: #{tpu_custom_call.1} parent=11 // pred_check_branch
          %239 = sbr.rel (%p237) target = $region24
        $region23: #{tpu_custom_call.1} parent=11 // pred_region
          %s241 = ssub.s32 1024, 1024
          %242 = vsyncadd [#allocation9], %s241
          %s243 = sshll.u32 [#allocation8], 4
          %s244 = int_to_ptr.vmem [resolvable:$true] %s243
          %249 = dma.hbm_to_vmem [thread:$0]  %s4, 1024, %s244, [#allocation9], 128, 128, 8
        $region24: #{tpu_custom_call.1} parent=11 // pred_fallthru
          _
        // Predicated region
        $region25: #{tpu_custom_call.1} parent=11 // pred_check
          %p250 = pneg %p159
        $region26: #{tpu_custom_call.1} parent=11 // pred_check_branch
          %252 = sbr.rel (%p250) target = $region28
        $region27: #{tpu_custom_call.1} parent=11 // pred_region
          %s254 = ssub.s32 20480, 20480
          %255 = vsyncadd [#allocation9], %s254
          %s256 = sshll.u32 [#allocation10], 4
          %s257 = int_to_ptr.vmem [resolvable:$true] %s256
          %262 = dma.hbm_to_vmem [thread:$0]  %s5, 20480, %s257, [#allocation9], 640, 640, 40
        $region28: #{tpu_custom_call.1} parent=11 // pred_fallthru
          _
        // Predicated region
        $region29: #{tpu_custom_call.1} parent=11 // pred_check
          %p263 = pneg %p180
        $region30: #{tpu_custom_call.1} parent=11 // pred_check_branch
          %265 = sbr.rel (%p263) target = $region32
        $region31: #{tpu_custom_call.1} parent=11 // pred_region
          _
        $region32: #{tpu_custom_call.1} parent=11 // pred_fallthru
          _
      $region12: #{tpu_custom_call.1} parent=5 // pred_fallthru
        _
      %p266 = scmp.lt.s32.totalorder %s23, 2
      // Predicated region
      $region33: #{tpu_custom_call.1} parent=5 // pred_check
        %p267 = pneg %p266
      $region34: #{tpu_custom_call.1} parent=5 // pred_check_branch
        %269 = sbr.rel (%p267) target = $region36
      $region35: #{tpu_custom_call.1} parent=5 // pred_region
        // Predicated region
        $region37: #{tpu_custom_call.1} parent=35 // pred_check
          %p270 = pneg %p43
        $region38: #{tpu_custom_call.1} parent=35 // pred_check_branch
          %272 = sbr.rel (%p270) target = $region40
        $region39: #{tpu_custom_call.1} parent=35 // pred_region
          %s273 = sand.u32 %s33, 1
          %s274 = scalar_lea.sflag [#allocation3], %s273
          %s275 = sand.u32 %s33, 1
          %s276 = smul.addr %s275, 16
          %s277 = scalar_lea.vmem [#allocation2], %s276
          %s278 = smul.u32 2, %s23
          %s280 = ssub.s32 256, 256
          %281 = vsyncadd %s274, %s280
          %s282 = smul.addr %s278, 128
          %s283 = scalar_lea.hbm %s0, %s282
          %s284 = sshll.u32 %s277, 4
          %s285 = int_to_ptr.vmem [resolvable:$true] %s284
          %290 = dma.hbm_to_vmem [thread:$0]  %s283, 256, %s285, %s274, 128, 128, 8
        $region40: #{tpu_custom_call.1} parent=35 // pred_fallthru
          _
        // Predicated region
        $region41: #{tpu_custom_call.1} parent=35 // pred_check
          %p291 = pneg %p69
        $region42: #{tpu_custom_call.1} parent=35 // pred_check_branch
          %293 = sbr.rel (%p291) target = $region44
        $region43: #{tpu_custom_call.1} parent=35 // pred_region
          %s294 = sand.u32 %s23, 1
          %s295 = scalar_lea.sflag [#allocation6], %s294
          %s296 = sand.u32 %s59, 1
          %s297 = smul.addr %s296, 16
          %s298 = scalar_lea.vmem [#allocation5], %s297
          %s299 = smul.u32 2, %s23
          %s301 = ssub.s32 256, 256
          %302 = vsyncadd %s295, %s301
          %s303 = smul.addr %s299, 128
          %s304 = scalar_lea.hbm %s1, %s303
          %s305 = sshll.u32 %s298, 4
          %s306 = int_to_ptr.vmem [resolvable:$true] %s305
          %311 = dma.hbm_to_vmem [thread:$0]  %s304, 256, %s306, %s295, 128, 128, 8
        $region44: #{tpu_custom_call.1} parent=35 // pred_fallthru
          _
      $region36: #{tpu_custom_call.1} parent=5 // pred_fallthru
        _
      %p312 = scmp.le.s32.totalorder 1, %s23
      %p313 = scmp.lt.s32.totalorder %s23, 3
      %p314 = pnand %p312, %p313
      %p315 = pneg %p314
      // Predicated region
      $region45: #{tpu_custom_call.1} parent=5 // pred_check
        _
      $region46: #{tpu_custom_call.1} parent=5 // pred_check_branch
        %317 = sbr.rel (%p314) target = $region48
      $region47: #{tpu_custom_call.1} parent=5 // pred_region
        %s318 = ssub.s32 %s23, 1
        %s319 = sand.u32 %s36, 1
        %s320 = scalar_lea.sflag [#allocation3], %s319
        %s321 = sand.u32 %s36, 1
        %s322 = smul.addr %s321, 16
        %s323 = scalar_lea.vmem [#allocation2], %s322
        // Predicated region
        $region49: #{tpu_custom_call.1} parent=47 // pred_check
          %p324 = pneg %p49
        $region50: #{tpu_custom_call.1} parent=47 // pred_check_branch
          %326 = sbr.rel (%p324) target = $region52
        $region51: #{tpu_custom_call.1} parent=47 // pred_region
          %327 = dma.done %s320, 256
        $region52: #{tpu_custom_call.1} parent=47 // pred_fallthru
          _
        %s328 = sand.u32 %s28, 1
        %s329 = scalar_lea.sflag [#allocation6], %s328
        %s330 = sand.u32 %s62, 1
        %s331 = smul.addr %s330, 16
        %s332 = scalar_lea.vmem [#allocation5], %s331
        // Predicated region
        $region53: #{tpu_custom_call.1} parent=47 // pred_check
          %p333 = pneg %p75
        $region54: #{tpu_custom_call.1} parent=47 // pred_check_branch
          %335 = sbr.rel (%p333) target = $region56
        $region55: #{tpu_custom_call.1} parent=47 // pred_region
          %336 = dma.done %s329, 256
        $region56: #{tpu_custom_call.1} parent=47 // pred_fallthru
          _
        // Predicated region
        $region57: #{tpu_custom_call.1} parent=47 // pred_check
          %p337 = pneg %p96
        $region58: #{tpu_custom_call.1} parent=47 // pred_check_branch
          %339 = sbr.rel (%p337) target = $region60
        $region59: #{tpu_custom_call.1} parent=47 // pred_region
          %340 = dma.done [#allocation6], 512
        $region60: #{tpu_custom_call.1} parent=47 // pred_fallthru
          _
        // Predicated region
        $region61: #{tpu_custom_call.1} parent=47 // pred_check
          %p341 = pneg %p138
        $region62: #{tpu_custom_call.1} parent=47 // pred_check_branch
          %343 = sbr.rel (%p341) target = $region64
        $region63: #{tpu_custom_call.1} parent=47 // pred_region
          %344 = dma.done [#allocation9], 1024
        $region64: #{tpu_custom_call.1} parent=47 // pred_fallthru
          _
        // Predicated region
        $region65: #{tpu_custom_call.1} parent=47 // pred_check
          %p345 = pneg %p159
        $region66: #{tpu_custom_call.1} parent=47 // pred_check_branch
          %347 = sbr.rel (%p345) target = $region68
        $region67: #{tpu_custom_call.1} parent=47 // pred_region
          %348 = dma.done [#allocation9], 20480
        $region68: #{tpu_custom_call.1} parent=47 // pred_fallthru
          _
        %s349 = sand.u32 %s36, 1
        %s350 = scalar_lea.sflag [#allocation3], %s349
        %s351 = sand.u32 %s36, 1
        %s352 = smul.addr %s351, 16
        %s353 = scalar_lea.vmem [#allocation2], %s352
        %p354 = pneg %p49
        %p355 = pneg %p46
        %s356 = sand.u32 %s28, 1
        %s357 = scalar_lea.sflag [#allocation6], %s356
        %s358 = sand.u32 %s62, 1
        %s359 = smul.addr %s358, 16
        %s360 = scalar_lea.vmem [#allocation5], %s359
        %p361 = pneg %p75
        %p362 = pneg %p72
        %p363 = pneg %p96
        %p364 = pneg %p93
        %p365 = pneg %p117
        %p366 = pneg %p114
        %p367 = pneg %p138
        %p368 = pneg %p135
        %p369 = pneg %p159
        %p370 = pneg %p156
        %p371 = pneg %p180
        %p372 = pneg %p177
        %p373 = pneg %p206
        %p374 = pneg %p203
        %s375 = sand.u32 %s193, 1
        %s376 = scalar_lea.sflag [#allocation4], %s375
        %s377 = sand.u32 %s193, 1
        %s378 = smul.addr %s377, 16
        %s379 = scalar_lea.vmem [#allocation11], %s378
        %s380 = smul.u32 2, %s28
        %s381 = smul.u32 2, %s28
        %s382 = smul.u32 2, %s28
        %v383 = vld [vmem:[%s323] sm:$0xff]
        %v384 = vld [vmem:[%s323 + $0x8] sm:$0xff]
        %v385 = vld [vmem:[%s332] sm:$0xff]
        %v386 = vld [vmem:[%s332 + $0x8] sm:$0xff]
        %v387 = vmul.f32 %v383, %v385
        %v388 = vmul.f32 %v384, %v386
        %v389 = vld [vmem:[#allocation7] sm:$0xff]
        %v390 = vld [vmem:[#allocation7 + $0x8] sm:$0xff]
        %v391 = vld [vmem:[#allocation7 + $0x10] sm:$0xff]
        %v392 = vld [vmem:[#allocation7 + $0x18] sm:$0xff]
        %v393 = vld [vmem:[%s3] sm:$0x1]
        %v395 = vlaneseq
        %v396 = vshrl.u32 %v395, 7
        %v397 = vsub.s32 0, %v396
        %v398 = vrot.slane %v393, %v397
        %vm400 = vcmask 261120
        %v402 = vsel %vm400, %v387, 0
        %v405 = vsel %vm400, %v388, 0
        %407 = vmatprep.subr.mxu0 0.0
        %408 = vmatpush1.msra.mxu0 %v389
        %409 = vmatprep.subr.mxu0 0.0
        %410 = vmatpush1.msra.mxu0 %v390
        %411 = vmatprep.subr.mxu0 0.0
        %412 = vmatpush1.msra.mxu0 %v391
        %413 = vmatprep.subr.mxu0 0.0
        %414 = vmatpush1.msra.mxu0 %v392
        %415 = vmatprep.subr.mxu0 0.0
        %416 = vmatpush1.msra.mxu0 0.0
        %417 = vmatprep.subr.mxu0 0.0
        %418 = vmatpush1.msra.mxu0 0.0
        %419 = vmatprep.subr.mxu0 0.0
        %420 = vmatpush1.msra.mxu0 0.0
        %421 = vmatprep.subr.mxu0 0.0
        %422 = vmatpush1.msra.mxu0 0.0
        %423 = vmatprep.subr.mxu0 0.0
        %424 = vmatpush1.msra.mxu0 0.0
        %425 = vmatprep.subr.mxu0 0.0
        %426 = vmatpush1.msra.mxu0 0.0
        %427 = vmatprep.subr.mxu0 0.0
        %428 = vmatpush1.msra.mxu0 0.0
        %429 = vmatprep.subr.mxu0 0.0
        %430 = vmatpush1.msra.mxu0 0.0
        %431 = vmatprep.subr.mxu0 0.0
        %432 = vmatpush1.msra.mxu0 0.0
        %433 = vmatprep.subr.mxu0 0.0
        %434 = vmatpush1.msra.mxu0 0.0
        %435 = vmatprep.subr.mxu0 0.0
        %436 = vmatpush1.msra.mxu0 0.0
        %437 = vmatprep.subr.mxu0 0.0
        %438 = vmatpush1.msra.mxu0 0.0
        %439 = vmatprep.subr.mxu0 0.0
        %440 = vmatpush1.msra.mxu0 0.0
        %441 = vmatprep.subr.mxu0 0.0
        %442 = vmatpush1.msra.mxu0 0.0
        %443 = vmatprep.subr.mxu0 0.0
        %444 = vmatpush1.msra.mxu0 0.0
        %445 = vmatprep.subr.mxu0 0.0
        %446 = vmatpush1.msra.mxu0 0.0
        %447 = vmatprep.subr.mxu0 0.0
        %448 = vmatpush1.msra.mxu0 0.0
        %449 = vmatprep.subr.mxu0 0.0
        %450 = vmatpush1.msra.mxu0 0.0
        %451 = vmatprep.subr.mxu0 0.0
        %452 = vmatpush1.msra.mxu0 0.0
        %453 = vmatprep.subr.mxu0 0.0
        %454 = vmatpush1.msra.mxu0 0.0
        %455 = vmatprep.subr.mxu0 0.0
        %456 = vmatpush1.msra.mxu0 0.0
        %457 = vmatprep.subr.mxu0 0.0
        %458 = vmatpush1.msra.mxu0 0.0
        %459 = vmatprep.subr.mxu0 0.0
        %460 = vmatpush1.msra.mxu0 0.0
        %461 = vmatprep.subr.mxu0 0.0
        %462 = vmatpush1.msra.mxu0 0.0
        %463 = vmatprep.subr.mxu0 0.0
        %464 = vmatpush1.msra.mxu0 0.0
        %465 = vmatprep.subr.mxu0 0.0
        %466 = vmatpush1.msra.mxu0 0.0
        %467 = vmatprep.subr.mxu0 0.0
        %468 = vmatpush1.msra.mxu0 0.0
        %469 = vmatprep.subr.mxu0 0.0
        %470 = vmatpush1.msra.mxu0 0.0
        %471 = vmatprep.mubr.f32.mxu0 0.0
        %472 = vmatmul.mubr.f32.gmra.mrb[0].mxu0 %v402
        %v473 = vpop.f32.mrb[0].mxu0
        %v474 = vadd.f32 %v398, %v473
        %v475 = vpop.f32.mrb[0].mxu0
        %476 = vmatprep.mubr.f32.mxu0 0.0
        %477 = vmatmul.mubr.f32.gmra.mrb[0].mxu0 %v405
        %v478 = vpop.f32.mrb[0].mxu0
        %v479 = vadd.f32 %v398, %v478
        %v480 = vpop.f32.mrb[0].mxu0
        %481 = vdwg.mxu0
        %v482 = vmax.f32 %v474, 0.0
        %v483 = vmax.f32 %v479, 0.0
        %v484 = vld [vmem:[#allocation10] sm:$0xff]
        %v485 = vld [vmem:[#allocation10 + $0x8] sm:$0xff]
        %v486 = vld [vmem:[#allocation10 + $0x10] sm:$0xff]
        %v487 = vld [vmem:[#allocation10 + $0x18] sm:$0xff]
        %v488 = vld [vmem:[#allocation10 + $0x20] sm:$0xff]
        %v489 = vld [vmem:[#allocation10 + $0x28] sm:$0xff]
        %v490 = vld [vmem:[#allocation10 + $0x30] sm:$0xff]
        %v491 = vld [vmem:[#allocation10 + $0x38] sm:$0xff]
        %v492 = vld [vmem:[#allocation10 + $0x40] sm:$0xff]
        %v493 = vld [vmem:[#allocation10 + $0x48] sm:$0xff]
        %v494 = vld [vmem:[#allocation10 + $0x50] sm:$0xff]
        %v495 = vld [vmem:[#allocation10 + $0x58] sm:$0xff]
        %v496 = vld [vmem:[#allocation10 + $0x60] sm:$0xff]
        %v497 = vld [vmem:[#allocation10 + $0x68] sm:$0xff]
        %v498 = vld [vmem:[#allocation10 + $0x70] sm:$0xff]
        %v499 = vld [vmem:[#allocation10 + $0x78] sm:$0xff]
        %v500 = vld [vmem:[#allocation10 + $0x80] sm:$0xff]
        %v501 = vld [vmem:[#allocation10 + $0x88] sm:$0xff]
        %v502 = vld [vmem:[#allocation10 + $0x90] sm:$0xff]
        %v503 = vld [vmem:[#allocation10 + $0x98] sm:$0xff]
        %v504 = vld [vmem:[#allocation10 + $0xa0] sm:$0xff]
        %v505 = vld [vmem:[#allocation10 + $0xa8] sm:$0xff]
        %v506 = vld [vmem:[#allocation10 + $0xb0] sm:$0xff]
        %v507 = vld [vmem:[#allocation10 + $0xb8] sm:$0xff]
        %v508 = vld [vmem:[#allocation10 + $0xc0] sm:$0xff]
        %v509 = vld [vmem:[#allocation10 + $0xc8] sm:$0xff]
        %v510 = vld [vmem:[#allocation10 + $0xd0] sm:$0xff]
        %v511 = vld [vmem:[#allocation10 + $0xd8] sm:$0xff]
        %v512 = vld [vmem:[#allocation10 + $0xe0] sm:$0xff]
        %v513 = vld [vmem:[#allocation10 + $0xe8] sm:$0xff]
        %v514 = vld [vmem:[#allocation10 + $0xf0] sm:$0xff]
        %v515 = vld [vmem:[#allocation10 + $0xf8] sm:$0xff]
        %v516 = vld [vmem:[#allocation10 + $0x100] sm:$0xff]
        %v517 = vld [vmem:[#allocation10 + $0x108] sm:$0xff]
        %v518 = vld [vmem:[#allocation10 + $0x110] sm:$0xff]
        %v519 = vld [vmem:[#allocation10 + $0x118] sm:$0xff]
        %v520 = vld [vmem:[#allocation10 + $0x120] sm:$0xff]
        %v521 = vld [vmem:[#allocation10 + $0x128] sm:$0xff]
        %v522 = vld [vmem:[#allocation10 + $0x130] sm:$0xff]
        %v523 = vld [vmem:[#allocation10 + $0x138] sm:$0xff]
        %v524 = vld [vmem:[#allocation10 + $0x140] sm:$0xff]
        %v525 = vld [vmem:[#allocation10 + $0x148] sm:$0xff]
        %v526 = vld [vmem:[#allocation10 + $0x150] sm:$0xff]
        %v527 = vld [vmem:[#allocation10 + $0x158] sm:$0xff]
        %v528 = vld [vmem:[#allocation10 + $0x160] sm:$0xff]
        %v529 = vld [vmem:[#allocation10 + $0x168] sm:$0xff]
        %v530 = vld [vmem:[#allocation10 + $0x170] sm:$0xff]
        %v531 = vld [vmem:[#allocation10 + $0x178] sm:$0xff]
        %v532 = vld [vmem:[#allocation10 + $0x180] sm:$0xff]
        %v533 = vld [vmem:[#allocation10 + $0x188] sm:$0xff]
        %v534 = vld [vmem:[#allocation10 + $0x190] sm:$0xff]
        %v535 = vld [vmem:[#allocation10 + $0x198] sm:$0xff]
        %v536 = vld [vmem:[#allocation10 + $0x1a0] sm:$0xff]
        %v537 = vld [vmem:[#allocation10 + $0x1a8] sm:$0xff]
        %v538 = vld [vmem:[#allocation10 + $0x1b0] sm:$0xff]
        %v539 = vld [vmem:[#allocation10 + $0x1b8] sm:$0xff]
        %v540 = vld [vmem:[#allocation10 + $0x1c0] sm:$0xff]
        %v541 = vld [vmem:[#allocation10 + $0x1c8] sm:$0xff]
        %v542 = vld [vmem:[#allocation10 + $0x1d0] sm:$0xff]
        %v543 = vld [vmem:[#allocation10 + $0x1d8] sm:$0xff]
        %v544 = vld [vmem:[#allocation10 + $0x1e0] sm:$0xff]
        %v545 = vld [vmem:[#allocation10 + $0x1e8] sm:$0xff]
        %v546 = vld [vmem:[#allocation10 + $0x1f0] sm:$0xff]
        %v547 = vld [vmem:[#allocation10 + $0x1f8] sm:$0xff]
        %v548 = vld [vmem:[#allocation10 + $0x200] sm:$0xff]
        %v549 = vld [vmem:[#allocation10 + $0x208] sm:$0xff]
        %v550 = vld [vmem:[#allocation10 + $0x210] sm:$0xff]
        %v551 = vld [vmem:[#allocation10 + $0x218] sm:$0xff]
        %v552 = vld [vmem:[#allocation10 + $0x220] sm:$0xff]
        %v553 = vld [vmem:[#allocation10 + $0x228] sm:$0xff]
        %v554 = vld [vmem:[#allocation10 + $0x230] sm:$0xff]
        %v555 = vld [vmem:[#allocation10 + $0x238] sm:$0xff]
        %v556 = vld [vmem:[#allocation10 + $0x240] sm:$0xff]
        %v557 = vld [vmem:[#allocation10 + $0x248] sm:$0xff]
        %v558 = vld [vmem:[#allocation10 + $0x250] sm:$0xff]
        %v559 = vld [vmem:[#allocation10 + $0x258] sm:$0xff]
        %v560 = vld [vmem:[#allocation10 + $0x260] sm:$0xff]
        %v561 = vld [vmem:[#allocation10 + $0x268] sm:$0xff]
        %v562 = vld [vmem:[#allocation10 + $0x270] sm:$0xff]
        %v563 = vld [vmem:[#allocation10 + $0x278] sm:$0xff]
        %564 = vmatprep.subr.mxu0 %v485
        %565 = vmatpush1.msra.mxu0 %v484
        %566 = vmatprep.subr.mxu0 %v490
        %567 = vmatpush1.msra.mxu0 %v489
        %568 = vmatprep.subr.mxu0 %v495
        %569 = vmatpush1.msra.mxu0 %v494
        %570 = vmatprep.subr.mxu0 %v500
        %571 = vmatpush1.msra.mxu0 %v499
        %572 = vmatprep.subr.mxu0 %v505
        %573 = vmatpush1.msra.mxu0 %v504
        %574 = vmatprep.subr.mxu0 %v510
        %575 = vmatpush1.msra.mxu0 %v509
        %576 = vmatprep.subr.mxu0 %v515
        %577 = vmatpush1.msra.mxu0 %v514
        %578 = vmatprep.subr.mxu0 %v520
        %579 = vmatpush1.msra.mxu0 %v519
        %580 = vmatprep.subr.mxu0 %v525
        %581 = vmatpush1.msra.mxu0 %v524
        %582 = vmatprep.subr.mxu0 %v530
        %583 = vmatpush1.msra.mxu0 %v529
        %584 = vmatprep.subr.mxu0 %v535
        %585 = vmatpush1.msra.mxu0 %v534
        %586 = vmatprep.subr.mxu0 %v540
        %587 = vmatpush1.msra.mxu0 %v539
        %588 = vmatprep.subr.mxu0 %v545
        %589 = vmatpush1.msra.mxu0 %v544
        %590 = vmatprep.subr.mxu0 %v550
        %591 = vmatpush1.msra.mxu0 %v549
        %592 = vmatprep.subr.mxu0 %v555
        %593 = vmatpush1.msra.mxu0 %v554
        %594 = vmatprep.subr.mxu0 %v560
        %595 = vmatpush1.msra.mxu0 %v559
        %596 = vmatprep.subr.mxu0 0.0
        %597 = vmatpush1.msra.mxu0 0.0
        %598 = vmatprep.subr.mxu0 0.0
        %599 = vmatpush1.msra.mxu0 0.0
        %600 = vmatprep.subr.mxu0 0.0
        %601 = vmatpush1.msra.mxu0 0.0
        %602 = vmatprep.subr.mxu0 0.0
        %603 = vmatpush1.msra.mxu0 0.0
        %604 = vmatprep.subr.mxu0 0.0
        %605 = vmatpush1.msra.mxu0 0.0
        %606 = vmatprep.subr.mxu0 0.0
        %607 = vmatpush1.msra.mxu0 0.0
        %608 = vmatprep.subr.mxu0 0.0
        %609 = vmatpush1.msra.mxu0 0.0
        %610 = vmatprep.subr.mxu0 0.0
        %611 = vmatpush1.msra.mxu0 0.0
        %612 = vmatprep.subr.mxu0 0.0
        %613 = vmatpush1.msra.mxu0 0.0
        %614 = vmatprep.subr.mxu0 0.0
        %615 = vmatpush1.msra.mxu0 0.0
        %616 = vmatprep.subr.mxu0 0.0
        %617 = vmatpush1.msra.mxu0 0.0
        %618 = vmatprep.subr.mxu0 0.0
        %619 = vmatpush1.msra.mxu0 0.0
        %620 = vmatprep.subr.mxu0 0.0
        %621 = vmatpush1.msra.mxu0 0.0
        %622 = vmatprep.subr.mxu0 0.0
        %623 = vmatpush1.msra.mxu0 0.0
        %624 = vmatprep.subr.mxu0 0.0
        %625 = vmatpush1.msra.mxu0 0.0
        %626 = vmatprep.subr.mxu0 0.0
        %627 = vmatpush1.msra.mxu0 0.0
        %628 = vmatprep.mubr.f32.mxu0 0.0
        %629 = vmatmul.mubr.f32.gmra.mrb[0].mxu0 %v482
        %v630 = vpop.f32.mrb[0].mxu0
        %v631 = vadd.f32 0.0, %v630
        %v632 = vpop.f32.mrb[0].mxu0
        %v633 = vadd.f32 0.0, %v632
        %634 = vmatprep.mubr.f32.mxu0 0.0
        %635 = vmatmul.mubr.f32.gmra.mrb[0].mxu0 %v483
        %v636 = vpop.f32.mrb[0].mxu0
        %v637 = vadd.f32 0.0, %v636
        %v638 = vpop.f32.mrb[0].mxu0
        %v639 = vadd.f32 0.0, %v638
        %640 = vdwg.mxu0
        %641 = vmatprep.subr.mxu0 %v487
        %642 = vmatpush1.msra.mxu0 %v486
        %643 = vmatprep.subr.mxu0 %v492
        %644 = vmatpush1.msra.mxu0 %v491
        %645 = vmatprep.subr.mxu0 %v497
        %646 = vmatpush1.msra.mxu0 %v496
        %647 = vmatprep.subr.mxu0 %v502
        %648 = vmatpush1.msra.mxu0 %v501
        %649 = vmatprep.subr.mxu0 %v507
        %650 = vmatpush1.msra.mxu0 %v506
        %651 = vmatprep.subr.mxu0 %v512
        %652 = vmatpush1.msra.mxu0 %v511
        %653 = vmatprep.subr.mxu0 %v517
        %654 = vmatpush1.msra.mxu0 %v516
        %655 = vmatprep.subr.mxu0 %v522
        %656 = vmatpush1.msra.mxu0 %v521
        %657 = vmatprep.subr.mxu0 %v527
        %658 = vmatpush1.msra.mxu0 %v526
        %659 = vmatprep.subr.mxu0 %v532
        %660 = vmatpush1.msra.mxu0 %v531
        %661 = vmatprep.subr.mxu0 %v537
        %662 = vmatpush1.msra.mxu0 %v536
        %663 = vmatprep.subr.mxu0 %v542
        %664 = vmatpush1.msra.mxu0 %v541
        %665 = vmatprep.subr.mxu0 %v547
        %666 = vmatpush1.msra.mxu0 %v546
        %667 = vmatprep.subr.mxu0 %v552
        %668 = vmatpush1.msra.mxu0 %v551
        %669 = vmatprep.subr.mxu0 %v557
        %670 = vmatpush1.msra.mxu0 %v556
        %671 = vmatprep.subr.mxu0 %v562
        %672 = vmatpush1.msra.mxu0 %v561
        %673 = vmatprep.subr.mxu0 0.0
        %674 = vmatpush1.msra.mxu0 0.0
        %675 = vmatprep.subr.mxu0 0.0
        %676 = vmatpush1.msra.mxu0 0.0
        %677 = vmatprep.subr.mxu0 0.0
        %678 = vmatpush1.msra.mxu0 0.0
        %679 = vmatprep.subr.mxu0 0.0
        %680 = vmatpush1.msra.mxu0 0.0
        %681 = vmatprep.subr.mxu0 0.0
        %682 = vmatpush1.msra.mxu0 0.0
        %683 = vmatprep.subr.mxu0 0.0
        %684 = vmatpush1.msra.mxu0 0.0
        %685 = vmatprep.subr.mxu0 0.0
        %686 = vmatpush1.msra.mxu0 0.0
        %687 = vmatprep.subr.mxu0 0.0
        %688 = vmatpush1.msra.mxu0 0.0
        %689 = vmatprep.subr.mxu0 0.0
        %690 = vmatpush1.msra.mxu0 0.0
        %691 = vmatprep.subr.mxu0 0.0
        %692 = vmatpush1.msra.mxu0 0.0
        %693 = vmatprep.subr.mxu0 0.0
        %694 = vmatpush1.msra.mxu0 0.0
        %695 = vmatprep.subr.mxu0 0.0
        %696 = vmatpush1.msra.mxu0 0.0
        %697 = vmatprep.subr.mxu0 0.0
        %698 = vmatpush1.msra.mxu0 0.0
        %699 = vmatprep.subr.mxu0 0.0
        %700 = vmatpush1.msra.mxu0 0.0
        %701 = vmatprep.subr.mxu0 0.0
        %702 = vmatpush1.msra.mxu0 0.0
        %703 = vmatprep.subr.mxu0 0.0
        %704 = vmatpush1.msra.mxu0 0.0
        %705 = vmatprep.mubr.f32.mxu0 0.0
        %706 = vmatmul.mubr.f32.gmra.mrb[0].mxu0 %v482
        %v707 = vpop.f32.mrb[0].mxu0
        %v708 = vadd.f32 0.0, %v707
        %v709 = vpop.f32.mrb[0].mxu0
        %v710 = vadd.f32 0.0, %v709
        %711 = vmatprep.mubr.f32.mxu0 0.0
        %712 = vmatmul.mubr.f32.gmra.mrb[0].mxu0 %v483
        %v713 = vpop.f32.mrb[0].mxu0
        %v714 = vadd.f32 0.0, %v713
        %v715 = vpop.f32.mrb[0].mxu0
        %v716 = vadd.f32 0.0, %v715
        %717 = vdwg.mxu0
        %718 = vmatprep.subr.mxu0 0.0
        %719 = vmatpush1.msra.mxu0 %v488
        %720 = vmatprep.subr.mxu0 0.0
        %721 = vmatpush1.msra.mxu0 %v493
        %722 = vmatprep.subr.mxu0 0.0
        %723 = vmatpush1.msra.mxu0 %v498
        %724 = vmatprep.subr.mxu0 0.0
        %725 = vmatpush1.msra.mxu0 %v503
        %726 = vmatprep.subr.mxu0 0.0
        %727 = vmatpush1.msra.mxu0 %v508
        %728 = vmatprep.subr.mxu0 0.0
        %729 = vmatpush1.msra.mxu0 %v513
        %730 = vmatprep.subr.mxu0 0.0
        %731 = vmatpush1.msra.mxu0 %v518
        %732 = vmatprep.subr.mxu0 0.0
        %733 = vmatpush1.msra.mxu0 %v523
        %734 = vmatprep.subr.mxu0 0.0
        %735 = vmatpush1.msra.mxu0 %v528
        %736 = vmatprep.subr.mxu0 0.0
        %737 = vmatpush1.msra.mxu0 %v533
        %738 = vmatprep.subr.mxu0 0.0
        %739 = vmatpush1.msra.mxu0 %v538
        %740 = vmatprep.subr.mxu0 0.0
        %741 = vmatpush1.msra.mxu0 %v543
        %742 = vmatprep.subr.mxu0 0.0
        %743 = vmatpush1.msra.mxu0 %v548
        %744 = vmatprep.subr.mxu0 0.0
        %745 = vmatpush1.msra.mxu0 %v553
        %746 = vmatprep.subr.mxu0 0.0
        %747 = vmatpush1.msra.mxu0 %v558
        %748 = vmatprep.subr.mxu0 0.0
        %749 = vmatpush1.msra.mxu0 %v563
        %750 = vmatprep.subr.mxu0 0.0
        %751 = vmatpush1.msra.mxu0 0.0
        %752 = vmatprep.subr.mxu0 0.0
        %753 = vmatpush1.msra.mxu0 0.0
        %754 = vmatprep.subr.mxu0 0.0
        %755 = vmatpush1.msra.mxu0 0.0
        %756 = vmatprep.subr.mxu0 0.0
        %757 = vmatpush1.msra.mxu0 0.0
        %758 = vmatprep.subr.mxu0 0.0
        %759 = vmatpush1.msra.mxu0 0.0
        %760 = vmatprep.subr.mxu0 0.0
        %761 = vmatpush1.msra.mxu0 0.0
        %762 = vmatprep.subr.mxu0 0.0
        %763 = vmatpush1.msra.mxu0 0.0
        %764 = vmatprep.subr.mxu0 0.0
        %765 = vmatpush1.msra.mxu0 0.0
        %766 = vmatprep.subr.mxu0 0.0
        %767 = vmatpush1.msra.mxu0 0.0
        %768 = vmatprep.subr.mxu0 0.0
        %769 = vmatpush1.msra.mxu0 0.0
        %770 = vmatprep.subr.mxu0 0.0
        %771 = vmatpush1.msra.mxu0 0.0
        %772 = vmatprep.subr.mxu0 0.0
        %773 = vmatpush1.msra.mxu0 0.0
        %774 = vmatprep.subr.mxu0 0.0
        %775 = vmatpush1.msra.mxu0 0.0
        %776 = vmatprep.subr.mxu0 0.0
        %777 = vmatpush1.msra.mxu0 0.0
        %778 = vmatprep.subr.mxu0 0.0
        %779 = vmatpush1.msra.mxu0 0.0
        %780 = vmatprep.subr.mxu0 0.0
        %781 = vmatpush1.msra.mxu0 0.0
        %782 = vmatprep.mubr.f32.mxu0 0.0
        %783 = vmatmul.mubr.f32.gmra.mrb[0].mxu0 %v482
        %v784 = vpop.f32.mrb[0].mxu0
        %v785 = vadd.f32 0.0, %v784
        %v786 = vpop.f32.mrb[0].mxu0
        %787 = vmatprep.mubr.f32.mxu0 0.0
        %788 = vmatmul.mubr.f32.gmra.mrb[0].mxu0 %v483
        %v789 = vpop.f32.mrb[0].mxu0
        %v790 = vadd.f32 0.0, %v789
        %v791 = vpop.f32.mrb[0].mxu0
        %792 = vdwg.mxu0
        %v793 = vld [vmem:[%s6] sm:$0x1]
        %v795 = vlaneseq
        %v796 = vshrl.u32 %v795, 7
        %v797 = vsub.s32 0, %v796
        %v798 = vrot.slane %v793, %v797
        %v800 = vadd.f32 %v631, %v798
        %v801 = vadd.f32 %v637, %v798
        %v802 = vld [vmem:[#allocation8] sm:$0xff]
        %v803 = vld [vmem:[#allocation8 + $0x8] sm:$0xff]
        %vm804 = vcmask 130048
        %v806 = vsel %vm804, %v802, 0
        %v809 = vsel %vm804, %v803, 0
        %811 = vmatprep.subr.mxu0 0.0
        %812 = vmatpush1.msra.mxu0 %v633
        %813 = vmatprep.subr.mxu0 0.0
        %814 = vmatpush1.msra.mxu0 %v639
        %815 = vmatprep.subr.mxu0 0.0
        %816 = vmatpush1.msra.mxu0 0.0
        %817 = vmatprep.subr.mxu0 0.0
        %818 = vmatpush1.msra.mxu0 0.0
        %819 = vmatprep.subr.mxu0 0.0
        %820 = vmatpush1.msra.mxu0 0.0
        %821 = vmatprep.subr.mxu0 0.0
        %822 = vmatpush1.msra.mxu0 0.0
        %823 = vmatprep.subr.mxu0 0.0
        %824 = vmatpush1.msra.mxu0 0.0
        %825 = vmatprep.subr.mxu0 0.0
        %826 = vmatpush1.msra.mxu0 0.0
        %827 = vmatprep.subr.mxu0 0.0
        %828 = vmatpush1.msra.mxu0 0.0
        %829 = vmatprep.subr.mxu0 0.0
        %830 = vmatpush1.msra.mxu0 0.0
        %831 = vmatprep.subr.mxu0 0.0
        %832 = vmatpush1.msra.mxu0 0.0
        %833 = vmatprep.subr.mxu0 0.0
        %834 = vmatpush1.msra.mxu0 0.0
        %835 = vmatprep.subr.mxu0 0.0
        %836 = vmatpush1.msra.mxu0 0.0
        %837 = vmatprep.subr.mxu0 0.0
        %838 = vmatpush1.msra.mxu0 0.0
        %839 = vmatprep.subr.mxu0 0.0
        %840 = vmatpush1.msra.mxu0 0.0
        %841 = vmatprep.subr.mxu0 0.0
        %842 = vmatpush1.msra.mxu0 0.0
        %843 = vmatprep.subr.mxu0 0.0
        %844 = vmatpush1.msra.mxu0 0.0
        %845 = vmatprep.subr.mxu0 0.0
        %846 = vmatpush1.msra.mxu0 0.0
        %847 = vmatprep.subr.mxu0 0.0
        %848 = vmatpush1.msra.mxu0 0.0
        %849 = vmatprep.subr.mxu0 0.0
        %850 = vmatpush1.msra.mxu0 0.0
        %851 = vmatprep.subr.mxu0 0.0
        %852 = vmatpush1.msra.mxu0 0.0
        %853 = vmatprep.subr.mxu0 0.0
        %854 = vmatpush1.msra.mxu0 0.0
        %855 = vmatprep.subr.mxu0 0.0
        %856 = vmatpush1.msra.mxu0 0.0
        %857 = vmatprep.subr.mxu0 0.0
        %858 = vmatpush1.msra.mxu0 0.0
        %859 = vmatprep.subr.mxu0 0.0
        %860 = vmatpush1.msra.mxu0 0.0
        %861 = vmatprep.subr.mxu0 0.0
        %862 = vmatpush1.msra.mxu0 0.0
        %863 = vmatprep.subr.mxu0 0.0
        %864 = vmatpush1.msra.mxu0 0.0
        %865 = vmatprep.subr.mxu0 0.0
        %866 = vmatpush1.msra.mxu0 0.0
        %867 = vmatprep.subr.mxu0 0.0
        %868 = vmatpush1.msra.mxu0 0.0
        %869 = vmatprep.subr.mxu0 0.0
        %870 = vmatpush1.msra.mxu0 0.0
        %871 = vmatprep.subr.mxu0 0.0
        %872 = vmatpush1.msra.mxu0 0.0
        %873 = vmatprep.subr.mxu0 0.0
        %874 = vmatpush1.msra.mxu0 0.0
        %875 = vmatprep.mubr.f32.mxu0 0.0
        %876 = vmatmul.mubr.f32.gmra.mrb[0].mxu0 %v806
        %v877 = vpop.f32.mrb[0].mxu0
        %v878 = vadd.f32 0.0, %v877
        %v879 = vpop.f32.mrb[0].mxu0
        %880 = vmatprep.mubr.f32.mxu0 0.0
        %881 = vmatmul.mubr.f32.gmra.mrb[0].mxu0 %v809
        %v882 = vpop.f32.mrb[0].mxu0
        %v883 = vadd.f32 0.0, %v882
        %v884 = vpop.f32.mrb[0].mxu0
        %885 = vdwg.mxu0
        %v886 = vadd.f32 %v800, %v878
        %v887 = vadd.f32 %v801, %v883
        %s888 = scalar_lea.vmem [#allocation8], 16
        %v889 = vld [vmem:[%s888] sm:$0xff]
        %v890 = vld [vmem:[%s888 + $0x8] sm:$0xff]
        %v892 = vsel %vm804, %v889, 0
        %v895 = vsel %vm804, %v890, 0
        %897 = vmatprep.subr.mxu0 0.0
        %898 = vmatpush1.msra.mxu0 %v708
        %899 = vmatprep.subr.mxu0 0.0
        %900 = vmatpush1.msra.mxu0 %v714
        %901 = vmatprep.subr.mxu0 0.0
        %902 = vmatpush1.msra.mxu0 0.0
        %903 = vmatprep.subr.mxu0 0.0
        %904 = vmatpush1.msra.mxu0 0.0
        %905 = vmatprep.subr.mxu0 0.0
        %906 = vmatpush1.msra.mxu0 0.0
        %907 = vmatprep.subr.mxu0 0.0
        %908 = vmatpush1.msra.mxu0 0.0
        %909 = vmatprep.subr.mxu0 0.0
        %910 = vmatpush1.msra.mxu0 0.0
        %911 = vmatprep.subr.mxu0 0.0
        %912 = vmatpush1.msra.mxu0 0.0
        %913 = vmatprep.subr.mxu0 0.0
        %914 = vmatpush1.msra.mxu0 0.0
        %915 = vmatprep.subr.mxu0 0.0
        %916 = vmatpush1.msra.mxu0 0.0
        %917 = vmatprep.subr.mxu0 0.0
        %918 = vmatpush1.msra.mxu0 0.0
        %919 = vmatprep.subr.mxu0 0.0
        %920 = vmatpush1.msra.mxu0 0.0
        %921 = vmatprep.subr.mxu0 0.0
        %922 = vmatpush1.msra.mxu0 0.0
        %923 = vmatprep.subr.mxu0 0.0
        %924 = vmatpush1.msra.mxu0 0.0
        %925 = vmatprep.subr.mxu0 0.0
        %926 = vmatpush1.msra.mxu0 0.0
        %927 = vmatprep.subr.mxu0 0.0
        %928 = vmatpush1.msra.mxu0 0.0
        %929 = vmatprep.subr.mxu0 0.0
        %930 = vmatpush1.msra.mxu0 0.0
        %931 = vmatprep.subr.mxu0 0.0
        %932 = vmatpush1.msra.mxu0 0.0
        %933 = vmatprep.subr.mxu0 0.0
        %934 = vmatpush1.msra.mxu0 0.0
        %935 = vmatprep.subr.mxu0 0.0
        %936 = vmatpush1.msra.mxu0 0.0
        %937 = vmatprep.subr.mxu0 0.0
        %938 = vmatpush1.msra.mxu0 0.0
        %939 = vmatprep.subr.mxu0 0.0
        %940 = vmatpush1.msra.mxu0 0.0
        %941 = vmatprep.subr.mxu0 0.0
        %942 = vmatpush1.msra.mxu0 0.0
        %943 = vmatprep.subr.mxu0 0.0
        %944 = vmatpush1.msra.mxu0 0.0
        %945 = vmatprep.subr.mxu0 0.0
        %946 = vmatpush1.msra.mxu0 0.0
        %947 = vmatprep.subr.mxu0 0.0
        %948 = vmatpush1.msra.mxu0 0.0
        %949 = vmatprep.subr.mxu0 0.0
        %950 = vmatpush1.msra.mxu0 0.0
        %951 = vmatprep.subr.mxu0 0.0
        %952 = vmatpush1.msra.mxu0 0.0
        %953 = vmatprep.subr.mxu0 0.0
        %954 = vmatpush1.msra.mxu0 0.0
        %955 = vmatprep.subr.mxu0 0.0
        %956 = vmatpush1.msra.mxu0 0.0
        %957 = vmatprep.subr.mxu0 0.0
        %958 = vmatpush1.msra.mxu0 0.0
        %959 = vmatprep.subr.mxu0 0.0
        %960 = vmatpush1.msra.mxu0 0.0
        %961 = vmatprep.mubr.f32.mxu0 0.0
        %962 = vmatmul.mubr.f32.gmra.mrb[0].mxu0 %v892
        %v963 = vpop.f32.mrb[0].mxu0
        %v964 = vadd.f32 0.0, %v963
        %v965 = vpop.f32.mrb[0].mxu0
        %966 = vmatprep.mubr.f32.mxu0 0.0
        %967 = vmatmul.mubr.f32.gmra.mrb[0].mxu0 %v895
        %v968 = vpop.f32.mrb[0].mxu0
        %v969 = vadd.f32 0.0, %v968
        %v970 = vpop.f32.mrb[0].mxu0
        %971 = vdwg.mxu0
        %v972 = vadd.f32 %v886, %v964
        %v973 = vadd.f32 %v887, %v969
        %s974 = scalar_lea.vmem [#allocation8], 32
        %v975 = vld [vmem:[%s974] sm:$0xff]
        %v976 = vld [vmem:[%s974 + $0x8] sm:$0xff]
        %v978 = vsel %vm804, %v975, 0
        %v981 = vsel %vm804, %v976, 0
        %983 = vmatprep.subr.mxu0 0.0
        %984 = vmatpush1.msra.mxu0 %v710
        %985 = vmatprep.subr.mxu0 0.0
        %986 = vmatpush1.msra.mxu0 %v716
        %987 = vmatprep.subr.mxu0 0.0
        %988 = vmatpush1.msra.mxu0 0.0
        %989 = vmatprep.subr.mxu0 0.0
        %990 = vmatpush1.msra.mxu0 0.0
        %991 = vmatprep.subr.mxu0 0.0
        %992 = vmatpush1.msra.mxu0 0.0
        %993 = vmatprep.subr.mxu0 0.0
        %994 = vmatpush1.msra.mxu0 0.0
        %995 = vmatprep.subr.mxu0 0.0
        %996 = vmatpush1.msra.mxu0 0.0
        %997 = vmatprep.subr.mxu0 0.0
        %998 = vmatpush1.msra.mxu0 0.0
        %999 = vmatprep.subr.mxu0 0.0
        %1000 = vmatpush1.msra.mxu0 0.0
        %1001 = vmatprep.subr.mxu0 0.0
        %1002 = vmatpush1.msra.mxu0 0.0
        %1003 = vmatprep.subr.mxu0 0.0
        %1004 = vmatpush1.msra.mxu0 0.0
        %1005 = vmatprep.subr.mxu0 0.0
        %1006 = vmatpush1.msra.mxu0 0.0
        %1007 = vmatprep.subr.mxu0 0.0
        %1008 = vmatpush1.msra.mxu0 0.0
        %1009 = vmatprep.subr.mxu0 0.0
        %1010 = vmatpush1.msra.mxu0 0.0
        %1011 = vmatprep.subr.mxu0 0.0
        %1012 = vmatpush1.msra.mxu0 0.0
        %1013 = vmatprep.subr.mxu0 0.0
        %1014 = vmatpush1.msra.mxu0 0.0
        %1015 = vmatprep.subr.mxu0 0.0
        %1016 = vmatpush1.msra.mxu0 0.0
        %1017 = vmatprep.subr.mxu0 0.0
        %1018 = vmatpush1.msra.mxu0 0.0
        %1019 = vmatprep.subr.mxu0 0.0
        %1020 = vmatpush1.msra.mxu0 0.0
        %1021 = vmatprep.subr.mxu0 0.0
        %1022 = vmatpush1.msra.mxu0 0.0
        %1023 = vmatprep.subr.mxu0 0.0
        %1024 = vmatpush1.msra.mxu0 0.0
        %1025 = vmatprep.subr.mxu0 0.0
        %1026 = vmatpush1.msra.mxu0 0.0
        %1027 = vmatprep.subr.mxu0 0.0
        %1028 = vmatpush1.msra.mxu0 0.0
        %1029 = vmatprep.subr.mxu0 0.0
        %1030 = vmatpush1.msra.mxu0 0.0
        %1031 = vmatprep.subr.mxu0 0.0
        %1032 = vmatpush1.msra.mxu0 0.0
        %1033 = vmatprep.subr.mxu0 0.0
        %1034 = vmatpush1.msra.mxu0 0.0
        %1035 = vmatprep.subr.mxu0 0.0
        %1036 = vmatpush1.msra.mxu0 0.0
        %1037 = vmatprep.subr.mxu0 0.0
        %1038 = vmatpush1.msra.mxu0 0.0
        %1039 = vmatprep.subr.mxu0 0.0
        %1040 = vmatpush1.msra.mxu0 0.0
        %1041 = vmatprep.subr.mxu0 0.0
        %1042 = vmatpush1.msra.mxu0 0.0
        %1043 = vmatprep.subr.mxu0 0.0
        %1044 = vmatpush1.msra.mxu0 0.0
        %1045 = vmatprep.subr.mxu0 0.0
        %1046 = vmatpush1.msra.mxu0 0.0
        %1047 = vmatprep.mubr.f32.mxu0 0.0
        %1048 = vmatmul.mubr.f32.gmra.mrb[0].mxu0 %v978
        %v1049 = vpop.f32.mrb[0].mxu0
        %v1050 = vadd.f32 0.0, %v1049
        %v1051 = vpop.f32.mrb[0].mxu0
        %1052 = vmatprep.mubr.f32.mxu0 0.0
        %1053 = vmatmul.mubr.f32.gmra.mrb[0].mxu0 %v981
        %v1054 = vpop.f32.mrb[0].mxu0
        %v1055 = vadd.f32 0.0, %v1054
        %v1056 = vpop.f32.mrb[0].mxu0
        %1057 = vdwg.mxu0
        %v1058 = vadd.f32 %v972, %v1050
        %v1059 = vadd.f32 %v973, %v1055
        %s1060 = scalar_lea.vmem [#allocation8], 48
        %v1061 = vld [vmem:[%s1060] sm:$0xff]
        %v1062 = vld [vmem:[%s1060 + $0x8] sm:$0xff]
        %v1064 = vsel %vm804, %v1061, 0
        %v1067 = vsel %vm804, %v1062, 0
        %1069 = vmatprep.subr.mxu0 0.0
        %1070 = vmatpush1.msra.mxu0 %v785
        %1071 = vmatprep.subr.mxu0 0.0
        %1072 = vmatpush1.msra.mxu0 %v790
        %1073 = vmatprep.subr.mxu0 0.0
        %1074 = vmatpush1.msra.mxu0 0.0
        %1075 = vmatprep.subr.mxu0 0.0
        %1076 = vmatpush1.msra.mxu0 0.0
        %1077 = vmatprep.subr.mxu0 0.0
        %1078 = vmatpush1.msra.mxu0 0.0
        %1079 = vmatprep.subr.mxu0 0.0
        %1080 = vmatpush1.msra.mxu0 0.0
        %1081 = vmatprep.subr.mxu0 0.0
        %1082 = vmatpush1.msra.mxu0 0.0
        %1083 = vmatprep.subr.mxu0 0.0
        %1084 = vmatpush1.msra.mxu0 0.0
        %1085 = vmatprep.subr.mxu0 0.0
        %1086 = vmatpush1.msra.mxu0 0.0
        %1087 = vmatprep.subr.mxu0 0.0
        %1088 = vmatpush1.msra.mxu0 0.0
        %1089 = vmatprep.subr.mxu0 0.0
        %1090 = vmatpush1.msra.mxu0 0.0
        %1091 = vmatprep.subr.mxu0 0.0
        %1092 = vmatpush1.msra.mxu0 0.0
        %1093 = vmatprep.subr.mxu0 0.0
        %1094 = vmatpush1.msra.mxu0 0.0
        %1095 = vmatprep.subr.mxu0 0.0
        %1096 = vmatpush1.msra.mxu0 0.0
        %1097 = vmatprep.subr.mxu0 0.0
        %1098 = vmatpush1.msra.mxu0 0.0
        %1099 = vmatprep.subr.mxu0 0.0
        %1100 = vmatpush1.msra.mxu0 0.0
        %1101 = vmatprep.subr.mxu0 0.0
        %1102 = vmatpush1.msra.mxu0 0.0
        %1103 = vmatprep.subr.mxu0 0.0
        %1104 = vmatpush1.msra.mxu0 0.0
        %1105 = vmatprep.subr.mxu0 0.0
        %1106 = vmatpush1.msra.mxu0 0.0
        %1107 = vmatprep.subr.mxu0 0.0
        %1108 = vmatpush1.msra.mxu0 0.0
        %1109 = vmatprep.subr.mxu0 0.0
        %1110 = vmatpush1.msra.mxu0 0.0
        %1111 = vmatprep.subr.mxu0 0.0
        %1112 = vmatpush1.msra.mxu0 0.0
        %1113 = vmatprep.subr.mxu0 0.0
        %1114 = vmatpush1.msra.mxu0 0.0
        %1115 = vmatprep.subr.mxu0 0.0
        %1116 = vmatpush1.msra.mxu0 0.0
        %1117 = vmatprep.subr.mxu0 0.0
        %1118 = vmatpush1.msra.mxu0 0.0
        %1119 = vmatprep.subr.mxu0 0.0
        %1120 = vmatpush1.msra.mxu0 0.0
        %1121 = vmatprep.subr.mxu0 0.0
        %1122 = vmatpush1.msra.mxu0 0.0
        %1123 = vmatprep.subr.mxu0 0.0
        %1124 = vmatpush1.msra.mxu0 0.0
        %1125 = vmatprep.subr.mxu0 0.0
        %1126 = vmatpush1.msra.mxu0 0.0
        %1127 = vmatprep.subr.mxu0 0.0
        %1128 = vmatpush1.msra.mxu0 0.0
        %1129 = vmatprep.subr.mxu0 0.0
        %1130 = vmatpush1.msra.mxu0 0.0
        %1131 = vmatprep.subr.mxu0 0.0
        %1132 = vmatpush1.msra.mxu0 0.0
        %1133 = vmatprep.mubr.f32.mxu0 0.0
        %1134 = vmatmul.mubr.f32.gmra.mrb[0].mxu0 %v1064
        %v1135 = vpop.f32.mrb[0].mxu0
        %v1136 = vadd.f32 0.0, %v1135
        %v1137 = vpop.f32.mrb[0].mxu0
        %1138 = vmatprep.mubr.f32.mxu0 0.0
        %1139 = vmatmul.mubr.f32.gmra.mrb[0].mxu0 %v1067
        %v1140 = vpop.f32.mrb[0].mxu0
        %v1141 = vadd.f32 0.0, %v1140
        %v1142 = vpop.f32.mrb[0].mxu0
        %1143 = vdwg.mxu0
        %v1144 = vadd.f32 %v1058, %v1136
        %v1145 = vadd.f32 %v1059, %v1141
        %v1146 = vmax.f32 %v1144, 0.0
        %v1147 = vmax.f32 %v1145, 0.0
        %s1148 = scalar_lea.vmem [#allocation10], 640
        %v1149 = vld [vmem:[%s1148] sm:$0xff]
        %v1150 = vld [vmem:[%s1148 + $0x8] sm:$0xff]
        %v1151 = vld [vmem:[%s1148 + $0x10] sm:$0xff]
        %v1152 = vld [vmem:[%s1148 + $0x18] sm:$0xff]
        %v1153 = vld [vmem:[%s1148 + $0x20] sm:$0xff]
        %v1154 = vld [vmem:[%s1148 + $0x28] sm:$0xff]
        %v1155 = vld [vmem:[%s1148 + $0x30] sm:$0xff]
        %v1156 = vld [vmem:[%s1148 + $0x38] sm:$0xff]
        %v1157 = vld [vmem:[%s1148 + $0x40] sm:$0xff]
        %v1158 = vld [vmem:[%s1148 + $0x48] sm:$0xff]
        %v1159 = vld [vmem:[%s1148 + $0x50] sm:$0xff]
        %v1160 = vld [vmem:[%s1148 + $0x58] sm:$0xff]
        %v1161 = vld [vmem:[%s1148 + $0x60] sm:$0xff]
        %v1162 = vld [vmem:[%s1148 + $0x68] sm:$0xff]
        %v1163 = vld [vmem:[%s1148 + $0x70] sm:$0xff]
        %v1164 = vld [vmem:[%s1148 + $0x78] sm:$0xff]
        %v1165 = vld [vmem:[%s1148 + $0x80] sm:$0xff]
        %v1166 = vld [vmem:[%s1148 + $0x88] sm:$0xff]
        %v1167 = vld [vmem:[%s1148 + $0x90] sm:$0xff]
        %v1168 = vld [vmem:[%s1148 + $0x98] sm:$0xff]
        %v1169 = vld [vmem:[%s1148 + $0xa0] sm:$0xff]
        %v1170 = vld [vmem:[%s1148 + $0xa8] sm:$0xff]
        %v1171 = vld [vmem:[%s1148 + $0xb0] sm:$0xff]
        %v1172 = vld [vmem:[%s1148 + $0xb8] sm:$0xff]
        %v1173 = vld [vmem:[%s1148 + $0xc0] sm:$0xff]
        %v1174 = vld [vmem:[%s1148 + $0xc8] sm:$0xff]
        %v1175 = vld [vmem:[%s1148 + $0xd0] sm:$0xff]
        %v1176 = vld [vmem:[%s1148 + $0xd8] sm:$0xff]
        %v1177 = vld [vmem:[%s1148 + $0xe0] sm:$0xff]
        %v1178 = vld [vmem:[%s1148 + $0xe8] sm:$0xff]
        %v1179 = vld [vmem:[%s1148 + $0xf0] sm:$0xff]
        %v1180 = vld [vmem:[%s1148 + $0xf8] sm:$0xff]
        %v1181 = vld [vmem:[%s1148 + $0x100] sm:$0xff]
        %v1182 = vld [vmem:[%s1148 + $0x108] sm:$0xff]
        %v1183 = vld [vmem:[%s1148 + $0x110] sm:$0xff]
        %v1184 = vld [vmem:[%s1148 + $0x118] sm:$0xff]
        %v1185 = vld [vmem:[%s1148 + $0x120] sm:$0xff]
        %v1186 = vld [vmem:[%s1148 + $0x128] sm:$0xff]
        %v1187 = vld [vmem:[%s1148 + $0x130] sm:$0xff]
        %v1188 = vld [vmem:[%s1148 + $0x138] sm:$0xff]
        %v1189 = vld [vmem:[%s1148 + $0x140] sm:$0xff]
        %v1190 = vld [vmem:[%s1148 + $0x148] sm:$0xff]
        %v1191 = vld [vmem:[%s1148 + $0x150] sm:$0xff]
        %v1192 = vld [vmem:[%s1148 + $0x158] sm:$0xff]
        %v1193 = vld [vmem:[%s1148 + $0x160] sm:$0xff]
        %v1194 = vld [vmem:[%s1148 + $0x168] sm:$0xff]
        %v1195 = vld [vmem:[%s1148 + $0x170] sm:$0xff]
        %v1196 = vld [vmem:[%s1148 + $0x178] sm:$0xff]
        %v1197 = vld [vmem:[%s1148 + $0x180] sm:$0xff]
        %v1198 = vld [vmem:[%s1148 + $0x188] sm:$0xff]
        %v1199 = vld [vmem:[%s1148 + $0x190] sm:$0xff]
        %v1200 = vld [vmem:[%s1148 + $0x198] sm:$0xff]
        %v1201 = vld [vmem:[%s1148 + $0x1a0] sm:$0xff]
        %v1202 = vld [vmem:[%s1148 + $0x1a8] sm:$0xff]
        %v1203 = vld [vmem:[%s1148 + $0x1b0] sm:$0xff]
        %v1204 = vld [vmem:[%s1148 + $0x1b8] sm:$0xff]
        %v1205 = vld [vmem:[%s1148 + $0x1c0] sm:$0xff]
        %v1206 = vld [vmem:[%s1148 + $0x1c8] sm:$0xff]
        %v1207 = vld [vmem:[%s1148 + $0x1d0] sm:$0xff]
        %v1208 = vld [vmem:[%s1148 + $0x1d8] sm:$0xff]
        %v1209 = vld [vmem:[%s1148 + $0x1e0] sm:$0xff]
        %v1210 = vld [vmem:[%s1148 + $0x1e8] sm:$0xff]
        %v1211 = vld [vmem:[%s1148 + $0x1f0] sm:$0xff]
        %v1212 = vld [vmem:[%s1148 + $0x1f8] sm:$0xff]
        %v1213 = vld [vmem:[%s1148 + $0x200] sm:$0xff]
        %v1214 = vld [vmem:[%s1148 + $0x208] sm:$0xff]
        %v1215 = vld [vmem:[%s1148 + $0x210] sm:$0xff]
        %v1216 = vld [vmem:[%s1148 + $0x218] sm:$0xff]
        %v1217 = vld [vmem:[%s1148 + $0x220] sm:$0xff]
        %v1218 = vld [vmem:[%s1148 + $0x228] sm:$0xff]
        %v1219 = vld [vmem:[%s1148 + $0x230] sm:$0xff]
        %v1220 = vld [vmem:[%s1148 + $0x238] sm:$0xff]
        %v1221 = vld [vmem:[%s1148 + $0x240] sm:$0xff]
        %v1222 = vld [vmem:[%s1148 + $0x248] sm:$0xff]
        %v1223 = vld [vmem:[%s1148 + $0x250] sm:$0xff]
        %v1224 = vld [vmem:[%s1148 + $0x258] sm:$0xff]
        %v1225 = vld [vmem:[%s1148 + $0x260] sm:$0xff]
        %v1226 = vld [vmem:[%s1148 + $0x268] sm:$0xff]
        %v1227 = vld [vmem:[%s1148 + $0x270] sm:$0xff]
        %v1228 = vld [vmem:[%s1148 + $0x278] sm:$0xff]
        %1229 = vmatprep.subr.mxu0 %v1150
        %1230 = vmatpush1.msra.mxu0 %v1149
        %1231 = vmatprep.subr.mxu0 %v1155
        %1232 = vmatpush1.msra.mxu0 %v1154
        %1233 = vmatprep.subr.mxu0 %v1160
        %1234 = vmatpush1.msra.mxu0 %v1159
        %1235 = vmatprep.subr.mxu0 %v1165
        %1236 = vmatpush1.msra.mxu0 %v1164
        %1237 = vmatprep.subr.mxu0 %v1170
        %1238 = vmatpush1.msra.mxu0 %v1169
        %1239 = vmatprep.subr.mxu0 %v1175
        %1240 = vmatpush1.msra.mxu0 %v1174
        %1241 = vmatprep.subr.mxu0 %v1180
        %1242 = vmatpush1.msra.mxu0 %v1179
        %1243 = vmatprep.subr.mxu0 %v1185
        %1244 = vmatpush1.msra.mxu0 %v1184
        %1245 = vmatprep.subr.mxu0 %v1190
        %1246 = vmatpush1.msra.mxu0 %v1189
        %1247 = vmatprep.subr.mxu0 %v1195
        %1248 = vmatpush1.msra.mxu0 %v1194
        %1249 = vmatprep.subr.mxu0 %v1200
        %1250 = vmatpush1.msra.mxu0 %v1199
        %1251 = vmatprep.subr.mxu0 %v1205
        %1252 = vmatpush1.msra.mxu0 %v1204
        %1253 = vmatprep.subr.mxu0 %v1210
        %1254 = vmatpush1.msra.mxu0 %v1209
        %1255 = vmatprep.subr.mxu0 %v1215
        %1256 = vmatpush1.msra.mxu0 %v1214
        %1257 = vmatprep.subr.mxu0 %v1220
        %1258 = vmatpush1.msra.mxu0 %v1219
        %1259 = vmatprep.subr.mxu0 %v1225
        %1260 = vmatpush1.msra.mxu0 %v1224
        %1261 = vmatprep.subr.mxu0 0.0
        %1262 = vmatpush1.msra.mxu0 0.0
        %1263 = vmatprep.subr.mxu0 0.0
        %1264 = vmatpush1.msra.mxu0 0.0
        %1265 = vmatprep.subr.mxu0 0.0
        %1266 = vmatpush1.msra.mxu0 0.0
        %1267 = vmatprep.subr.mxu0 0.0
        %1268 = vmatpush1.msra.mxu0 0.0
        %1269 = vmatprep.subr.mxu0 0.0
        %1270 = vmatpush1.msra.mxu0 0.0
        %1271 = vmatprep.subr.mxu0 0.0
        %1272 = vmatpush1.msra.mxu0 0.0
        %1273 = vmatprep.subr.mxu0 0.0
        %1274 = vmatpush1.msra.mxu0 0.0
        %1275 = vmatprep.subr.mxu0 0.0
        %1276 = vmatpush1.msra.mxu0 0.0
        %1277 = vmatprep.subr.mxu0 0.0
        %1278 = vmatpush1.msra.mxu0 0.0
        %1279 = vmatprep.subr.mxu0 0.0
        %1280 = vmatpush1.msra.mxu0 0.0
        %1281 = vmatprep.subr.mxu0 0.0
        %1282 = vmatpush1.msra.mxu0 0.0
        %1283 = vmatprep.subr.mxu0 0.0
        %1284 = vmatpush1.msra.mxu0 0.0
        %1285 = vmatprep.subr.mxu0 0.0
        %1286 = vmatpush1.msra.mxu0 0.0
        %1287 = vmatprep.subr.mxu0 0.0
        %1288 = vmatpush1.msra.mxu0 0.0
        %1289 = vmatprep.subr.mxu0 0.0
        %1290 = vmatpush1.msra.mxu0 0.0
        %1291 = vmatprep.subr.mxu0 0.0
        %1292 = vmatpush1.msra.mxu0 0.0
        %1293 = vmatprep.mubr.f32.mxu0 0.0
        %1294 = vmatmul.mubr.f32.gmra.mrb[0].mxu0 %v1146
        %v1295 = vpop.f32.mrb[0].mxu0
        %v1296 = vadd.f32 0.0, %v1295
        %v1297 = vpop.f32.mrb[0].mxu0
        %v1298 = vadd.f32 0.0, %v1297
        %1299 = vmatprep.mubr.f32.mxu0 0.0
        %1300 = vmatmul.mubr.f32.gmra.mrb[0].mxu0 %v1147
        %v1301 = vpop.f32.mrb[0].mxu0
        %v1302 = vadd.f32 0.0, %v1301
        %v1303 = vpop.f32.mrb[0].mxu0
        %v1304 = vadd.f32 0.0, %v1303
        %1305 = vdwg.mxu0
        %1306 = vmatprep.subr.mxu0 %v1152
        %1307 = vmatpush1.msra.mxu0 %v1151
        %1308 = vmatprep.subr.mxu0 %v1157
        %1309 = vmatpush1.msra.mxu0 %v1156
        %1310 = vmatprep.subr.mxu0 %v1162
        %1311 = vmatpush1.msra.mxu0 %v1161
        %1312 = vmatprep.subr.mxu0 %v1167
        %1313 = vmatpush1.msra.mxu0 %v1166
        %1314 = vmatprep.subr.mxu0 %v1172
        %1315 = vmatpush1.msra.mxu0 %v1171
        %1316 = vmatprep.subr.mxu0 %v1177
        %1317 = vmatpush1.msra.mxu0 %v1176
        %1318 = vmatprep.subr.mxu0 %v1182
        %1319 = vmatpush1.msra.mxu0 %v1181
        %1320 = vmatprep.subr.mxu0 %v1187
        %1321 = vmatpush1.msra.mxu0 %v1186
        %1322 = vmatprep.subr.mxu0 %v1192
        %1323 = vmatpush1.msra.mxu0 %v1191
        %1324 = vmatprep.subr.mxu0 %v1197
        %1325 = vmatpush1.msra.mxu0 %v1196
        %1326 = vmatprep.subr.mxu0 %v1202
        %1327 = vmatpush1.msra.mxu0 %v1201
        %1328 = vmatprep.subr.mxu0 %v1207
        %1329 = vmatpush1.msra.mxu0 %v1206
        %1330 = vmatprep.subr.mxu0 %v1212
        %1331 = vmatpush1.msra.mxu0 %v1211
        %1332 = vmatprep.subr.mxu0 %v1217
        %1333 = vmatpush1.msra.mxu0 %v1216
        %1334 = vmatprep.subr.mxu0 %v1222
        %1335 = vmatpush1.msra.mxu0 %v1221
        %1336 = vmatprep.subr.mxu0 %v1227
        %1337 = vmatpush1.msra.mxu0 %v1226
        %1338 = vmatprep.subr.mxu0 0.0
        %1339 = vmatpush1.msra.mxu0 0.0
        %1340 = vmatprep.subr.mxu0 0.0
        %1341 = vmatpush1.msra.mxu0 0.0
        %1342 = vmatprep.subr.mxu0 0.0
        %1343 = vmatpush1.msra.mxu0 0.0
        %1344 = vmatprep.subr.mxu0 0.0
        %1345 = vmatpush1.msra.mxu0 0.0
        %1346 = vmatprep.subr.mxu0 0.0
        %1347 = vmatpush1.msra.mxu0 0.0
        %1348 = vmatprep.subr.mxu0 0.0
        %1349 = vmatpush1.msra.mxu0 0.0
        %1350 = vmatprep.subr.mxu0 0.0
        %1351 = vmatpush1.msra.mxu0 0.0
        %1352 = vmatprep.subr.mxu0 0.0
        %1353 = vmatpush1.msra.mxu0 0.0
        %1354 = vmatprep.subr.mxu0 0.0
        %1355 = vmatpush1.msra.mxu0 0.0
        %1356 = vmatprep.subr.mxu0 0.0
        %1357 = vmatpush1.msra.mxu0 0.0
        %1358 = vmatprep.subr.mxu0 0.0
        %1359 = vmatpush1.msra.mxu0 0.0
        %1360 = vmatprep.subr.mxu0 0.0
        %1361 = vmatpush1.msra.mxu0 0.0
        %1362 = vmatprep.subr.mxu0 0.0
        %1363 = vmatpush1.msra.mxu0 0.0
        %1364 = vmatprep.subr.mxu0 0.0
        %1365 = vmatpush1.msra.mxu0 0.0
        %1366 = vmatprep.subr.mxu0 0.0
        %1367 = vmatpush1.msra.mxu0 0.0
        %1368 = vmatprep.subr.mxu0 0.0
        %1369 = vmatpush1.msra.mxu0 0.0
        %1370 = vmatprep.mubr.f32.mxu0 0.0
        %1371 = vmatmul.mubr.f32.gmra.mrb[0].mxu0 %v1146
        %v1372 = vpop.f32.mrb[0].mxu0
        %v1373 = vadd.f32 0.0, %v1372
        %v1374 = vpop.f32.mrb[0].mxu0
        %v1375 = vadd.f32 0.0, %v1374
        %1376 = vmatprep.mubr.f32.mxu0 0.0
        %1377 = vmatmul.mubr.f32.gmra.mrb[0].mxu0 %v1147
        %v1378 = vpop.f32.mrb[0].mxu0
        %v1379 = vadd.f32 0.0, %v1378
        %v1380 = vpop.f32.mrb[0].mxu0
        %v1381 = vadd.f32 0.0, %v1380
        %1382 = vdwg.mxu0
        %1383 = vmatprep.subr.mxu0 0.0
        %1384 = vmatpush1.msra.mxu0 %v1153
        %1385 = vmatprep.subr.mxu0 0.0
        %1386 = vmatpush1.msra.mxu0 %v1158
        %1387 = vmatprep.subr.mxu0 0.0
        %1388 = vmatpush1.msra.mxu0 %v1163
        %1389 = vmatprep.subr.mxu0 0.0
        %1390 = vmatpush1.msra.mxu0 %v1168
        %1391 = vmatprep.subr.mxu0 0.0
        %1392 = vmatpush1.msra.mxu0 %v1173
        %1393 = vmatprep.subr.mxu0 0.0
        %1394 = vmatpush1.msra.mxu0 %v1178
        %1395 = vmatprep.subr.mxu0 0.0
        %1396 = vmatpush1.msra.mxu0 %v1183
        %1397 = vmatprep.subr.mxu0 0.0
        %1398 = vmatpush1.msra.mxu0 %v1188
        %1399 = vmatprep.subr.mxu0 0.0
        %1400 = vmatpush1.msra.mxu0 %v1193
        %1401 = vmatprep.subr.mxu0 0.0
        %1402 = vmatpush1.msra.mxu0 %v1198
        %1403 = vmatprep.subr.mxu0 0.0
        %1404 = vmatpush1.msra.mxu0 %v1203
        %1405 = vmatprep.subr.mxu0 0.0
        %1406 = vmatpush1.msra.mxu0 %v1208
        %1407 = vmatprep.subr.mxu0 0.0
        %1408 = vmatpush1.msra.mxu0 %v1213
        %1409 = vmatprep.subr.mxu0 0.0
        %1410 = vmatpush1.msra.mxu0 %v1218
        %1411 = vmatprep.subr.mxu0 0.0
        %1412 = vmatpush1.msra.mxu0 %v1223
        %1413 = vmatprep.subr.mxu0 0.0
        %1414 = vmatpush1.msra.mxu0 %v1228
        %1415 = vmatprep.subr.mxu0 0.0
        %1416 = vmatpush1.msra.mxu0 0.0
        %1417 = vmatprep.subr.mxu0 0.0
        %1418 = vmatpush1.msra.mxu0 0.0
        %1419 = vmatprep.subr.mxu0 0.0
        %1420 = vmatpush1.msra.mxu0 0.0
        %1421 = vmatprep.subr.mxu0 0.0
        %1422 = vmatpush1.msra.mxu0 0.0
        %1423 = vmatprep.subr.mxu0 0.0
        %1424 = vmatpush1.msra.mxu0 0.0
        %1425 = vmatprep.subr.mxu0 0.0
        %1426 = vmatpush1.msra.mxu0 0.0
        %1427 = vmatprep.subr.mxu0 0.0
        %1428 = vmatpush1.msra.mxu0 0.0
        %1429 = vmatprep.subr.mxu0 0.0
        %1430 = vmatpush1.msra.mxu0 0.0
        %1431 = vmatprep.subr.mxu0 0.0
        %1432 = vmatpush1.msra.mxu0 0.0
        %1433 = vmatprep.subr.mxu0 0.0
        %1434 = vmatpush1.msra.mxu0 0.0
        %1435 = vmatprep.subr.mxu0 0.0
        %1436 = vmatpush1.msra.mxu0 0.0
        %1437 = vmatprep.subr.mxu0 0.0
        %1438 = vmatpush1.msra.mxu0 0.0
        %1439 = vmatprep.subr.mxu0 0.0
        %1440 = vmatpush1.msra.mxu0 0.0
        %1441 = vmatprep.subr.mxu0 0.0
        %1442 = vmatpush1.msra.mxu0 0.0
        %1443 = vmatprep.subr.mxu0 0.0
        %1444 = vmatpush1.msra.mxu0 0.0
        %1445 = vmatprep.subr.mxu0 0.0
        %1446 = vmatpush1.msra.mxu0 0.0
        %1447 = vmatprep.mubr.f32.mxu0 0.0
        %1448 = vmatmul.mubr.f32.gmra.mrb[0].mxu0 %v1146
        %v1449 = vpop.f32.mrb[0].mxu0
        %v1450 = vadd.f32 0.0, %v1449
        %v1451 = vpop.f32.mrb[0].mxu0
        %1452 = vmatprep.mubr.f32.mxu0 0.0
        %1453 = vmatmul.mubr.f32.gmra.mrb[0].mxu0 %v1147
        %v1454 = vpop.f32.mrb[0].mxu0
        %v1455 = vadd.f32 0.0, %v1454
        %v1456 = vpop.f32.mrb[0].mxu0
        %1457 = vdwg.mxu0
        %s1458 = scalar_lea.vmem %s6, 1
        %v1459 = vld [vmem:[%s1458] sm:$0x1]
        %v1461 = vlaneseq
        %v1462 = vshrl.u32 %v1461, 7
        %v1463 = vsub.s32 0, %v1462
        %v1464 = vrot.slane %v1459, %v1463
        %v1466 = vadd.f32 %v1296, %v1464
        %v1467 = vadd.f32 %v1302, %v1464
        %1468 = vmatprep.subr.mxu0 0.0
        %1469 = vmatpush1.msra.mxu0 %v1298
        %1470 = vmatprep.subr.mxu0 0.0
        %1471 = vmatpush1.msra.mxu0 %v1304
        %1472 = vmatprep.subr.mxu0 0.0
        %1473 = vmatpush1.msra.mxu0 0.0
        %1474 = vmatprep.subr.mxu0 0.0
        %1475 = vmatpush1.msra.mxu0 0.0
        %1476 = vmatprep.subr.mxu0 0.0
        %1477 = vmatpush1.msra.mxu0 0.0
        %1478 = vmatprep.subr.mxu0 0.0
        %1479 = vmatpush1.msra.mxu0 0.0
        %1480 = vmatprep.subr.mxu0 0.0
        %1481 = vmatpush1.msra.mxu0 0.0
        %1482 = vmatprep.subr.mxu0 0.0
        %1483 = vmatpush1.msra.mxu0 0.0
        %1484 = vmatprep.subr.mxu0 0.0
        %1485 = vmatpush1.msra.mxu0 0.0
        %1486 = vmatprep.subr.mxu0 0.0
        %1487 = vmatpush1.msra.mxu0 0.0
        %1488 = vmatprep.subr.mxu0 0.0
        %1489 = vmatpush1.msra.mxu0 0.0
        %1490 = vmatprep.subr.mxu0 0.0
        %1491 = vmatpush1.msra.mxu0 0.0
        %1492 = vmatprep.subr.mxu0 0.0
        %1493 = vmatpush1.msra.mxu0 0.0
        %1494 = vmatprep.subr.mxu0 0.0
        %1495 = vmatpush1.msra.mxu0 0.0
        %1496 = vmatprep.subr.mxu0 0.0
        %1497 = vmatpush1.msra.mxu0 0.0
        %1498 = vmatprep.subr.mxu0 0.0
        %1499 = vmatpush1.msra.mxu0 0.0
        %1500 = vmatprep.subr.mxu0 0.0
        %1501 = vmatpush1.msra.mxu0 0.0
        %1502 = vmatprep.subr.mxu0 0.0
        %1503 = vmatpush1.msra.mxu0 0.0
        %1504 = vmatprep.subr.mxu0 0.0
        %1505 = vmatpush1.msra.mxu0 0.0
        %1506 = vmatprep.subr.mxu0 0.0
        %1507 = vmatpush1.msra.mxu0 0.0
        %1508 = vmatprep.subr.mxu0 0.0
        %1509 = vmatpush1.msra.mxu0 0.0
        %1510 = vmatprep.subr.mxu0 0.0
        %1511 = vmatpush1.msra.mxu0 0.0
        %1512 = vmatprep.subr.mxu0 0.0
        %1513 = vmatpush1.msra.mxu0 0.0
        %1514 = vmatprep.subr.mxu0 0.0
        %1515 = vmatpush1.msra.mxu0 0.0
        %1516 = vmatprep.subr.mxu0 0.0
        %1517 = vmatpush1.msra.mxu0 0.0
        %1518 = vmatprep.subr.mxu0 0.0
        %1519 = vmatpush1.msra.mxu0 0.0
        %1520 = vmatprep.subr.mxu0 0.0
        %1521 = vmatpush1.msra.mxu0 0.0
        %1522 = vmatprep.subr.mxu0 0.0
        %1523 = vmatpush1.msra.mxu0 0.0
        %1524 = vmatprep.subr.mxu0 0.0
        %1525 = vmatpush1.msra.mxu0 0.0
        %1526 = vmatprep.subr.mxu0 0.0
        %1527 = vmatpush1.msra.mxu0 0.0
        %1528 = vmatprep.subr.mxu0 0.0
        %1529 = vmatpush1.msra.mxu0 0.0
        %1530 = vmatprep.subr.mxu0 0.0
        %1531 = vmatpush1.msra.mxu0 0.0
        %1532 = vmatprep.mubr.f32.mxu0 0.0
        %1533 = vmatmul.mubr.f32.gmra.mrb[0].mxu0 %v806
        %v1534 = vpop.f32.mrb[0].mxu0
        %v1535 = vadd.f32 0.0, %v1534
        %v1536 = vpop.f32.mrb[0].mxu0
        %1537 = vmatprep.mubr.f32.mxu0 0.0
        %1538 = vmatmul.mubr.f32.gmra.mrb[0].mxu0 %v809
        %v1539 = vpop.f32.mrb[0].mxu0
        %v1540 = vadd.f32 0.0, %v1539
        %v1541 = vpop.f32.mrb[0].mxu0
        %1542 = vdwg.mxu0
        %v1543 = vadd.f32 %v1466, %v1535
        %v1544 = vadd.f32 %v1467, %v1540
        %1545 = vmatprep.subr.mxu0 0.0
        %1546 = vmatpush1.msra.mxu0 %v1373
        %1547 = vmatprep.subr.mxu0 0.0
        %1548 = vmatpush1.msra.mxu0 %v1379
        %1549 = vmatprep.subr.mxu0 0.0
        %1550 = vmatpush1.msra.mxu0 0.0
        %1551 = vmatprep.subr.mxu0 0.0
        %1552 = vmatpush1.msra.mxu0 0.0
        %1553 = vmatprep.subr.mxu0 0.0
        %1554 = vmatpush1.msra.mxu0 0.0
        %1555 = vmatprep.subr.mxu0 0.0
        %1556 = vmatpush1.msra.mxu0 0.0
        %1557 = vmatprep.subr.mxu0 0.0
        %1558 = vmatpush1.msra.mxu0 0.0
        %1559 = vmatprep.subr.mxu0 0.0
        %1560 = vmatpush1.msra.mxu0 0.0
        %1561 = vmatprep.subr.mxu0 0.0
        %1562 = vmatpush1.msra.mxu0 0.0
        %1563 = vmatprep.subr.mxu0 0.0
        %1564 = vmatpush1.msra.mxu0 0.0
        %1565 = vmatprep.subr.mxu0 0.0
        %1566 = vmatpush1.msra.mxu0 0.0
        %1567 = vmatprep.subr.mxu0 0.0
        %1568 = vmatpush1.msra.mxu0 0.0
        %1569 = vmatprep.subr.mxu0 0.0
        %1570 = vmatpush1.msra.mxu0 0.0
        %1571 = vmatprep.subr.mxu0 0.0
        %1572 = vmatpush1.msra.mxu0 0.0
        %1573 = vmatprep.subr.mxu0 0.0
        %1574 = vmatpush1.msra.mxu0 0.0
        %1575 = vmatprep.subr.mxu0 0.0
        %1576 = vmatpush1.msra.mxu0 0.0
        %1577 = vmatprep.subr.mxu0 0.0
        %1578 = vmatpush1.msra.mxu0 0.0
        %1579 = vmatprep.subr.mxu0 0.0
        %1580 = vmatpush1.msra.mxu0 0.0
        %1581 = vmatprep.subr.mxu0 0.0
        %1582 = vmatpush1.msra.mxu0 0.0
        %1583 = vmatprep.subr.mxu0 0.0
        %1584 = vmatpush1.msra.mxu0 0.0
        %1585 = vmatprep.subr.mxu0 0.0
        %1586 = vmatpush1.msra.mxu0 0.0
        %1587 = vmatprep.subr.mxu0 0.0
        %1588 = vmatpush1.msra.mxu0 0.0
        %1589 = vmatprep.subr.mxu0 0.0
        %1590 = vmatpush1.msra.mxu0 0.0
        %1591 = vmatprep.subr.mxu0 0.0
        %1592 = vmatpush1.msra.mxu0 0.0
        %1593 = vmatprep.subr.mxu0 0.0
        %1594 = vmatpush1.msra.mxu0 0.0
        %1595 = vmatprep.subr.mxu0 0.0
        %1596 = vmatpush1.msra.mxu0 0.0
        %1597 = vmatprep.subr.mxu0 0.0
        %1598 = vmatpush1.msra.mxu0 0.0
        %1599 = vmatprep.subr.mxu0 0.0
        %1600 = vmatpush1.msra.mxu0 0.0
        %1601 = vmatprep.subr.mxu0 0.0
        %1602 = vmatpush1.msra.mxu0 0.0
        %1603 = vmatprep.subr.mxu0 0.0
        %1604 = vmatpush1.msra.mxu0 0.0
        %1605 = vmatprep.subr.mxu0 0.0
        %1606 = vmatpush1.msra.mxu0 0.0
        %1607 = vmatprep.subr.mxu0 0.0
        %1608 = vmatpush1.msra.mxu0 0.0
        %1609 = vmatprep.mubr.f32.mxu0 0.0
        %1610 = vmatmul.mubr.f32.gmra.mrb[0].mxu0 %v892
        %v1611 = vpop.f32.mrb[0].mxu0
        %v1612 = vadd.f32 0.0, %v1611
        %v1613 = vpop.f32.mrb[0].mxu0
        %1614 = vmatprep.mubr.f32.mxu0 0.0
        %1615 = vmatmul.mubr.f32.gmra.mrb[0].mxu0 %v895
        %v1616 = vpop.f32.mrb[0].mxu0
        %v1617 = vadd.f32 0.0, %v1616
        %v1618 = vpop.f32.mrb[0].mxu0
        %1619 = vdwg.mxu0
        %v1620 = vadd.f32 %v1543, %v1612
        %v1621 = vadd.f32 %v1544, %v1617
        %1622 = vmatprep.subr.mxu0 0.0
        %1623 = vmatpush1.msra.mxu0 %v1375
        %1624 = vmatprep.subr.mxu0 0.0
        %1625 = vmatpush1.msra.mxu0 %v1381
        %1626 = vmatprep.subr.mxu0 0.0
        %1627 = vmatpush1.msra.mxu0 0.0
        %1628 = vmatprep.subr.mxu0 0.0
        %1629 = vmatpush1.msra.mxu0 0.0
        %1630 = vmatprep.subr.mxu0 0.0
        %1631 = vmatpush1.msra.mxu0 0.0
        %1632 = vmatprep.subr.mxu0 0.0
        %1633 = vmatpush1.msra.mxu0 0.0
        %1634 = vmatprep.subr.mxu0 0.0
        %1635 = vmatpush1.msra.mxu0 0.0
        %1636 = vmatprep.subr.mxu0 0.0
        %1637 = vmatpush1.msra.mxu0 0.0
        %1638 = vmatprep.subr.mxu0 0.0
        %1639 = vmatpush1.msra.mxu0 0.0
        %1640 = vmatprep.subr.mxu0 0.0
        %1641 = vmatpush1.msra.mxu0 0.0
        %1642 = vmatprep.subr.mxu0 0.0
        %1643 = vmatpush1.msra.mxu0 0.0
        %1644 = vmatprep.subr.mxu0 0.0
        %1645 = vmatpush1.msra.mxu0 0.0
        %1646 = vmatprep.subr.mxu0 0.0
        %1647 = vmatpush1.msra.mxu0 0.0
        %1648 = vmatprep.subr.mxu0 0.0
        %1649 = vmatpush1.msra.mxu0 0.0
        %1650 = vmatprep.subr.mxu0 0.0
        %1651 = vmatpush1.msra.mxu0 0.0
        %1652 = vmatprep.subr.mxu0 0.0
        %1653 = vmatpush1.msra.mxu0 0.0
        %1654 = vmatprep.subr.mxu0 0.0
        %1655 = vmatpush1.msra.mxu0 0.0
        %1656 = vmatprep.subr.mxu0 0.0
        %1657 = vmatpush1.msra.mxu0 0.0
        %1658 = vmatprep.subr.mxu0 0.0
        %1659 = vmatpush1.msra.mxu0 0.0
        %1660 = vmatprep.subr.mxu0 0.0
        %1661 = vmatpush1.msra.mxu0 0.0
        %1662 = vmatprep.subr.mxu0 0.0
        %1663 = vmatpush1.msra.mxu0 0.0
        %1664 = vmatprep.subr.mxu0 0.0
        %1665 = vmatpush1.msra.mxu0 0.0
        %1666 = vmatprep.subr.mxu0 0.0
        %1667 = vmatpush1.msra.mxu0 0.0
        %1668 = vmatprep.subr.mxu0 0.0
        %1669 = vmatpush1.msra.mxu0 0.0
        %1670 = vmatprep.subr.mxu0 0.0
        %1671 = vmatpush1.msra.mxu0 0.0
        %1672 = vmatprep.subr.mxu0 0.0
        %1673 = vmatpush1.msra.mxu0 0.0
        %1674 = vmatprep.subr.mxu0 0.0
        %1675 = vmatpush1.msra.mxu0 0.0
        %1676 = vmatprep.subr.mxu0 0.0
        %1677 = vmatpush1.msra.mxu0 0.0
        %1678 = vmatprep.subr.mxu0 0.0
        %1679 = vmatpush1.msra.mxu0 0.0
        %1680 = vmatprep.subr.mxu0 0.0
        %1681 = vmatpush1.msra.mxu0 0.0
        %1682 = vmatprep.subr.mxu0 0.0
        %1683 = vmatpush1.msra.mxu0 0.0
        %1684 = vmatprep.subr.mxu0 0.0
        %1685 = vmatpush1.msra.mxu0 0.0
        %1686 = vmatprep.mubr.f32.mxu0 0.0
        %1687 = vmatmul.mubr.f32.gmra.mrb[0].mxu0 %v978
        %v1688 = vpop.f32.mrb[0].mxu0
        %v1689 = vadd.f32 0.0, %v1688
        %v1690 = vpop.f32.mrb[0].mxu0
        %1691 = vmatprep.mubr.f32.mxu0 0.0
        %1692 = vmatmul.mubr.f32.gmra.mrb[0].mxu0 %v981
        %v1693 = vpop.f32.mrb[0].mxu0
        %v1694 = vadd.f32 0.0, %v1693
        %v1695 = vpop.f32.mrb[0].mxu0
        %1696 = vdwg.mxu0
        %v1697 = vadd.f32 %v1620, %v1689
        %v1698 = vadd.f32 %v1621, %v1694
        %1699 = vmatprep.subr.mxu0 0.0
        %1700 = vmatpush1.msra.mxu0 %v1450
        %1701 = vmatprep.subr.mxu0 0.0
        %1702 = vmatpush1.msra.mxu0 %v1455
        %1703 = vmatprep.subr.mxu0 0.0
        %1704 = vmatpush1.msra.mxu0 0.0
        %1705 = vmatprep.subr.mxu0 0.0
        %1706 = vmatpush1.msra.mxu0 0.0
        %1707 = vmatprep.subr.mxu0 0.0
        %1708 = vmatpush1.msra.mxu0 0.0
        %1709 = vmatprep.subr.mxu0 0.0
        %1710 = vmatpush1.msra.mxu0 0.0
        %1711 = vmatprep.subr.mxu0 0.0
        %1712 = vmatpush1.msra.mxu0 0.0
        %1713 = vmatprep.subr.mxu0 0.0
        %1714 = vmatpush1.msra.mxu0 0.0
        %1715 = vmatprep.subr.mxu0 0.0
        %1716 = vmatpush1.msra.mxu0 0.0
        %1717 = vmatprep.subr.mxu0 0.0
        %1718 = vmatpush1.msra.mxu0 0.0
        %1719 = vmatprep.subr.mxu0 0.0
        %1720 = vmatpush1.msra.mxu0 0.0
        %1721 = vmatprep.subr.mxu0 0.0
        %1722 = vmatpush1.msra.mxu0 0.0
        %1723 = vmatprep.subr.mxu0 0.0
        %1724 = vmatpush1.msra.mxu0 0.0
        %1725 = vmatprep.subr.mxu0 0.0
        %1726 = vmatpush1.msra.mxu0 0.0
        %1727 = vmatprep.subr.mxu0 0.0
        %1728 = vmatpush1.msra.mxu0 0.0
        %1729 = vmatprep.subr.mxu0 0.0
        %1730 = vmatpush1.msra.mxu0 0.0
        %1731 = vmatprep.subr.mxu0 0.0
        %1732 = vmatpush1.msra.mxu0 0.0
        %1733 = vmatprep.subr.mxu0 0.0
        %1734 = vmatpush1.msra.mxu0 0.0
        %1735 = vmatprep.subr.mxu0 0.0
        %1736 = vmatpush1.msra.mxu0 0.0
        %1737 = vmatprep.subr.mxu0 0.0
        %1738 = vmatpush1.msra.mxu0 0.0
        %1739 = vmatprep.subr.mxu0 0.0
        %1740 = vmatpush1.msra.mxu0 0.0
        %1741 = vmatprep.subr.mxu0 0.0
        %1742 = vmatpush1.msra.mxu0 0.0
        %1743 = vmatprep.subr.mxu0 0.0
        %1744 = vmatpush1.msra.mxu0 0.0
        %1745 = vmatprep.subr.mxu0 0.0
        %1746 = vmatpush1.msra.mxu0 0.0
        %1747 = vmatprep.subr.mxu0 0.0
        %1748 = vmatpush1.msra.mxu0 0.0
        %1749 = vmatprep.subr.mxu0 0.0
        %1750 = vmatpush1.msra.mxu0 0.0
        %1751 = vmatprep.subr.mxu0 0.0
        %1752 = vmatpush1.msra.mxu0 0.0
        %1753 = vmatprep.subr.mxu0 0.0
        %1754 = vmatpush1.msra.mxu0 0.0
        %1755 = vmatprep.subr.mxu0 0.0
        %1756 = vmatpush1.msra.mxu0 0.0
        %1757 = vmatprep.subr.mxu0 0.0
        %1758 = vmatpush1.msra.mxu0 0.0
        %1759 = vmatprep.subr.mxu0 0.0
        %1760 = vmatpush1.msra.mxu0 0.0
        %1761 = vmatprep.subr.mxu0 0.0
        %1762 = vmatpush1.msra.mxu0 0.0
        %1763 = vmatprep.mubr.f32.mxu0 0.0
        %1764 = vmatmul.mubr.f32.gmra.mrb[0].mxu0 %v1064
        %v1765 = vpop.f32.mrb[0].mxu0
        %v1766 = vadd.f32 0.0, %v1765
        %v1767 = vpop.f32.mrb[0].mxu0
        %1768 = vmatprep.mubr.f32.mxu0 0.0
        %1769 = vmatmul.mubr.f32.gmra.mrb[0].mxu0 %v1067
        %v1770 = vpop.f32.mrb[0].mxu0
        %v1771 = vadd.f32 0.0, %v1770
        %v1772 = vpop.f32.mrb[0].mxu0
        %1773 = vdwg.mxu0
        %v1774 = vadd.f32 %v1697, %v1766
        %v1775 = vadd.f32 %v1698, %v1771
        %v1776 = vmax.f32 %v1774, 0.0
        %v1777 = vmax.f32 %v1775, 0.0
        %1778 = vst [vmem:[%s379] sm:$0xff] %v1776
        %1779 = vst [vmem:[%s379 + $0x8] sm:$0xff] %v1777
        %s1780 = sand.u32 %s193, 1
        %s1781 = scalar_lea.sflag [#allocation4], %s1780
        %s1782 = sand.u32 %s193, 1
        %s1783 = smul.addr %s1782, 16
        %s1784 = scalar_lea.vmem [#allocation11], %s1783
        // Predicated region
        $region69: #{tpu_custom_call.1} parent=47 // pred_check
          %p1785 = pneg %p203
        $region70: #{tpu_custom_call.1} parent=47 // pred_check_branch
          %1787 = sbr.rel (%p1785) target = $region72
        $region71: #{tpu_custom_call.1} parent=47 // pred_region
          %s1788 = smul.u32 2, %s28
          %s1790 = ssub.s32 256, 256
          %1791 = vsyncadd %s1781, %s1790
          %s1792 = smul.addr %s1788, 128
          %s1793 = scalar_lea.hbm %s7, %s1792
          %s1794 = sshll.u32 %s1784, 4
          %s1795 = int_to_ptr.vmem [resolvable:$true] %s1794
          %1800 = dma.vmem_to_hbm [thread:$0]  %s1795, 256, %s1793, %s1781, 128, 128, 8
        $region72: #{tpu_custom_call.1} parent=47 // pred_fallthru
          _
      $region48: #{tpu_custom_call.1} parent=5 // pred_fallthru
        _
      %p1801 = scmp.le.s32.totalorder 2, %s23
      // Predicated region
      $region73: #{tpu_custom_call.1} parent=5 // pred_check
        %p1802 = pneg %p1801
      $region74: #{tpu_custom_call.1} parent=5 // pred_check_branch
        %1804 = sbr.rel (%p1802) target = $region76
      $region75: #{tpu_custom_call.1} parent=5 // pred_region
        %s1805 = ssub.s32 %s23, 2
        // Predicated region
        $region77: #{tpu_custom_call.1} parent=75 // pred_check
          %p1806 = pneg %p209
        $region78: #{tpu_custom_call.1} parent=75 // pred_check_branch
          %1808 = sbr.rel (%p1806) target = $region80
        $region79: #{tpu_custom_call.1} parent=75 // pred_region
          %s1809 = sand.u32 %s194, 1
          %s1810 = scalar_lea.sflag [#allocation4], %s1809
          %s1811 = sand.u32 %s194, 1
          %s1812 = smul.addr %s1811, 16
          %s1813 = scalar_lea.vmem [#allocation11], %s1812
          %1814 = dma.done %s1810, 256
        $region80: #{tpu_custom_call.1} parent=75 // pred_fallthru
          _
      $region76: #{tpu_custom_call.1} parent=5 // pred_fallthru
        _
    $region6: #{tpu_custom_call.1} parent=1 // loop_footer
      %s27 = sadd.s32 1, %s23
    $region7: #{tpu_custom_call.1} parent=1 // loop_footer_branch
      %22 = sbr.rel target = $region3
    $region8: #{tpu_custom_call.1} parent=1 // loop_exit
      _
    %1815 = vsyncpa [#allocation3], 1
    %s1816 = scalar_lea.sflag [#allocation3], 1
    %1817 = vsyncpa %s1816, 1
    %1818 = vsyncpa [#allocation6], 1
    %s1819 = scalar_lea.sflag [#allocation6], 1
    %1820 = vsyncpa %s1819, 1
    %1821 = vsyncpa [#allocation9], 1
    %1822 = vsyncpa [#allocation4], 1
    %s1823 = scalar_lea.sflag [#allocation4], 1
    %1824 = vsyncpa %s1823, 1

// kernel: tpu_custom_call.1
$region0: #{tpu_custom_call.1}
  #allocation0 [shape = 'u32[]', space=smem, size = 0x4, offset = 0x4, fixed_abs, tag = 'smem constant byte address 0x4 - core index']
  #allocation1 [shape = 'u32[144,128]{1,0:T(1,128)}', space=vmem, size = 0x12000, scoped, tag = 'internal scratch']
  %s0 = inlined_call_operand.hbm [shape: f32[32,32], index: 0, kind: input, shape index: {}]
  %s1 = inlined_call_operand.hbm [shape: f32[32,32], index: 1, kind: input, shape index: {}]
  %s2 = inlined_call_operand.hbm [shape: f32[32,128], index: 2, kind: input, shape index: {}]
  %s3 = inlined_call_operand.vmem [shape: f32[1,128], index: 3, kind: input, shape index: {}]
  %s4 = inlined_call_operand.hbm [shape: f32[4,16,16], index: 4, kind: input, shape index: {}]
  %s5 = inlined_call_operand.hbm [shape: f32[2,128,640], index: 5, kind: input, shape index: {}]
  %s6 = inlined_call_operand.vmem [shape: f32[2,1,128], index: 6, kind: input, shape index: {}]
  %s7 = inlined_call_operand.hbm [shape: f32[32,128], index: 7, kind: output, shape index: {}]
  %s8 = sld [smem:[#allocation0]]
  $region81: #{tpu_custom_call.1} parent=0
    _
  %s10 = ssub.s32 1, %s8
  %s11 = scalar_select 0, %s10, %s8
  $region1: #{tpu_custom_call.1} parent=0
    #allocation2 [shape = 'u8[16384]{0}', space=vmem, size = 0x4000, scoped, tag = 'input window, operand 0']
    #allocation3 [shape = 's32[2]{0}', space=sflag, size = 0x8, scoped, tag = 'scoped memory for tpu_custom_call.1']
    #allocation4 [shape = 's32[2]{0}', space=sflag, size = 0x8, scoped, tag = 'scoped memory for tpu_custom_call.1']
    #allocation5 [shape = 'u8[16384]{0}', space=vmem, size = 0x4000, scoped, tag = 'input window, operand 1']
    #allocation6 [shape = 's32[2]{0}', space=sflag, size = 0x8, scoped, tag = 'scoped memory for tpu_custom_call.1']
    #allocation7 [shape = 'u8[16384]{0}', space=vmem, size = 0x4000, scoped, tag = 'input window, operand 2, single buffered']
    #allocation8 [shape = 'u8[32768]{0}', space=vmem, size = 0x8000, scoped, tag = 'input window, operand 4, single buffered']
    #allocation9 [shape = 's32[1]{0}', space=sflag, size = 0x4, scoped, tag = 'scoped memory for tpu_custom_call.1']
    #allocation10 [shape = 'u8[655360]{0}', space=vmem, size = 0xa0000, scoped, tag = 'input window, operand 5, single buffered']
    #allocation11 [shape = 'u8[16384]{0}', space=vmem, size = 0x4000, scoped, tag = 'output window, operand 0']
    %12 = vsyncpa [#allocation3], 0
    %s13 = scalar_lea.sflag [#allocation3], 1
    %14 = vsyncpa %s13, 0
    %15 = vsyncpa [#allocation6], 0
    %s16 = scalar_lea.sflag [#allocation6], 1
    %17 = vsyncpa %s16, 0
    %18 = vsyncpa [#allocation9], 0
    %19 = vsyncpa [#allocation4], 0
    %s20 = scalar_lea.sflag [#allocation4], 1
    %21 = vsyncpa %s20, 0
    loop: start=0, step=1, limit=4
    $region2: #{tpu_custom_call.1} parent=1 // loop_pre_header
      _
    $region3: #{tpu_custom_call.1} parent=1 // loop_header
      %s23 = sphi 0, %s27
      %p24 = scmp.ge.s32.totalorder %s23, 4
      %s33 = sphi 0, %s35
      %s36 = sphi 0, %s33
      %s37 = sphi 0, %s36
      %s53 = sphi 0, %s37
      %s59 = sphi 0, %s61
      %s62 = sphi 0, %s59
      %s63 = sphi 0, %s62
      %s79 = sphi 0, %s63
      %s83 = sphi 0, %s83
      %s85 = sphi 0, %s83
      %s86 = sphi 0, %s85
      %s100 = sphi 0, %s86
      %s104 = sphi 0, %s104
      %s106 = sphi 0, %s104
      %s107 = sphi 0, %s106
      %s121 = sphi 0, %s107
      %s125 = sphi 0, %s125
      %s127 = sphi 0, %s125
      %s128 = sphi 0, %s127
      %s142 = sphi 0, %s128
      %s146 = sphi 0, %s146
      %s148 = sphi 0, %s146
      %s149 = sphi 0, %s148
      %s163 = sphi 0, %s149
      %s167 = sphi 0, %s167
      %s169 = sphi 0, %s167
      %s170 = sphi 0, %s169
      %s184 = sphi 0, %s170
      %s190 = sphi 0, %s192
      %s193 = sphi 0, %s190
      %s194 = sphi 0, %s193
      %s210 = sphi 0, %s194
    $region4: #{tpu_custom_call.1} parent=1 // loop_header_branch
      %26 = sbr.rel (%p24) target = $region8
    $region5: #{tpu_custom_call.1} parent=1 // loop_body
      %s28 = ssub.s32 %s23, 1
      %s29 = ssub.s32 %s23, 2
      %s30 = sadd.s32 %s23, 1
      %s31 = ssub.s32 %s23, %s30
      %p32 = scmp.eq.s32.totalorder %s31, 0
      %s34 = sadd.s32 %s33, 1
      %s35 = scalar_select %p32, %s33, %s34
      %p38 = pneg %p32
      %p39 = scmp.eq.s32.totalorder %s23, 1
      %p40 = por %p38, %p39
      %p41 = scmp.ne.s32.totalorder %s33, %s36
      %p42 = scmp.eq.s32.totalorder %s23, 0
      %p43 = por %p41, %p42
      %p44 = scmp.ne.s32.totalorder %s33, %s36
      %p45 = scmp.eq.s32.totalorder %s28, 1
      %p46 = por %p44, %p45
      %p47 = scmp.ne.s32.totalorder %s36, %s37
      %p48 = scmp.eq.s32.totalorder %s28, 0
      %p49 = por %p47, %p48
      %p50 = scmp.ne.s32.totalorder %s36, %s37
      %p51 = scmp.eq.s32.totalorder %s29, 1
      %p52 = por %p50, %p51
      %p54 = scmp.ne.s32.totalorder %s37, %s53
      %p55 = scmp.eq.s32.totalorder %s29, 0
      %p56 = por %p54, %p55
      %s57 = ssub.s32 %s23, %s30
      %p58 = scmp.eq.s32.totalorder %s57, 0
      %s60 = sadd.s32 %s59, 1
      %s61 = scalar_select %p58, %s59, %s60
      %p64 = pneg %p58
      %p65 = scmp.eq.s32.totalorder %s23, 1
      %p66 = por %p64, %p65
      %p67 = scmp.ne.s32.totalorder %s59, %s62
      %p68 = scmp.eq.s32.totalorder %s23, 0
      %p69 = por %p67, %p68
      %p70 = scmp.ne.s32.totalorder %s59, %s62
      %p71 = scmp.eq.s32.totalorder %s28, 1
      %p72 = por %p70, %p71
      %p73 = scmp.ne.s32.totalorder %s62, %s63
      %p74 = scmp.eq.s32.totalorder %s28, 0
      %p75 = por %p73, %p74
      %p76 = scmp.ne.s32.totalorder %s62, %s63
      %p77 = scmp.eq.s32.totalorder %s29, 1
      %p78 = por %p76, %p77
      %p80 = scmp.ne.s32.totalorder %s63, %s79
      %p81 = scmp.eq.s32.totalorder %s29, 0
      %p82 = por %p80, %p81
      %s84 = sadd.s32 %s83, 1
      %p87 = scmp.eq.s32.totalorder %s23, 1
      %p88 = scmp.ne.s32.totalorder %s83, %s85
      %p89 = scmp.eq.s32.totalorder %s23, 0
      %p90 = por %p88, %p89
      %p91 = scmp.ne.s32.totalorder %s83, %s85
      %p92 = scmp.eq.s32.totalorder %s28, 1
      %p93 = por %p91, %p92
      %p94 = scmp.ne.s32.totalorder %s85, %s86
      %p95 = scmp.eq.s32.totalorder %s28, 0
      %p96 = por %p94, %p95
      %p97 = scmp.ne.s32.totalorder %s85, %s86
      %p98 = scmp.eq.s32.totalorder %s29, 1
      %p99 = por %p97, %p98
      %p101 = scmp.ne.s32.totalorder %s86, %s100
      %p102 = scmp.eq.s32.totalorder %s29, 0
      %p103 = por %p101, %p102
      %s105 = sadd.s32 %s104, 1
      %p108 = scmp.eq.s32.totalorder %s23, 1
      %p109 = scmp.ne.s32.totalorder %s104, %s106
      %p110 = scmp.eq.s32.totalorder %s23, 0
      %p111 = por %p109, %p110
      %p112 = scmp.ne.s32.totalorder %s104, %s106
      %p113 = scmp.eq.s32.totalorder %s28, 1
      %p114 = por %p112, %p113
      %p115 = scmp.ne.s32.totalorder %s106, %s107
      %p116 = scmp.eq.s32.totalorder %s28, 0
      %p117 = por %p115, %p116
      %p118 = scmp.ne.s32.totalorder %s106, %s107
      %p119 = scmp.eq.s32.totalorder %s29, 1
      %p120 = por %p118, %p119
      %p122 = scmp.ne.s32.totalorder %s107, %s121
      %p123 = scmp.eq.s32.totalorder %s29, 0
      %p124 = por %p122, %p123
      %s126 = sadd.s32 %s125, 1
      %p129 = scmp.eq.s32.totalorder %s23, 1
      %p130 = scmp.ne.s32.totalorder %s125, %s127
      %p131 = scmp.eq.s32.totalorder %s23, 0
      %p132 = por %p130, %p131
      %p133 = scmp.ne.s32.totalorder %s125, %s127
      %p134 = scmp.eq.s32.totalorder %s28, 1
      %p135 = por %p133, %p134
      %p136 = scmp.ne.s32.totalorder %s127, %s128
      %p137 = scmp.eq.s32.totalorder %s28, 0
      %p138 = por %p136, %p137
      %p139 = scmp.ne.s32.totalorder %s127, %s128
      %p140 = scmp.eq.s32.totalorder %s29, 1
      %p141 = por %p139, %p140
      %p143 = scmp.ne.s32.totalorder %s128, %s142
      %p144 = scmp.eq.s32.totalorder %s29, 0
      %p145 = por %p143, %p144
      %s147 = sadd.s32 %s146, 1
      %p150 = scmp.eq.s32.totalorder %s23, 1
      %p151 = scmp.ne.s32.totalorder %s146, %s148
      %p152 = scmp.eq.s32.totalorder %s23, 0
      %p153 = por %p151, %p152
      %p154 = scmp.ne.s32.totalorder %s146, %s148
      %p155 = scmp.eq.s32.totalorder %s28, 1
      %p156 = por %p154, %p155
      %p157 = scmp.ne.s32.totalorder %s148, %s149
      %p158 = scmp.eq.s32.totalorder %s28, 0
      %p159 = por %p157, %p158
      %p160 = scmp.ne.s32.totalorder %s148, %s149
      %p161 = scmp.eq.s32.totalorder %s29, 1
      %p162 = por %p160, %p161
      %p164 = scmp.ne.s32.totalorder %s149, %s163
      %p165 = scmp.eq.s32.totalorder %s29, 0
      %p166 = por %p164, %p165
      %s168 = sadd.s32 %s167, 1
      %p171 = scmp.eq.s32.totalorder %s23, 1
      %p172 = scmp.ne.s32.totalorder %s167, %s169
      %p173 = scmp.eq.s32.totalorder %s23, 0
      %p174 = por %p172, %p173
      %p175 = scmp.ne.s32.totalorder %s167, %s169
      %p176 = scmp.eq.s32.totalorder %s28, 1
      %p177 = por %p175, %p176
      %p178 = scmp.ne.s32.totalorder %s169, %s170
      %p179 = scmp.eq.s32.totalorder %s28, 0
      %p180 = por %p178, %p179
      %p181 = scmp.ne.s32.totalorder %s169, %s170
      %p182 = scmp.eq.s32.totalorder %s29, 1
      %p183 = por %p181, %p182
      %p185 = scmp.ne.s32.totalorder %s170, %s184
      %p186 = scmp.eq.s32.totalorder %s29, 0
      %p187 = por %p185, %p186
      %s188 = ssub.s32 %s23, %s30
      %p189 = scmp.eq.s32.totalorder %s188, 0
      %s191 = sadd.s32 %s190, 1
      %s192 = scalar_select %p189, %s190, %s191
      %p195 = pneg %p189
      %p196 = scmp.eq.s32.totalorder %s23, 1
      %p197 = por %p195, %p196
      %p198 = scmp.ne.s32.totalorder %s190, %s193
      %p199 = scmp.eq.s32.totalorder %s23, 0
      %p200 = por %p198, %p199
      %p201 = scmp.ne.s32.totalorder %s190, %s193
      %p202 = scmp.eq.s32.totalorder %s28, 1
      %p203 = por %p201, %p202
      %p204 = scmp.ne.s32.totalorder %s193, %s194
      %p205 = scmp.eq.s32.totalorder %s28, 0
      %p206 = por %p204, %p205
      %p207 = scmp.ne.s32.totalorder %s193, %s194
      %p208 = scmp.eq.s32.totalorder %s29, 1
      %p209 = por %p207, %p208
      %p211 = scmp.ne.s32.totalorder %s194, %s210
      %p212 = scmp.eq.s32.totalorder %s29, 0
      %p213 = por %p211, %p212
      %p214 = scmp.le.s32.totalorder 1, %s23
      %p215 = scmp.lt.s32.totalorder %s23, 3
      %p216 = pnand %p214, %p215
      %p217 = pneg %p216
      // Predicated region
      $region9: #{tpu_custom_call.1} parent=5 // pred_check
        _
      $region10: #{tpu_custom_call.1} parent=5 // pred_check_branch
        %219 = sbr.rel (%p216) target = $region12
      $region11: #{tpu_custom_call.1} parent=5 // pred_region
        %s220 = ssub.s32 %s23, 1
        // Predicated region
        $region13: #{tpu_custom_call.1} parent=11 // pred_check
          %p221 = pneg %p96
        $region14: #{tpu_custom_call.1} parent=11 // pred_check_branch
          %223 = sbr.rel (%p221) target = $region16
        $region15: #{tpu_custom_call.1} parent=11 // pred_region
          %s225 = ssub.s32 512, 512
          %226 = vsyncadd [#allocation6], %s225
          %s227 = sshll.u32 [#allocation7], 4
          %s228 = int_to_ptr.vmem [resolvable:$true] %s227
          %233 = dma.hbm_to_vmem [thread:$0]  %s2, 512, %s228, [#allocation6], 128, 128, 8
        $region16: #{tpu_custom_call.1} parent=11 // pred_fallthru
          _
        // Predicated region
        $region17: #{tpu_custom_call.1} parent=11 // pred_check
          %p234 = pneg %p117
        $region18: #{tpu_custom_call.1} parent=11 // pred_check_branch
          %236 = sbr.rel (%p234) target = $region20
        $region19: #{tpu_custom_call.1} parent=11 // pred_region
          _
        $region20: #{tpu_custom_call.1} parent=11 // pred_fallthru
          _
        // Predicated region
        $region21: #{tpu_custom_call.1} parent=11 // pred_check
          %p237 = pneg %p138
        $region22: #{tpu_custom_call.1} parent=11 // pred_check_branch
          %239 = sbr.rel (%p237) target = $region24
        $region23: #{tpu_custom_call.1} parent=11 // pred_region
          %s241 = ssub.s32 1024, 1024
          %242 = vsyncadd [#allocation9], %s241
          %s243 = sshll.u32 [#allocation8], 4
          %s244 = int_to_ptr.vmem [resolvable:$true] %s243
          %249 = dma.hbm_to_vmem [thread:$0]  %s4, 1024, %s244, [#allocation9], 128, 128, 8
        $region24: #{tpu_custom_call.1} parent=11 // pred_fallthru
          _
        // Predicated region
        $region25: #{tpu_custom_call.1} parent=11 // pred_check
          %p250 = pneg %p159
        $region26: #{tpu_custom_call.1} parent=11 // pred_check_branch
          %252 = sbr.rel (%p250) target = $region28
        $region27: #{tpu_custom_call.1} parent=11 // pred_region
          %s254 = ssub.s32 20480, 20480
          %255 = vsyncadd [#allocation9], %s254
          %s256 = sshll.u32 [#allocation10], 4
          %s257 = int_to_ptr.vmem [resolvable:$true] %s256
          %262 = dma.hbm_to_vmem [thread:$0]  %s5, 20480, %s257, [#allocation9], 640, 640, 40
        $region28: #{tpu_custom_call.1} parent=11 // pred_fallthru
          _
        // Predicated region
        $region29: #{tpu_custom_call.1} parent=11 // pred_check
          %p263 = pneg %p180
        $region30: #{tpu_custom_call.1} parent=11 // pred_check_branch
          %265 = sbr.rel (%p263) target = $region32
        $region31: #{tpu_custom_call.1} parent=11 // pred_region
          _
        $region32: #{tpu_custom_call.1} parent=11 // pred_fallthru
          _
      $region12: #{tpu_custom_call.1} parent=5 // pred_fallthru
        _
      %p266 = scmp.lt.s32.totalorder %s23, 2
      // Predicated region
      $region33: #{tpu_custom_call.1} parent=5 // pred_check
        %p267 = pneg %p266
      $region34: #{tpu_custom_call.1} parent=5 // pred_check_branch
        %269 = sbr.rel (%p267) target = $region36
      $region35: #{tpu_custom_call.1} parent=5 // pred_region
        // Predicated region
        $region37: #{tpu_custom_call.1} parent=35 // pred_check
          %p270 = pneg %p43
        $region38: #{tpu_custom_call.1} parent=35 // pred_check_branch
          %272 = sbr.rel (%p270) target = $region40
        $region39: #{tpu_custom_call.1} parent=35 // pred_region
          %s273 = sand.u32 %s33, 1
          %s274 = scalar_lea.sflag [#allocation3], %s273
          %s275 = sand.u32 %s33, 1
          %s276 = smul.addr %s275, 16
          %s277 = scalar_lea.vmem [#allocation2], %s276
          %s278 = smul.u32 2, %s23
          %s280 = ssub.s32 256, 256
          %281 = vsyncadd %s274, %s280
          %s282 = smul.addr %s278, 128
          %s283 = scalar_lea.hbm %s0, %s282
          %s284 = sshll.u32 %s277, 4
          %s285 = int_to_ptr.vmem [resolvable:$true] %s284
          %290 = dma.hbm_to_vmem [thread:$0]  %s283, 256, %s285, %s274, 128, 128, 8
        $region40: #{tpu_custom_call.1} parent=35 // pred_fallthru
          _
        // Predicated region
        $region41: #{tpu_custom_call.1} parent=35 // pred_check
          %p291 = pneg %p69
        $region42: #{tpu_custom_call.1} parent=35 // pred_check_branch
          %293 = sbr.rel (%p291) target = $region44
        $region43: #{tpu_custom_call.1} parent=35 // pred_region
          %s294 = sand.u32 %s23, 1
          %s295 = scalar_lea.sflag [#allocation6], %s294
          %s296 = sand.u32 %s59, 1
          %s297 = smul.addr %s296, 16
          %s298 = scalar_lea.vmem [#allocation5], %s297
          %s299 = smul.u32 2, %s23
          %s301 = ssub.s32 256, 256
          %302 = vsyncadd %s295, %s301
          %s303 = smul.addr %s299, 128
          %s304 = scalar_lea.hbm %s1, %s303
          %s305 = sshll.u32 %s298, 4
          %s306 = int_to_ptr.vmem [resolvable:$true] %s305
          %311 = dma.hbm_to_vmem [thread:$0]  %s304, 256, %s306, %s295, 128, 128, 8
        $region44: #{tpu_custom_call.1} parent=35 // pred_fallthru
          _
      $region36: #{tpu_custom_call.1} parent=5 // pred_fallthru
        _
      %p312 = scmp.le.s32.totalorder 1, %s23
      %p313 = scmp.lt.s32.totalorder %s23, 3
      %p314 = pnand %p312, %p313
      %p315 = pneg %p314
      // Predicated region
      $region45: #{tpu_custom_call.1} parent=5 // pred_check
        _
      $region46: #{tpu_custom_call.1} parent=5 // pred_check_branch
        %317 = sbr.rel (%p314) target = $region48
      $region47: #{tpu_custom_call.1} parent=5 // pred_region
        %s318 = ssub.s32 %s23, 1
        %s319 = sand.u32 %s36, 1
        %s320 = scalar_lea.sflag [#allocation3], %s319
        %s321 = sand.u32 %s36, 1
        %s322 = smul.addr %s321, 16
        %s323 = scalar_lea.vmem [#allocation2], %s322
        // Predicated region
        $region49: #{tpu_custom_call.1} parent=47 // pred_check
          %p324 = pneg %p49
        $region50: #{tpu_custom_call.1} parent=47 // pred_check_branch
          %326 = sbr.rel (%p324) target = $region52
        $region51: #{tpu_custom_call.1} parent=47 // pred_region
          %327 = dma.done %s320, 256
        $region52: #{tpu_custom_call.1} parent=47 // pred_fallthru
          _
        %s328 = sand.u32 %s28, 1
        %s329 = scalar_lea.sflag [#allocation6], %s328
        %s330 = sand.u32 %s62, 1
        %s331 = smul.addr %s330, 16
        %s332 = scalar_lea.vmem [#allocation5], %s331
        // Predicated region
        $region53: #{tpu_custom_call.1} parent=47 // pred_check
          %p333 = pneg %p75
        $region54: #{tpu_custom_call.1} parent=47 // pred_check_branch
          %335 = sbr.rel (%p333) target = $region56
        $region55: #{tpu_custom_call.1} parent=47 // pred_region
          %336 = dma.done %s329, 256
        $region56: #{tpu_custom_call.1} parent=47 // pred_fallthru
          _
        // Predicated region
        $region57: #{tpu_custom_call.1} parent=47 // pred_check
          %p337 = pneg %p96
        $region58: #{tpu_custom_call.1} parent=47 // pred_check_branch
          %339 = sbr.rel (%p337) target = $region60
        $region59: #{tpu_custom_call.1} parent=47 // pred_region
          %340 = dma.done [#allocation6], 512
        $region60: #{tpu_custom_call.1} parent=47 // pred_fallthru
          _
        // Predicated region
        $region61: #{tpu_custom_call.1} parent=47 // pred_check
          %p341 = pneg %p138
        $region62: #{tpu_custom_call.1} parent=47 // pred_check_branch
          %343 = sbr.rel (%p341) target = $region64
        $region63: #{tpu_custom_call.1} parent=47 // pred_region
          %344 = dma.done [#allocation9], 1024
        $region64: #{tpu_custom_call.1} parent=47 // pred_fallthru
          _
        // Predicated region
        $region65: #{tpu_custom_call.1} parent=47 // pred_check
          %p345 = pneg %p159
        $region66: #{tpu_custom_call.1} parent=47 // pred_check_branch
          %347 = sbr.rel (%p345) target = $region68
        $region67: #{tpu_custom_call.1} parent=47 // pred_region
          %348 = dma.done [#allocation9], 20480
        $region68: #{tpu_custom_call.1} parent=47 // pred_fallthru
          _
        %s349 = sand.u32 %s36, 1
        %s350 = scalar_lea.sflag [#allocation3], %s349
        %s351 = sand.u32 %s36, 1
        %s352 = smul.addr %s351, 16
        %s353 = scalar_lea.vmem [#allocation2], %s352
        %p354 = pneg %p49
        %p355 = pneg %p46
        %s356 = sand.u32 %s28, 1
        %s357 = scalar_lea.sflag [#allocation6], %s356
        %s358 = sand.u32 %s62, 1
        %s359 = smul.addr %s358, 16
        %s360 = scalar_lea.vmem [#allocation5], %s359
        %p361 = pneg %p75
        %p362 = pneg %p72
        %p363 = pneg %p96
        %p364 = pneg %p93
        %p365 = pneg %p117
        %p366 = pneg %p114
        %p367 = pneg %p138
        %p368 = pneg %p135
        %p369 = pneg %p159
        %p370 = pneg %p156
        %p371 = pneg %p180
        %p372 = pneg %p177
        %p373 = pneg %p206
        %p374 = pneg %p203
        %s375 = sand.u32 %s193, 1
        %s376 = scalar_lea.sflag [#allocation4], %s375
        %s377 = sand.u32 %s193, 1
        %s378 = smul.addr %s377, 16
        %s379 = scalar_lea.vmem [#allocation11], %s378
        %s380 = smul.u32 2, %s28
        %s381 = smul.u32 2, %s28
        %s382 = smul.u32 2, %s28
        %v383 = vld [vmem:[%s323] sm:$0xff]
        %v384 = vld [vmem:[%s323 + $0x8] sm:$0xff]
        %v385 = vld [vmem:[%s332] sm:$0xff]
        %v386 = vld [vmem:[%s332 + $0x8] sm:$0xff]
        %v387 = vmul.f32 %v383, %v385
        %v388 = vmul.f32 %v384, %v386
        %v389 = vld [vmem:[#allocation7] sm:$0xff]
        %v390 = vld [vmem:[#allocation7 + $0x8] sm:$0xff]
        %v391 = vld [vmem:[#allocation7 + $0x10] sm:$0xff]
        %v392 = vld [vmem:[#allocation7 + $0x18] sm:$0xff]
        %v393 = vld [vmem:[%s3] sm:$0x1]
        %v395 = vlaneseq
        %v396 = vshrl.u32 %v395, 7
        %v397 = vsub.s32 0, %v396
        %v398 = vrot.slane %v393, %v397
        %vm400 = vcmask 261120
        %v402 = vsel %vm400, %v387, 0
        %v405 = vsel %vm400, %v388, 0
        %407 = vmatprep.subr.mxu0 0.0
        %408 = vmatpush1.msra.mxu0 %v389
        %409 = vmatprep.subr.mxu0 0.0
        %410 = vmatpush1.msra.mxu0 %v390
        %411 = vmatprep.subr.mxu0 0.0
        %412 = vmatpush1.msra.mxu0 %v391
        %413 = vmatprep.subr.mxu0 0.0
        %414 = vmatpush1.msra.mxu0 %v392
        %415 = vmatprep.subr.mxu0 0.0
        %416 = vmatpush1.msra.mxu0 0.0
        %417 = vmatprep.subr.mxu0 0.0
        %418 = vmatpush1.msra.mxu0 0.0
        %419 = vmatprep.subr.mxu0 0.0
        %420 = vmatpush1.msra.mxu0 0.0
        %421 = vmatprep.subr.mxu0 0.0
        %422 = vmatpush1.msra.mxu0 0.0
        %423 = vmatprep.subr.mxu0 0.0
        %424 = vmatpush1.msra.mxu0 0.0
        %425 = vmatprep.subr.mxu0 0.0
        %426 = vmatpush1.msra.mxu0 0.0
        %427 = vmatprep.subr.mxu0 0.0
        %428 = vmatpush1.msra.mxu0 0.0
        %429 = vmatprep.subr.mxu0 0.0
        %430 = vmatpush1.msra.mxu0 0.0
        %431 = vmatprep.subr.mxu0 0.0
        %432 = vmatpush1.msra.mxu0 0.0
        %433 = vmatprep.subr.mxu0 0.0
        %434 = vmatpush1.msra.mxu0 0.0
        %435 = vmatprep.subr.mxu0 0.0
        %436 = vmatpush1.msra.mxu0 0.0
        %437 = vmatprep.subr.mxu0 0.0
        %438 = vmatpush1.msra.mxu0 0.0
        %439 = vmatprep.subr.mxu0 0.0
        %440 = vmatpush1.msra.mxu0 0.0
        %441 = vmatprep.subr.mxu0 0.0
        %442 = vmatpush1.msra.mxu0 0.0
        %443 = vmatprep.subr.mxu0 0.0
        %444 = vmatpush1.msra.mxu0 0.0
        %445 = vmatprep.subr.mxu0 0.0
        %446 = vmatpush1.msra.mxu0 0.0
        %447 = vmatprep.subr.mxu0 0.0
        %448 = vmatpush1.msra.mxu0 0.0
        %449 = vmatprep.subr.mxu0 0.0
        %450 = vmatpush1.msra.mxu0 0.0
        %451 = vmatprep.subr.mxu0 0.0
        %452 = vmatpush1.msra.mxu0 0.0
        %453 = vmatprep.subr.mxu0 0.0
        %454 = vmatpush1.msra.mxu0 0.0
        %455 = vmatprep.subr.mxu0 0.0
        %456 = vmatpush1.msra.mxu0 0.0
        %457 = vmatprep.subr.mxu0 0.0
        %458 = vmatpush1.msra.mxu0 0.0
        %459 = vmatprep.subr.mxu0 0.0
        %460 = vmatpush1.msra.mxu0 0.0
        %461 = vmatprep.subr.mxu0 0.0
        %462 = vmatpush1.msra.mxu0 0.0
        %463 = vmatprep.subr.mxu0 0.0
        %464 = vmatpush1.msra.mxu0 0.0
        %465 = vmatprep.subr.mxu0 0.0
        %466 = vmatpush1.msra.mxu0 0.0
        %467 = vmatprep.subr.mxu0 0.0
        %468 = vmatpush1.msra.mxu0 0.0
        %469 = vmatprep.subr.mxu0 0.0
        %470 = vmatpush1.msra.mxu0 0.0
        %471 = vmatprep.mubr.f32.mxu0 0.0
        %472 = vmatmul.mubr.f32.gmra.mrb[0].mxu0 %v402
        %v473 = vpop.f32.mrb[0].mxu0
        %v474 = vadd.f32 %v398, %v473
        %v475 = vpop.f32.mrb[0].mxu0
        %476 = vmatprep.mubr.f32.mxu0 0.0
        %477 = vmatmul.mubr.f32.gmra.mrb[0].mxu0 %v405
        %v478 = vpop.f32.mrb[0].mxu0
        %v479 = vadd.f32 %v398, %v478
        %v480 = vpop.f32.mrb[0].mxu0
        %481 = vdwg.mxu0
        %v482 = vmax.f32 %v474, 0.0
        %v483 = vmax.f32 %v479, 0.0
        %v484 = vld [vmem:[#allocation10] sm:$0xff]
        %v485 = vld [vmem:[#allocation10 + $0x8] sm:$0xff]
        %v486 = vld [vmem:[#allocation10 + $0x10] sm:$0xff]
        %v487 = vld [vmem:[#allocation10 + $0x18] sm:$0xff]
        %v488 = vld [vmem:[#allocation10 + $0x20] sm:$0xff]
        %v489 = vld [vmem:[#allocation10 + $0x28] sm:$0xff]
        %v490 = vld [vmem:[#allocation10 + $0x30] sm:$0xff]
        %v491 = vld [vmem:[#allocation10 + $0x38] sm:$0xff]
        %v492 = vld [vmem:[#allocation10 + $0x40] sm:$0xff]
        %v493 = vld [vmem:[#allocation10 + $0x48] sm:$0xff]
        %v494 = vld [vmem:[#allocation10 + $0x50] sm:$0xff]
        %v495 = vld [vmem:[#allocation10 + $0x58] sm:$0xff]
        %v496 = vld [vmem:[#allocation10 + $0x60] sm:$0xff]
        %v497 = vld [vmem:[#allocation10 + $0x68] sm:$0xff]
        %v498 = vld [vmem:[#allocation10 + $0x70] sm:$0xff]
        %v499 = vld [vmem:[#allocation10 + $0x78] sm:$0xff]
        %v500 = vld [vmem:[#allocation10 + $0x80] sm:$0xff]
        %v501 = vld [vmem:[#allocation10 + $0x88] sm:$0xff]
        %v502 = vld [vmem:[#allocation10 + $0x90] sm:$0xff]
        %v503 = vld [vmem:[#allocation10 + $0x98] sm:$0xff]
        %v504 = vld [vmem:[#allocation10 + $0xa0] sm:$0xff]
        %v505 = vld [vmem:[#allocation10 + $0xa8] sm:$0xff]
        %v506 = vld [vmem:[#allocation10 + $0xb0] sm:$0xff]
        %v507 = vld [vmem:[#allocation10 + $0xb8] sm:$0xff]
        %v508 = vld [vmem:[#allocation10 + $0xc0] sm:$0xff]
        %v509 = vld [vmem:[#allocation10 + $0xc8] sm:$0xff]
        %v510 = vld [vmem:[#allocation10 + $0xd0] sm:$0xff]
        %v511 = vld [vmem:[#allocation10 + $0xd8] sm:$0xff]
        %v512 = vld [vmem:[#allocation10 + $0xe0] sm:$0xff]
        %v513 = vld [vmem:[#allocation10 + $0xe8] sm:$0xff]
        %v514 = vld [vmem:[#allocation10 + $0xf0] sm:$0xff]
        %v515 = vld [vmem:[#allocation10 + $0xf8] sm:$0xff]
        %v516 = vld [vmem:[#allocation10 + $0x100] sm:$0xff]
        %v517 = vld [vmem:[#allocation10 + $0x108] sm:$0xff]
        %v518 = vld [vmem:[#allocation10 + $0x110] sm:$0xff]
        %v519 = vld [vmem:[#allocation10 + $0x118] sm:$0xff]
        %v520 = vld [vmem:[#allocation10 + $0x120] sm:$0xff]
        %v521 = vld [vmem:[#allocation10 + $0x128] sm:$0xff]
        %v522 = vld [vmem:[#allocation10 + $0x130] sm:$0xff]
        %v523 = vld [vmem:[#allocation10 + $0x138] sm:$0xff]
        %v524 = vld [vmem:[#allocation10 + $0x140] sm:$0xff]
        %v525 = vld [vmem:[#allocation10 + $0x148] sm:$0xff]
        %v526 = vld [vmem:[#allocation10 + $0x150] sm:$0xff]
        %v527 = vld [vmem:[#allocation10 + $0x158] sm:$0xff]
        %v528 = vld [vmem:[#allocation10 + $0x160] sm:$0xff]
        %v529 = vld [vmem:[#allocation10 + $0x168] sm:$0xff]
        %v530 = vld [vmem:[#allocation10 + $0x170] sm:$0xff]
        %v531 = vld [vmem:[#allocation10 + $0x178] sm:$0xff]
        %v532 = vld [vmem:[#allocation10 + $0x180] sm:$0xff]
        %v533 = vld [vmem:[#allocation10 + $0x188] sm:$0xff]
        %v534 = vld [vmem:[#allocation10 + $0x190] sm:$0xff]
        %v535 = vld [vmem:[#allocation10 + $0x198] sm:$0xff]
        %v536 = vld [vmem:[#allocation10 + $0x1a0] sm:$0xff]
        %v537 = vld [vmem:[#allocation10 + $0x1a8] sm:$0xff]
        %v538 = vld [vmem:[#allocation10 + $0x1b0] sm:$0xff]
        %v539 = vld [vmem:[#allocation10 + $0x1b8] sm:$0xff]
        %v540 = vld [vmem:[#allocation10 + $0x1c0] sm:$0xff]
        %v541 = vld [vmem:[#allocation10 + $0x1c8] sm:$0xff]
        %v542 = vld [vmem:[#allocation10 + $0x1d0] sm:$0xff]
        %v543 = vld [vmem:[#allocation10 + $0x1d8] sm:$0xff]
        %v544 = vld [vmem:[#allocation10 + $0x1e0] sm:$0xff]
        %v545 = vld [vmem:[#allocation10 + $0x1e8] sm:$0xff]
        %v546 = vld [vmem:[#allocation10 + $0x1f0] sm:$0xff]
        %v547 = vld [vmem:[#allocation10 + $0x1f8] sm:$0xff]
        %v548 = vld [vmem:[#allocation10 + $0x200] sm:$0xff]
        %v549 = vld [vmem:[#allocation10 + $0x208] sm:$0xff]
        %v550 = vld [vmem:[#allocation10 + $0x210] sm:$0xff]
        %v551 = vld [vmem:[#allocation10 + $0x218] sm:$0xff]
        %v552 = vld [vmem:[#allocation10 + $0x220] sm:$0xff]
        %v553 = vld [vmem:[#allocation10 + $0x228] sm:$0xff]
        %v554 = vld [vmem:[#allocation10 + $0x230] sm:$0xff]
        %v555 = vld [vmem:[#allocation10 + $0x238] sm:$0xff]
        %v556 = vld [vmem:[#allocation10 + $0x240] sm:$0xff]
        %v557 = vld [vmem:[#allocation10 + $0x248] sm:$0xff]
        %v558 = vld [vmem:[#allocation10 + $0x250] sm:$0xff]
        %v559 = vld [vmem:[#allocation10 + $0x258] sm:$0xff]
        %v560 = vld [vmem:[#allocation10 + $0x260] sm:$0xff]
        %v561 = vld [vmem:[#allocation10 + $0x268] sm:$0xff]
        %v562 = vld [vmem:[#allocation10 + $0x270] sm:$0xff]
        %v563 = vld [vmem:[#allocation10 + $0x278] sm:$0xff]
        %564 = vmatprep.subr.mxu0 %v485
        %565 = vmatpush1.msra.mxu0 %v484
        %566 = vmatprep.subr.mxu0 %v490
        %567 = vmatpush1.msra.mxu0 %v489
        %568 = vmatprep.subr.mxu0 %v495
        %569 = vmatpush1.msra.mxu0 %v494
        %570 = vmatprep.subr.mxu0 %v500
        %571 = vmatpush1.msra.mxu0 %v499
        %572 = vmatprep.subr.mxu0 %v505
        %573 = vmatpush1.msra.mxu0 %v504
        %574 = vmatprep.subr.mxu0 %v510
        %575 = vmatpush1.msra.mxu0 %v509
        %576 = vmatprep.subr.mxu0 %v515
        %577 = vmatpush1.msra.mxu0 %v514
        %578 = vmatprep.subr.mxu0 %v520
        %579 = vmatpush1.msra.mxu0 %v519
        %580 = vmatprep.subr.mxu0 %v525
        %581 = vmatpush1.msra.mxu0 %v524
        %582 = vmatprep.subr.mxu0 %v530
        %583 = vmatpush1.msra.mxu0 %v529
        %584 = vmatprep.subr.mxu0 %v535
        %585 = vmatpush1.msra.mxu0 %v534
        %586 = vmatprep.subr.mxu0 %v540
        %587 = vmatpush1.msra.mxu0 %v539
        %588 = vmatprep.subr.mxu0 %v545
        %589 = vmatpush1.msra.mxu0 %v544
        %590 = vmatprep.subr.mxu0 %v550
        %591 = vmatpush1.msra.mxu0 %v549
        %592 = vmatprep.subr.mxu0 %v555
        %593 = vmatpush1.msra.mxu0 %v554
        %594 = vmatprep.subr.mxu0 %v560
        %595 = vmatpush1.msra.mxu0 %v559
        %596 = vmatprep.subr.mxu0 0.0
        %597 = vmatpush1.msra.mxu0 0.0
        %598 = vmatprep.subr.mxu0 0.0
        %599 = vmatpush1.msra.mxu0 0.0
        %600 = vmatprep.subr.mxu0 0.0
        %601 = vmatpush1.msra.mxu0 0.0
        %602 = vmatprep.subr.mxu0 0.0
        %603 = vmatpush1.msra.mxu0 0.0
        %604 = vmatprep.subr.mxu0 0.0
        %605 = vmatpush1.msra.mxu0 0.0
        %606 = vmatprep.subr.mxu0 0.0
        %607 = vmatpush1.msra.mxu0 0.0
        %608 = vmatprep.subr.mxu0 0.0
        %609 = vmatpush1.msra.mxu0 0.0
        %610 = vmatprep.subr.mxu0 0.0
        %611 = vmatpush1.msra.mxu0 0.0
        %612 = vmatprep.subr.mxu0 0.0
        %613 = vmatpush1.msra.mxu0 0.0
        %614 = vmatprep.subr.mxu0 0.0
        %615 = vmatpush1.msra.mxu0 0.0
        %616 = vmatprep.subr.mxu0 0.0
        %617 = vmatpush1.msra.mxu0 0.0
        %618 = vmatprep.subr.mxu0 0.0
        %619 = vmatpush1.msra.mxu0 0.0
        %620 = vmatprep.subr.mxu0 0.0
        %621 = vmatpush1.msra.mxu0 0.0
        %622 = vmatprep.subr.mxu0 0.0
        %623 = vmatpush1.msra.mxu0 0.0
        %624 = vmatprep.subr.mxu0 0.0
        %625 = vmatpush1.msra.mxu0 0.0
        %626 = vmatprep.subr.mxu0 0.0
        %627 = vmatpush1.msra.mxu0 0.0
        %628 = vmatprep.mubr.f32.mxu0 0.0
        %629 = vmatmul.mubr.f32.gmra.mrb[0].mxu0 %v482
        %v630 = vpop.f32.mrb[0].mxu0
        %v631 = vadd.f32 0.0, %v630
        %v632 = vpop.f32.mrb[0].mxu0
        %v633 = vadd.f32 0.0, %v632
        %634 = vmatprep.mubr.f32.mxu0 0.0
        %635 = vmatmul.mubr.f32.gmra.mrb[0].mxu0 %v483
        %v636 = vpop.f32.mrb[0].mxu0
        %v637 = vadd.f32 0.0, %v636
        %v638 = vpop.f32.mrb[0].mxu0
        %v639 = vadd.f32 0.0, %v638
        %640 = vdwg.mxu0
        %641 = vmatprep.subr.mxu0 %v487
        %642 = vmatpush1.msra.mxu0 %v486
        %643 = vmatprep.subr.mxu0 %v492
        %644 = vmatpush1.msra.mxu0 %v491
        %645 = vmatprep.subr.mxu0 %v497
        %646 = vmatpush1.msra.mxu0 %v496
        %647 = vmatprep.subr.mxu0 %v502
        %648 = vmatpush1.msra.mxu0 %v501
        %649 = vmatprep.subr.mxu0 %v507
        %650 = vmatpush1.msra.mxu0 %v506
        %651 = vmatprep.subr.mxu0 %v512
        %652 = vmatpush1.msra.mxu0 %v511
        %653 = vmatprep.subr.mxu0 %v517
        %654 = vmatpush1.msra.mxu0 %v516
        %655 = vmatprep.subr.mxu0 %v522
        %656 = vmatpush1.msra.mxu0 %v521
        %657 = vmatprep.subr.mxu0 %v527
        %658 = vmatpush1.msra.mxu0 %v526
        %659 = vmatprep.subr.mxu0 %v532
        %660 = vmatpush1.msra.mxu0 %v531
        %661 = vmatprep.subr.mxu0 %v537
        %662 = vmatpush1.msra.mxu0 %v536
        %663 = vmatprep.subr.mxu0 %v542
        %664 = vmatpush1.msra.mxu0 %v541
        %665 = vmatprep.subr.mxu0 %v547
        %666 = vmatpush1.msra.mxu0 %v546
        %667 = vmatprep.subr.mxu0 %v552
        %668 = vmatpush1.msra.mxu0 %v551
        %669 = vmatprep.subr.mxu0 %v557
        %670 = vmatpush1.msra.mxu0 %v556
        %671 = vmatprep.subr.mxu0 %v562
        %672 = vmatpush1.msra.mxu0 %v561
        %673 = vmatprep.subr.mxu0 0.0
        %674 = vmatpush1.msra.mxu0 0.0
        %675 = vmatprep.subr.mxu0 0.0
        %676 = vmatpush1.msra.mxu0 0.0
        %677 = vmatprep.subr.mxu0 0.0
        %678 = vmatpush1.msra.mxu0 0.0
        %679 = vmatprep.subr.mxu0 0.0
        %680 = vmatpush1.msra.mxu0 0.0
        %681 = vmatprep.subr.mxu0 0.0
        %682 = vmatpush1.msra.mxu0 0.0
        %683 = vmatprep.subr.mxu0 0.0
        %684 = vmatpush1.msra.mxu0 0.0
        %685 = vmatprep.subr.mxu0 0.0
        %686 = vmatpush1.msra.mxu0 0.0
        %687 = vmatprep.subr.mxu0 0.0
        %688 = vmatpush1.msra.mxu0 0.0
        %689 = vmatprep.subr.mxu0 0.0
        %690 = vmatpush1.msra.mxu0 0.0
        %691 = vmatprep.subr.mxu0 0.0
        %692 = vmatpush1.msra.mxu0 0.0
        %693 = vmatprep.subr.mxu0 0.0
        %694 = vmatpush1.msra.mxu0 0.0
        %695 = vmatprep.subr.mxu0 0.0
        %696 = vmatpush1.msra.mxu0 0.0
        %697 = vmatprep.subr.mxu0 0.0
        %698 = vmatpush1.msra.mxu0 0.0
        %699 = vmatprep.subr.mxu0 0.0
        %700 = vmatpush1.msra.mxu0 0.0
        %701 = vmatprep.subr.mxu0 0.0
        %702 = vmatpush1.msra.mxu0 0.0
        %703 = vmatprep.subr.mxu0 0.0
        %704 = vmatpush1.msra.mxu0 0.0
        %705 = vmatprep.mubr.f32.mxu0 0.0
        %706 = vmatmul.mubr.f32.gmra.mrb[0].mxu0 %v482
        %v707 = vpop.f32.mrb[0].mxu0
        %v708 = vadd.f32 0.0, %v707
        %v709 = vpop.f32.mrb[0].mxu0
        %v710 = vadd.f32 0.0, %v709
        %711 = vmatprep.mubr.f32.mxu0 0.0
        %712 = vmatmul.mubr.f32.gmra.mrb[0].mxu0 %v483
        %v713 = vpop.f32.mrb[0].mxu0
        %v714 = vadd.f32 0.0, %v713
        %v715 = vpop.f32.mrb[0].mxu0
        %v716 = vadd.f32 0.0, %v715
        %717 = vdwg.mxu0
        %718 = vmatprep.subr.mxu0 0.0
        %719 = vmatpush1.msra.mxu0 %v488
        %720 = vmatprep.subr.mxu0 0.0
        %721 = vmatpush1.msra.mxu0 %v493
        %722 = vmatprep.subr.mxu0 0.0
        %723 = vmatpush1.msra.mxu0 %v498
        %724 = vmatprep.subr.mxu0 0.0
        %725 = vmatpush1.msra.mxu0 %v503
        %726 = vmatprep.subr.mxu0 0.0
        %727 = vmatpush1.msra.mxu0 %v508
        %728 = vmatprep.subr.mxu0 0.0
        %729 = vmatpush1.msra.mxu0 %v513
        %730 = vmatprep.subr.mxu0 0.0
        %731 = vmatpush1.msra.mxu0 %v518
        %732 = vmatprep.subr.mxu0 0.0
        %733 = vmatpush1.msra.mxu0 %v523
        %734 = vmatprep.subr.mxu0 0.0
        %735 = vmatpush1.msra.mxu0 %v528
        %736 = vmatprep.subr.mxu0 0.0
        %737 = vmatpush1.msra.mxu0 %v533
        %738 = vmatprep.subr.mxu0 0.0
        %739 = vmatpush1.msra.mxu0 %v538
        %740 = vmatprep.subr.mxu0 0.0
        %741 = vmatpush1.msra.mxu0 %v543
        %742 = vmatprep.subr.mxu0 0.0
        %743 = vmatpush1.msra.mxu0 %v548
        %744 = vmatprep.subr.mxu0 0.0
        %745 = vmatpush1.msra.mxu0 %v553
        %746 = vmatprep.subr.mxu0 0.0
        %747 = vmatpush1.msra.mxu0 %v558
        %748 = vmatprep.subr.mxu0 0.0
        %749 = vmatpush1.msra.mxu0 %v563
        %750 = vmatprep.subr.mxu0 0.0
        %751 = vmatpush1.msra.mxu0 0.0
        %752 = vmatprep.subr.mxu0 0.0
        %753 = vmatpush1.msra.mxu0 0.0
        %754 = vmatprep.subr.mxu0 0.0
        %755 = vmatpush1.msra.mxu0 0.0
        %756 = vmatprep.subr.mxu0 0.0
        %757 = vmatpush1.msra.mxu0 0.0
        %758 = vmatprep.subr.mxu0 0.0
        %759 = vmatpush1.msra.mxu0 0.0
        %760 = vmatprep.subr.mxu0 0.0
        %761 = vmatpush1.msra.mxu0 0.0
        %762 = vmatprep.subr.mxu0 0.0
        %763 = vmatpush1.msra.mxu0 0.0
        %764 = vmatprep.subr.mxu0 0.0
        %765 = vmatpush1.msra.mxu0 0.0
        %766 = vmatprep.subr.mxu0 0.0
        %767 = vmatpush1.msra.mxu0 0.0
        %768 = vmatprep.subr.mxu0 0.0
        %769 = vmatpush1.msra.mxu0 0.0
        %770 = vmatprep.subr.mxu0 0.0
        %771 = vmatpush1.msra.mxu0 0.0
        %772 = vmatprep.subr.mxu0 0.0
        %773 = vmatpush1.msra.mxu0 0.0
        %774 = vmatprep.subr.mxu0 0.0
        %775 = vmatpush1.msra.mxu0 0.0
        %776 = vmatprep.subr.mxu0 0.0
        %777 = vmatpush1.msra.mxu0 0.0
        %778 = vmatprep.subr.mxu0 0.0
        %779 = vmatpush1.msra.mxu0 0.0
        %780 = vmatprep.subr.mxu0 0.0
        %781 = vmatpush1.msra.mxu0 0.0
        %782 = vmatprep.mubr.f32.mxu0 0.0
        %783 = vmatmul.mubr.f32.gmra.mrb[0].mxu0 %v482
        %v784 = vpop.f32.mrb[0].mxu0
        %v785 = vadd.f32 0.0, %v784
        %v786 = vpop.f32.mrb[0].mxu0
        %787 = vmatprep.mubr.f32.mxu0 0.0
        %788 = vmatmul.mubr.f32.gmra.mrb[0].mxu0 %v483
        %v789 = vpop.f32.mrb[0].mxu0
        %v790 = vadd.f32 0.0, %v789
        %v791 = vpop.f32.mrb[0].mxu0
        %792 = vdwg.mxu0
        %v793 = vld [vmem:[%s6] sm:$0x1]
        %v795 = vlaneseq
        %v796 = vshrl.u32 %v795, 7
        %v797 = vsub.s32 0, %v796
        %v798 = vrot.slane %v793, %v797
        %v800 = vadd.f32 %v631, %v798
        %v801 = vadd.f32 %v637, %v798
        %v802 = vld [vmem:[#allocation8] sm:$0xff]
        %v803 = vld [vmem:[#allocation8 + $0x8] sm:$0xff]
        %vm804 = vcmask 130048
        %v806 = vsel %vm804, %v802, 0
        %v809 = vsel %vm804, %v803, 0
        %811 = vmatprep.subr.mxu0 0.0
        %812 = vmatpush1.msra.mxu0 %v633
        %813 = vmatprep.subr.mxu0 0.0
        %814 = vmatpush1.msra.mxu0 %v639
        %815 = vmatprep.subr.mxu0 0.0
        %816 = vmatpush1.msra.mxu0 0.0
        %817 = vmatprep.subr.mxu0 0.0
        %818 = vmatpush1.msra.mxu0 0.0
        %819 = vmatprep.subr.mxu0 0.0
        %820 = vmatpush1.msra.mxu0 0.0
        %821 = vmatprep.subr.mxu0 0.0
        %822 = vmatpush1.msra.mxu0 0.0
        %823 = vmatprep.subr.mxu0 0.0
        %824 = vmatpush1.msra.mxu0 0.0
        %825 = vmatprep.subr.mxu0 0.0
        %826 = vmatpush1.msra.mxu0 0.0
        %827 = vmatprep.subr.mxu0 0.0
        %828 = vmatpush1.msra.mxu0 0.0
        %829 = vmatprep.subr.mxu0 0.0
        %830 = vmatpush1.msra.mxu0 0.0
        %831 = vmatprep.subr.mxu0 0.0
        %832 = vmatpush1.msra.mxu0 0.0
        %833 = vmatprep.subr.mxu0 0.0
        %834 = vmatpush1.msra.mxu0 0.0
        %835 = vmatprep.subr.mxu0 0.0
        %836 = vmatpush1.msra.mxu0 0.0
        %837 = vmatprep.subr.mxu0 0.0
        %838 = vmatpush1.msra.mxu0 0.0
        %839 = vmatprep.subr.mxu0 0.0
        %840 = vmatpush1.msra.mxu0 0.0
        %841 = vmatprep.subr.mxu0 0.0
        %842 = vmatpush1.msra.mxu0 0.0
        %843 = vmatprep.subr.mxu0 0.0
        %844 = vmatpush1.msra.mxu0 0.0
        %845 = vmatprep.subr.mxu0 0.0
        %846 = vmatpush1.msra.mxu0 0.0
        %847 = vmatprep.subr.mxu0 0.0
        %848 = vmatpush1.msra.mxu0 0.0
        %849 = vmatprep.subr.mxu0 0.0
        %850 = vmatpush1.msra.mxu0 0.0
        %851 = vmatprep.subr.mxu0 0.0
        %852 = vmatpush1.msra.mxu0 0.0
        %853 = vmatprep.subr.mxu0 0.0
        %854 = vmatpush1.msra.mxu0 0.0
        %855 = vmatprep.subr.mxu0 0.0
        %856 = vmatpush1.msra.mxu0 0.0
        %857 = vmatprep.subr.mxu0 0.0
        %858 = vmatpush1.msra.mxu0 0.0
        %859 = vmatprep.subr.mxu0 0.0
        %860 = vmatpush1.msra.mxu0 0.0
        %861 = vmatprep.subr.mxu0 0.0
        %862 = vmatpush1.msra.mxu0 0.0
        %863 = vmatprep.subr.mxu0 0.0
        %864 = vmatpush1.msra.mxu0 0.0
        %865 = vmatprep.subr.mxu0 0.0
        %866 = vmatpush1.msra.mxu0 0.0
        %867 = vmatprep.subr.mxu0 0.0
        %868 = vmatpush1.msra.mxu0 0.0
        %869 = vmatprep.subr.mxu0 0.0
        %870 = vmatpush1.msra.mxu0 0.0
        %871 = vmatprep.subr.mxu0 0.0
        %872 = vmatpush1.msra.mxu0 0.0
        %873 = vmatprep.subr.mxu0 0.0
        %874 = vmatpush1.msra.mxu0 0.0
        %875 = vmatprep.mubr.f32.mxu0 0.0
        %876 = vmatmul.mubr.f32.gmra.mrb[0].mxu0 %v806
        %v877 = vpop.f32.mrb[0].mxu0
        %v878 = vadd.f32 0.0, %v877
        %v879 = vpop.f32.mrb[0].mxu0
        %880 = vmatprep.mubr.f32.mxu0 0.0
        %881 = vmatmul.mubr.f32.gmra.mrb[0].mxu0 %v809
        %v882 = vpop.f32.mrb[0].mxu0
        %v883 = vadd.f32 0.0, %v882
        %v884 = vpop.f32.mrb[0].mxu0
        %885 = vdwg.mxu0
        %v886 = vadd.f32 %v800, %v878
        %v887 = vadd.f32 %v801, %v883
        %s888 = scalar_lea.vmem [#allocation8], 16
        %v889 = vld [vmem:[%s888] sm:$0xff]
        %v890 = vld [vmem:[%s888 + $0x8] sm:$0xff]
        %v892 = vsel %vm804, %v889, 0
        %v895 = vsel %vm804, %v890, 0
        %897 = vmatprep.subr.mxu0 0.0
        %898 = vmatpush1.msra.mxu0 %v708
        %899 = vmatprep.subr.mxu0 0.0
        %900 = vmatpush1.msra.mxu0 %v714
        %901 = vmatprep.subr.mxu0 0.0
        %902 = vmatpush1.msra.mxu0 0.0
        %903 = vmatprep.subr.mxu0 0.0
        %904 = vmatpush1.msra.mxu0 0.0
        %905 = vmatprep.subr.mxu0 0.0
        %906 = vmatpush1.msra.mxu0 0.0
        %907 = vmatprep.subr.mxu0 0.0
        %908 = vmatpush1.msra.mxu0 0.0
        %909 = vmatprep.subr.mxu0 0.0
        %910 = vmatpush1.msra.mxu0 0.0
        %911 = vmatprep.subr.mxu0 0.0
        %912 = vmatpush1.msra.mxu0 0.0
        %913 = vmatprep.subr.mxu0 0.0
        %914 = vmatpush1.msra.mxu0 0.0
        %915 = vmatprep.subr.mxu0 0.0
        %916 = vmatpush1.msra.mxu0 0.0
        %917 = vmatprep.subr.mxu0 0.0
        %918 = vmatpush1.msra.mxu0 0.0
        %919 = vmatprep.subr.mxu0 0.0
        %920 = vmatpush1.msra.mxu0 0.0
        %921 = vmatprep.subr.mxu0 0.0
        %922 = vmatpush1.msra.mxu0 0.0
        %923 = vmatprep.subr.mxu0 0.0
        %924 = vmatpush1.msra.mxu0 0.0
        %925 = vmatprep.subr.mxu0 0.0
        %926 = vmatpush1.msra.mxu0 0.0
        %927 = vmatprep.subr.mxu0 0.0
        %928 = vmatpush1.msra.mxu0 0.0
        %929 = vmatprep.subr.mxu0 0.0
        %930 = vmatpush1.msra.mxu0 0.0
        %931 = vmatprep.subr.mxu0 0.0
        %932 = vmatpush1.msra.mxu0 0.0
        %933 = vmatprep.subr.mxu0 0.0
        %934 = vmatpush1.msra.mxu0 0.0
        %935 = vmatprep.subr.mxu0 0.0
        %936 = vmatpush1.msra.mxu0 0.0
        %937 = vmatprep.subr.mxu0 0.0
        %938 = vmatpush1.msra.mxu0 0.0
        %939 = vmatprep.subr.mxu0 0.0
        %940 = vmatpush1.msra.mxu0 0.0
        %941 = vmatprep.subr.mxu0 0.0
        %942 = vmatpush1.msra.mxu0 0.0
        %943 = vmatprep.subr.mxu0 0.0
        %944 = vmatpush1.msra.mxu0 0.0
        %945 = vmatprep.subr.mxu0 0.0
        %946 = vmatpush1.msra.mxu0 0.0
        %947 = vmatprep.subr.mxu0 0.0
        %948 = vmatpush1.msra.mxu0 0.0
        %949 = vmatprep.subr.mxu0 0.0
        %950 = vmatpush1.msra.mxu0 0.0
        %951 = vmatprep.subr.mxu0 0.0
        %952 = vmatpush1.msra.mxu0 0.0
        %953 = vmatprep.subr.mxu0 0.0
        %954 = vmatpush1.msra.mxu0 0.0
        %955 = vmatprep.subr.mxu0 0.0
        %956 = vmatpush1.msra.mxu0 0.0
        %957 = vmatprep.subr.mxu0 0.0
        %958 = vmatpush1.msra.mxu0 0.0
        %959 = vmatprep.subr.mxu0 0.0
        %960 = vmatpush1.msra.mxu0 0.0
        %961 = vmatprep.mubr.f32.mxu0 0.0
        %962 = vmatmul.mubr.f32.gmra.mrb[0].mxu0 %v892
        %v963 = vpop.f32.mrb[0].mxu0
        %v964 = vadd.f32 0.0, %v963
        %v965 = vpop.f32.mrb[0].mxu0
        %966 = vmatprep.mubr.f32.mxu0 0.0
        %967 = vmatmul.mubr.f32.gmra.mrb[0].mxu0 %v895
        %v968 = vpop.f32.mrb[0].mxu0
        %v969 = vadd.f32 0.0, %v968
        %v970 = vpop.f32.mrb[0].mxu0
        %971 = vdwg.mxu0
        %v972 = vadd.f32 %v886, %v964
        %v973 = vadd.f32 %v887, %v969
        %s974 = scalar_lea.vmem [#allocation8], 32
        %v975 = vld [vmem:[%s974] sm:$0xff]
        %v976 = vld [vmem:[%s974 + $0x8] sm:$0xff]
        %v978 = vsel %vm804, %v975, 0
        %v981 = vsel %vm804, %v976, 0
        %983 = vmatprep.subr.mxu0 0.0
        %984 = vmatpush1.msra.mxu0 %v710
        %985 = vmatprep.subr.mxu0 0.0
        %986 = vmatpush1.msra.mxu0 %v716
        %987 = vmatprep.subr.mxu0 0.0
        %988 = vmatpush1.msra.mxu0 0.0
        %989 = vmatprep.subr.mxu0 0.0
        %990 = vmatpush1.msra.mxu0 0.0
        %991 = vmatprep.subr.mxu0 0.0
        %992 = vmatpush1.msra.mxu0 0.0
        %993 = vmatprep.subr.mxu0 0.0
        %994 = vmatpush1.msra.mxu0 0.0
        %995 = vmatprep.subr.mxu0 0.0
        %996 = vmatpush1.msra.mxu0 0.0
        %997 = vmatprep.subr.mxu0 0.0
        %998 = vmatpush1.msra.mxu0 0.0
        %999 = vmatprep.subr.mxu0 0.0
        %1000 = vmatpush1.msra.mxu0 0.0
        %1001 = vmatprep.subr.mxu0 0.0
        %1002 = vmatpush1.msra.mxu0 0.0
        %1003 = vmatprep.subr.mxu0 0.0
        %1004 = vmatpush1.msra.mxu0 0.0
        %1005 = vmatprep.subr.mxu0 0.0
        %1006 = vmatpush1.msra.mxu0 0.0
        %1007 = vmatprep.subr.mxu0 0.0
        %1008 = vmatpush1.msra.mxu0 0.0
        %1009 = vmatprep.subr.mxu0 0.0
        %1010 = vmatpush1.msra.mxu0 0.0
        %1011 = vmatprep.subr.mxu0 0.0
        %1012 = vmatpush1.msra.mxu0 0.0
        %1013 = vmatprep.subr.mxu0 0.0
        %1014 = vmatpush1.msra.mxu0 0.0
        %1015 = vmatprep.subr.mxu0 0.0
        %1016 = vmatpush1.msra.mxu0 0.0
        %1017 = vmatprep.subr.mxu0 0.0
        %1018 = vmatpush1.msra.mxu0 0.0
        %1019 = vmatprep.subr.mxu0 0.0
        %1020 = vmatpush1.msra.mxu0 0.0
        %1021 = vmatprep.subr.mxu0 0.0
        %1022 = vmatpush1.msra.mxu0 0.0
        %1023 = vmatprep.subr.mxu0 0.0
        %1024 = vmatpush1.msra.mxu0 0.0
        %1025 = vmatprep.subr.mxu0 0.0
        %1026 = vmatpush1.msra.mxu0 0.0
        %1027 = vmatprep.subr.mxu0 0.0
        %1028 = vmatpush1.msra.mxu0 0.0
        %1029 = vmatprep.subr.mxu0 0.0
        %1030 = vmatpush1.msra.mxu0 0.0
        %1031 = vmatprep.subr.mxu0 0.0
        %1032 = vmatpush1.msra.mxu0 0.0
        %1033 = vmatprep.subr.mxu0 0.0
        %1034 = vmatpush1.msra.mxu0 0.0
        %1035 = vmatprep.subr.mxu0 0.0
        %1036 = vmatpush1.msra.mxu0 0.0
        %1037 = vmatprep.subr.mxu0 0.0
        %1038 = vmatpush1.msra.mxu0 0.0
        %1039 = vmatprep.subr.mxu0 0.0
        %1040 = vmatpush1.msra.mxu0 0.0
        %1041 = vmatprep.subr.mxu0 0.0
        %1042 = vmatpush1.msra.mxu0 0.0
        %1043 = vmatprep.subr.mxu0 0.0
        %1044 = vmatpush1.msra.mxu0 0.0
        %1045 = vmatprep.subr.mxu0 0.0
        %1046 = vmatpush1.msra.mxu0 0.0
        %1047 = vmatprep.mubr.f32.mxu0 0.0
        %1048 = vmatmul.mubr.f32.gmra.mrb[0].mxu0 %v978
        %v1049 = vpop.f32.mrb[0].mxu0
        %v1050 = vadd.f32 0.0, %v1049
        %v1051 = vpop.f32.mrb[0].mxu0
        %1052 = vmatprep.mubr.f32.mxu0 0.0
        %1053 = vmatmul.mubr.f32.gmra.mrb[0].mxu0 %v981
        %v1054 = vpop.f32.mrb[0].mxu0
        %v1055 = vadd.f32 0.0, %v1054
        %v1056 = vpop.f32.mrb[0].mxu0
        %1057 = vdwg.mxu0
        %v1058 = vadd.f32 %v972, %v1050
        %v1059 = vadd.f32 %v973, %v1055
        %s1060 = scalar_lea.vmem [#allocation8], 48
        %v1061 = vld [vmem:[%s1060] sm:$0xff]
        %v1062 = vld [vmem:[%s1060 + $0x8] sm:$0xff]
        %v1064 = vsel %vm804, %v1061, 0
        %v1067 = vsel %vm804, %v1062, 0
        %1069 = vmatprep.subr.mxu0 0.0
        %1070 = vmatpush1.msra.mxu0 %v785
        %1071 = vmatprep.subr.mxu0 0.0
        %1072 = vmatpush1.msra.mxu0 %v790
        %1073 = vmatprep.subr.mxu0 0.0
        %1074 = vmatpush1.msra.mxu0 0.0
        %1075 = vmatprep.subr.mxu0 0.0
        %1076 = vmatpush1.msra.mxu0 0.0
        %1077 = vmatprep.subr.mxu0 0.0
        %1078 = vmatpush1.msra.mxu0 0.0
        %1079 = vmatprep.subr.mxu0 0.0
        %1080 = vmatpush1.msra.mxu0 0.0
        %1081 = vmatprep.subr.mxu0 0.0
        %1082 = vmatpush1.msra.mxu0 0.0
        %1083 = vmatprep.subr.mxu0 0.0
        %1084 = vmatpush1.msra.mxu0 0.0
        %1085 = vmatprep.subr.mxu0 0.0
        %1086 = vmatpush1.msra.mxu0 0.0
        %1087 = vmatprep.subr.mxu0 0.0
        %1088 = vmatpush1.msra.mxu0 0.0
        %1089 = vmatprep.subr.mxu0 0.0
        %1090 = vmatpush1.msra.mxu0 0.0
        %1091 = vmatprep.subr.mxu0 0.0
        %1092 = vmatpush1.msra.mxu0 0.0
        %1093 = vmatprep.subr.mxu0 0.0
        %1094 = vmatpush1.msra.mxu0 0.0
        %1095 = vmatprep.subr.mxu0 0.0
        %1096 = vmatpush1.msra.mxu0 0.0
        %1097 = vmatprep.subr.mxu0 0.0
        %1098 = vmatpush1.msra.mxu0 0.0
        %1099 = vmatprep.subr.mxu0 0.0
        %1100 = vmatpush1.msra.mxu0 0.0
        %1101 = vmatprep.subr.mxu0 0.0
        %1102 = vmatpush1.msra.mxu0 0.0
        %1103 = vmatprep.subr.mxu0 0.0
        %1104 = vmatpush1.msra.mxu0 0.0
        %1105 = vmatprep.subr.mxu0 0.0
        %1106 = vmatpush1.msra.mxu0 0.0
        %1107 = vmatprep.subr.mxu0 0.0
        %1108 = vmatpush1.msra.mxu0 0.0
        %1109 = vmatprep.subr.mxu0 0.0
        %1110 = vmatpush1.msra.mxu0 0.0
        %1111 = vmatprep.subr.mxu0 0.0
        %1112 = vmatpush1.msra.mxu0 0.0
        %1113 = vmatprep.subr.mxu0 0.0
        %1114 = vmatpush1.msra.mxu0 0.0
        %1115 = vmatprep.subr.mxu0 0.0
        %1116 = vmatpush1.msra.mxu0 0.0
        %1117 = vmatprep.subr.mxu0 0.0
        %1118 = vmatpush1.msra.mxu0 0.0
        %1119 = vmatprep.subr.mxu0 0.0
        %1120 = vmatpush1.msra.mxu0 0.0
        %1121 = vmatprep.subr.mxu0 0.0
        %1122 = vmatpush1.msra.mxu0 0.0
        %1123 = vmatprep.subr.mxu0 0.0
        %1124 = vmatpush1.msra.mxu0 0.0
        %1125 = vmatprep.subr.mxu0 0.0
        %1126 = vmatpush1.msra.mxu0 0.0
        %1127 = vmatprep.subr.mxu0 0.0
        %1128 = vmatpush1.msra.mxu0 0.0
        %1129 = vmatprep.subr.mxu0 0.0
        %1130 = vmatpush1.msra.mxu0 0.0
        %1131 = vmatprep.subr.mxu0 0.0
        %1132 = vmatpush1.msra.mxu0 0.0
        %1133 = vmatprep.mubr.f32.mxu0 0.0
        %1134 = vmatmul.mubr.f32.gmra.mrb[0].mxu0 %v1064
        %v1135 = vpop.f32.mrb[0].mxu0
        %v1136 = vadd.f32 0.0, %v1135
        %v1137 = vpop.f32.mrb[0].mxu0
        %1138 = vmatprep.mubr.f32.mxu0 0.0
        %1139 = vmatmul.mubr.f32.gmra.mrb[0].mxu0 %v1067
        %v1140 = vpop.f32.mrb[0].mxu0
        %v1141 = vadd.f32 0.0, %v1140
        %v1142 = vpop.f32.mrb[0].mxu0
        %1143 = vdwg.mxu0
        %v1144 = vadd.f32 %v1058, %v1136
        %v1145 = vadd.f32 %v1059, %v1141
        %v1146 = vmax.f32 %v1144, 0.0
        %v1147 = vmax.f32 %v1145, 0.0
        %s1148 = scalar_lea.vmem [#allocation10], 640
        %v1149 = vld [vmem:[%s1148] sm:$0xff]
        %v1150 = vld [vmem:[%s1148 + $0x8] sm:$0xff]
        %v1151 = vld [vmem:[%s1148 + $0x10] sm:$0xff]
        %v1152 = vld [vmem:[%s1148 + $0x18] sm:$0xff]
        %v1153 = vld [vmem:[%s1148 + $0x20] sm:$0xff]
        %v1154 = vld [vmem:[%s1148 + $0x28] sm:$0xff]
        %v1155 = vld [vmem:[%s1148 + $0x30] sm:$0xff]
        %v1156 = vld [vmem:[%s1148 + $0x38] sm:$0xff]
        %v1157 = vld [vmem:[%s1148 + $0x40] sm:$0xff]
        %v1158 = vld [vmem:[%s1148 + $0x48] sm:$0xff]
        %v1159 = vld [vmem:[%s1148 + $0x50] sm:$0xff]
        %v1160 = vld [vmem:[%s1148 + $0x58] sm:$0xff]
        %v1161 = vld [vmem:[%s1148 + $0x60] sm:$0xff]
        %v1162 = vld [vmem:[%s1148 + $0x68] sm:$0xff]
        %v1163 = vld [vmem:[%s1148 + $0x70] sm:$0xff]
        %v1164 = vld [vmem:[%s1148 + $0x78] sm:$0xff]
        %v1165 = vld [vmem:[%s1148 + $0x80] sm:$0xff]
        %v1166 = vld [vmem:[%s1148 + $0x88] sm:$0xff]
        %v1167 = vld [vmem:[%s1148 + $0x90] sm:$0xff]
        %v1168 = vld [vmem:[%s1148 + $0x98] sm:$0xff]
        %v1169 = vld [vmem:[%s1148 + $0xa0] sm:$0xff]
        %v1170 = vld [vmem:[%s1148 + $0xa8] sm:$0xff]
        %v1171 = vld [vmem:[%s1148 + $0xb0] sm:$0xff]
        %v1172 = vld [vmem:[%s1148 + $0xb8] sm:$0xff]
        %v1173 = vld [vmem:[%s1148 + $0xc0] sm:$0xff]
        %v1174 = vld [vmem:[%s1148 + $0xc8] sm:$0xff]
        %v1175 = vld [vmem:[%s1148 + $0xd0] sm:$0xff]
        %v1176 = vld [vmem:[%s1148 + $0xd8] sm:$0xff]
        %v1177 = vld [vmem:[%s1148 + $0xe0] sm:$0xff]
        %v1178 = vld [vmem:[%s1148 + $0xe8] sm:$0xff]
        %v1179 = vld [vmem:[%s1148 + $0xf0] sm:$0xff]
        %v1180 = vld [vmem:[%s1148 + $0xf8] sm:$0xff]
        %v1181 = vld [vmem:[%s1148 + $0x100] sm:$0xff]
        %v1182 = vld [vmem:[%s1148 + $0x108] sm:$0xff]
        %v1183 = vld [vmem:[%s1148 + $0x110] sm:$0xff]
        %v1184 = vld [vmem:[%s1148 + $0x118] sm:$0xff]
        %v1185 = vld [vmem:[%s1148 + $0x120] sm:$0xff]
        %v1186 = vld [vmem:[%s1148 + $0x128] sm:$0xff]
        %v1187 = vld [vmem:[%s1148 + $0x130] sm:$0xff]
        %v1188 = vld [vmem:[%s1148 + $0x138] sm:$0xff]
        %v1189 = vld [vmem:[%s1148 + $0x140] sm:$0xff]
        %v1190 = vld [vmem:[%s1148 + $0x148] sm:$0xff]
        %v1191 = vld [vmem:[%s1148 + $0x150] sm:$0xff]
        %v1192 = vld [vmem:[%s1148 + $0x158] sm:$0xff]
        %v1193 = vld [vmem:[%s1148 + $0x160] sm:$0xff]
        %v1194 = vld [vmem:[%s1148 + $0x168] sm:$0xff]
        %v1195 = vld [vmem:[%s1148 + $0x170] sm:$0xff]
        %v1196 = vld [vmem:[%s1148 + $0x178] sm:$0xff]
        %v1197 = vld [vmem:[%s1148 + $0x180] sm:$0xff]
        %v1198 = vld [vmem:[%s1148 + $0x188] sm:$0xff]
        %v1199 = vld [vmem:[%s1148 + $0x190] sm:$0xff]
        %v1200 = vld [vmem:[%s1148 + $0x198] sm:$0xff]
        %v1201 = vld [vmem:[%s1148 + $0x1a0] sm:$0xff]
        %v1202 = vld [vmem:[%s1148 + $0x1a8] sm:$0xff]
        %v1203 = vld [vmem:[%s1148 + $0x1b0] sm:$0xff]
        %v1204 = vld [vmem:[%s1148 + $0x1b8] sm:$0xff]
        %v1205 = vld [vmem:[%s1148 + $0x1c0] sm:$0xff]
        %v1206 = vld [vmem:[%s1148 + $0x1c8] sm:$0xff]
        %v1207 = vld [vmem:[%s1148 + $0x1d0] sm:$0xff]
        %v1208 = vld [vmem:[%s1148 + $0x1d8] sm:$0xff]
        %v1209 = vld [vmem:[%s1148 + $0x1e0] sm:$0xff]
        %v1210 = vld [vmem:[%s1148 + $0x1e8] sm:$0xff]
        %v1211 = vld [vmem:[%s1148 + $0x1f0] sm:$0xff]
        %v1212 = vld [vmem:[%s1148 + $0x1f8] sm:$0xff]
        %v1213 = vld [vmem:[%s1148 + $0x200] sm:$0xff]
        %v1214 = vld [vmem:[%s1148 + $0x208] sm:$0xff]
        %v1215 = vld [vmem:[%s1148 + $0x210] sm:$0xff]
        %v1216 = vld [vmem:[%s1148 + $0x218] sm:$0xff]
        %v1217 = vld [vmem:[%s1148 + $0x220] sm:$0xff]
        %v1218 = vld [vmem:[%s1148 + $0x228] sm:$0xff]
        %v1219 = vld [vmem:[%s1148 + $0x230] sm:$0xff]
        %v1220 = vld [vmem:[%s1148 + $0x238] sm:$0xff]
        %v1221 = vld [vmem:[%s1148 + $0x240] sm:$0xff]
        %v1222 = vld [vmem:[%s1148 + $0x248] sm:$0xff]
        %v1223 = vld [vmem:[%s1148 + $0x250] sm:$0xff]
        %v1224 = vld [vmem:[%s1148 + $0x258] sm:$0xff]
        %v1225 = vld [vmem:[%s1148 + $0x260] sm:$0xff]
        %v1226 = vld [vmem:[%s1148 + $0x268] sm:$0xff]
        %v1227 = vld [vmem:[%s1148 + $0x270] sm:$0xff]
        %v1228 = vld [vmem:[%s1148 + $0x278] sm:$0xff]
        %1229 = vmatprep.subr.mxu0 %v1150
        %1230 = vmatpush1.msra.mxu0 %v1149
        %1231 = vmatprep.subr.mxu0 %v1155
        %1232 = vmatpush1.msra.mxu0 %v1154
        %1233 = vmatprep.subr.mxu0 %v1160
        %1234 = vmatpush1.msra.mxu0 %v1159
        %1235 = vmatprep.subr.mxu0 %v1165
        %1236 = vmatpush1.msra.mxu0 %v1164
        %1237 = vmatprep.subr.mxu0 %v1170
        %1238 = vmatpush1.msra.mxu0 %v1169
        %1239 = vmatprep.subr.mxu0 %v1175
        %1240 = vmatpush1.msra.mxu0 %v1174
        %1241 = vmatprep.subr.mxu0 %v1180
        %1242 = vmatpush1.msra.mxu0 %v1179
        %1243 = vmatprep.subr.mxu0 %v1185
        %1244 = vmatpush1.msra.mxu0 %v1184
        %1245 = vmatprep.subr.mxu0 %v1190
        %1246 = vmatpush1.msra.mxu0 %v1189
        %1247 = vmatprep.subr.mxu0 %v1195
        %1248 = vmatpush1.msra.mxu0 %v1194
        %1249 = vmatprep.subr.mxu0 %v1200
        %1250 = vmatpush1.msra.mxu0 %v1199
        %1251 = vmatprep.subr.mxu0 %v1205
        %1252 = vmatpush1.msra.mxu0 %v1204
        %1253 = vmatprep.subr.mxu0 %v1210
        %1254 = vmatpush1.msra.mxu0 %v1209
        %1255 = vmatprep.subr.mxu0 %v1215
        %1256 = vmatpush1.msra.mxu0 %v1214
        %1257 = vmatprep.subr.mxu0 %v1220
        %1258 = vmatpush1.msra.mxu0 %v1219
        %1259 = vmatprep.subr.mxu0 %v1225
        %1260 = vmatpush1.msra.mxu0 %v1224
        %1261 = vmatprep.subr.mxu0 0.0
        %1262 = vmatpush1.msra.mxu0 0.0
        %1263 = vmatprep.subr.mxu0 0.0
        %1264 = vmatpush1.msra.mxu0 0.0
        %1265 = vmatprep.subr.mxu0 0.0
        %1266 = vmatpush1.msra.mxu0 0.0
        %1267 = vmatprep.subr.mxu0 0.0
        %1268 = vmatpush1.msra.mxu0 0.0
        %1269 = vmatprep.subr.mxu0 0.0
        %1270 = vmatpush1.msra.mxu0 0.0
        %1271 = vmatprep.subr.mxu0 0.0
        %1272 = vmatpush1.msra.mxu0 0.0
        %1273 = vmatprep.subr.mxu0 0.0
        %1274 = vmatpush1.msra.mxu0 0.0
        %1275 = vmatprep.subr.mxu0 0.0
        %1276 = vmatpush1.msra.mxu0 0.0
        %1277 = vmatprep.subr.mxu0 0.0
        %1278 = vmatpush1.msra.mxu0 0.0
        %1279 = vmatprep.subr.mxu0 0.0
        %1280 = vmatpush1.msra.mxu0 0.0
        %1281 = vmatprep.subr.mxu0 0.0
        %1282 = vmatpush1.msra.mxu0 0.0
        %1283 = vmatprep.subr.mxu0 0.0
        %1284 = vmatpush1.msra.mxu0 0.0
        %1285 = vmatprep.subr.mxu0 0.0
        %1286 = vmatpush1.msra.mxu0 0.0
        %1287 = vmatprep.subr.mxu0 0.0
        %1288 = vmatpush1.msra.mxu0 0.0
        %1289 = vmatprep.subr.mxu0 0.0
        %1290 = vmatpush1.msra.mxu0 0.0
        %1291 = vmatprep.subr.mxu0 0.0
        %1292 = vmatpush1.msra.mxu0 0.0
        %1293 = vmatprep.mubr.f32.mxu0 0.0
        %1294 = vmatmul.mubr.f32.gmra.mrb[0].mxu0 %v1146
        %v1295 = vpop.f32.mrb[0].mxu0
        %v1296 = vadd.f32 0.0, %v1295
        %v1297 = vpop.f32.mrb[0].mxu0
        %v1298 = vadd.f32 0.0, %v1297
        %1299 = vmatprep.mubr.f32.mxu0 0.0
        %1300 = vmatmul.mubr.f32.gmra.mrb[0].mxu0 %v1147
        %v1301 = vpop.f32.mrb[0].mxu0
        %v1302 = vadd.f32 0.0, %v1301
        %v1303 = vpop.f32.mrb[0].mxu0
        %v1304 = vadd.f32 0.0, %v1303
        %1305 = vdwg.mxu0
        %1306 = vmatprep.subr.mxu0 %v1152
        %1307 = vmatpush1.msra.mxu0 %v1151
        %1308 = vmatprep.subr.mxu0 %v1157
        %1309 = vmatpush1.msra.mxu0 %v1156
        %1310 = vmatprep.subr.mxu0 %v1162
        %1311 = vmatpush1.msra.mxu0 %v1161
        %1312 = vmatprep.subr.mxu0 %v1167
        %1313 = vmatpush1.msra.mxu0 %v1166
        %1314 = vmatprep.subr.mxu0 %v1172
        %1315 = vmatpush1.msra.mxu0 %v1171
        %1316 = vmatprep.subr.mxu0 %v1177
        %1317 = vmatpush1.msra.mxu0 %v1176
        %1318 = vmatprep.subr.mxu0 %v1182
        %1319 = vmatpush1.msra.mxu0 %v1181
        %1320 = vmatprep.subr.mxu0 %v1187
        %1321 = vmatpush1.msra.mxu0 %v1186
        %1322 = vmatprep.subr.mxu0 %v1192
        %1323 = vmatpush1.msra.mxu0 %v1191
        %1324 = vmatprep.subr.mxu0 %v1197
        %1325 = vmatpush1.msra.mxu0 %v1196
        %1326 = vmatprep.subr.mxu0 %v1202
        %1327 = vmatpush1.msra.mxu0 %v1201
        %1328 = vmatprep.subr.mxu0 %v1207
        %1329 = vmatpush1.msra.mxu0 %v1206
        %1330 = vmatprep.subr.mxu0 %v1212
        %1331 = vmatpush1.msra.mxu0 %v1211
        %1332 = vmatprep.subr.mxu0 %v1217
        %1333 = vmatpush1.msra.mxu0 %v1216
        %1334 = vmatprep.subr.mxu0 %v1222
        %1335 = vmatpush1.msra.mxu0 %v1221
        %1336 = vmatprep.subr.mxu0 %v1227
        %1337 = vmatpush1.msra.mxu0 %v1226
        %1338 = vmatprep.subr.mxu0 0.0
        %1339 = vmatpush1.msra.mxu0 0.0
        %1340 = vmatprep.subr.mxu0 0.0
        %1341 = vmatpush1.msra.mxu0 0.0
        %1342 = vmatprep.subr.mxu0 0.0
        %1343 = vmatpush1.msra.mxu0 0.0
        %1344 = vmatprep.subr.mxu0 0.0
        %1345 = vmatpush1.msra.mxu0 0.0
        %1346 = vmatprep.subr.mxu0 0.0
        %1347 = vmatpush1.msra.mxu0 0.0
        %1348 = vmatprep.subr.mxu0 0.0
        %1349 = vmatpush1.msra.mxu0 0.0
        %1350 = vmatprep.subr.mxu0 0.0
        %1351 = vmatpush1.msra.mxu0 0.0
        %1352 = vmatprep.subr.mxu0 0.0
        %1353 = vmatpush1.msra.mxu0 0.0
        %1354 = vmatprep.subr.mxu0 0.0
        %1355 = vmatpush1.msra.mxu0 0.0
        %1356 = vmatprep.subr.mxu0 0.0
        %1357 = vmatpush1.msra.mxu0 0.0
        %1358 = vmatprep.subr.mxu0 0.0
        %1359 = vmatpush1.msra.mxu0 0.0
        %1360 = vmatprep.subr.mxu0 0.0
        %1361 = vmatpush1.msra.mxu0 0.0
        %1362 = vmatprep.subr.mxu0 0.0
        %1363 = vmatpush1.msra.mxu0 0.0
        %1364 = vmatprep.subr.mxu0 0.0
        %1365 = vmatpush1.msra.mxu0 0.0
        %1366 = vmatprep.subr.mxu0 0.0
        %1367 = vmatpush1.msra.mxu0 0.0
        %1368 = vmatprep.subr.mxu0 0.0
        %1369 = vmatpush1.msra.mxu0 0.0
        %1370 = vmatprep.mubr.f32.mxu0 0.0
        %1371 = vmatmul.mubr.f32.gmra.mrb[0].mxu0 %v1146
        %v1372 = vpop.f32.mrb[0].mxu0
        %v1373 = vadd.f32 0.0, %v1372
        %v1374 = vpop.f32.mrb[0].mxu0
        %v1375 = vadd.f32 0.0, %v1374
        %1376 = vmatprep.mubr.f32.mxu0 0.0
        %1377 = vmatmul.mubr.f32.gmra.mrb[0].mxu0 %v1147
        %v1378 = vpop.f32.mrb[0].mxu0
        %v1379 = vadd.f32 0.0, %v1378
        %v1380 = vpop.f32.mrb[0].mxu0
        %v1381 = vadd.f32 0.0, %v1380
        %1382 = vdwg.mxu0
        %1383 = vmatprep.subr.mxu0 0.0
        %1384 = vmatpush1.msra.mxu0 %v1153
        %1385 = vmatprep.subr.mxu0 0.0
        %1386 = vmatpush1.msra.mxu0 %v1158
        %1387 = vmatprep.subr.mxu0 0.0
        %1388 = vmatpush1.msra.mxu0 %v1163
        %1389 = vmatprep.subr.mxu0 0.0
        %1390 = vmatpush1.msra.mxu0 %v1168
        %1391 = vmatprep.subr.mxu0 0.0
        %1392 = vmatpush1.msra.mxu0 %v1173
        %1393 = vmatprep.subr.mxu0 0.0
        %1394 = vmatpush1.msra.mxu0 %v1178
        %1395 = vmatprep.subr.mxu0 0.0
        %1396 = vmatpush1.msra.mxu0 %v1183
        %1397 = vmatprep.subr.mxu0 0.0
        %1398 = vmatpush1.msra.mxu0 %v1188
        %1399 = vmatprep.subr.mxu0 0.0
        %1400 = vmatpush1.msra.mxu0 %v1193
        %1401 = vmatprep.subr.mxu0 0.0
        %1402 = vmatpush1.msra.mxu0 %v1198
        %1403 = vmatprep.subr.mxu0 0.0
        %1404 = vmatpush1.msra.mxu0 %v1203
        %1405 = vmatprep.subr.mxu0 0.0
        %1406 = vmatpush1.msra.mxu0 %v1208
        %1407 = vmatprep.subr.mxu0 0.0
        %1408 = vmatpush1.msra.mxu0 %v1213
        %1409 = vmatprep.subr.mxu0 0.0
        %1410 = vmatpush1.msra.mxu0 %v1218
        %1411 = vmatprep.subr.mxu0 0.0
        %1412 = vmatpush1.msra.mxu0 %v1223
        %1413 = vmatprep.subr.mxu0 0.0
        %1414 = vmatpush1.msra.mxu0 %v1228
        %1415 = vmatprep.subr.mxu0 0.0
        %1416 = vmatpush1.msra.mxu0 0.0
        %1417 = vmatprep.subr.mxu0 0.0
        %1418 = vmatpush1.msra.mxu0 0.0
        %1419 = vmatprep.subr.mxu0 0.0
        %1420 = vmatpush1.msra.mxu0 0.0
        %1421 = vmatprep.subr.mxu0 0.0
        %1422 = vmatpush1.msra.mxu0 0.0
        %1423 = vmatprep.subr.mxu0 0.0
        %1424 = vmatpush1.msra.mxu0 0.0
        %1425 = vmatprep.subr.mxu0 0.0
        %1426 = vmatpush1.msra.mxu0 0.0
        %1427 = vmatprep.subr.mxu0 0.0
        %1428 = vmatpush1.msra.mxu0 0.0
        %1429 = vmatprep.subr.mxu0 0.0
        %1430 = vmatpush1.msra.mxu0 0.0
        %1431 = vmatprep.subr.mxu0 0.0
        %1432 = vmatpush1.msra.mxu0 0.0
        %1433 = vmatprep.subr.mxu0 0.0
        %1434 = vmatpush1.msra.mxu0 0.0
        %1435 = vmatprep.subr.mxu0 0.0
        %1436 = vmatpush1.msra.mxu0 0.0
        %1437 = vmatprep.subr.mxu0 0.0
        %1438 = vmatpush1.msra.mxu0 0.0
        %1439 = vmatprep.subr.mxu0 0.0
        %1440 = vmatpush1.msra.mxu0 0.0
        %1441 = vmatprep.subr.mxu0 0.0
        %1442 = vmatpush1.msra.mxu0 0.0
        %1443 = vmatprep.subr.mxu0 0.0
        %1444 = vmatpush1.msra.mxu0 0.0
        %1445 = vmatprep.subr.mxu0 0.0
        %1446 = vmatpush1.msra.mxu0 0.0
        %1447 = vmatprep.mubr.f32.mxu0 0.0
        %1448 = vmatmul.mubr.f32.gmra.mrb[0].mxu0 %v1146
        %v1449 = vpop.f32.mrb[0].mxu0
        %v1450 = vadd.f32 0.0, %v1449
        %v1451 = vpop.f32.mrb[0].mxu0
        %1452 = vmatprep.mubr.f32.mxu0 0.0
        %1453 = vmatmul.mubr.f32.gmra.mrb[0].mxu0 %v1147
        %v1454 = vpop.f32.mrb[0].mxu0
        %v1455 = vadd.f32 0.0, %v1454
        %v1456 = vpop.f32.mrb[0].mxu0
        %1457 = vdwg.mxu0
        %s1458 = scalar_lea.vmem %s6, 1
        %v1459 = vld [vmem:[%s1458] sm:$0x1]
        %v1461 = vlaneseq
        %v1462 = vshrl.u32 %v1461, 7
        %v1463 = vsub.s32 0, %v1462
        %v1464 = vrot.slane %v1459, %v1463
        %v1466 = vadd.f32 %v1296, %v1464
        %v1467 = vadd.f32 %v1302, %v1464
        %1468 = vmatprep.subr.mxu0 0.0
        %1469 = vmatpush1.msra.mxu0 %v1298
        %1470 = vmatprep.subr.mxu0 0.0
        %1471 = vmatpush1.msra.mxu0 %v1304
        %1472 = vmatprep.subr.mxu0 0.0
        %1473 = vmatpush1.msra.mxu0 0.0
        %1474 = vmatprep.subr.mxu0 0.0
        %1475 = vmatpush1.msra.mxu0 0.0
        %1476 = vmatprep.subr.mxu0 0.0
        %1477 = vmatpush1.msra.mxu0 0.0
        %1478 = vmatprep.subr.mxu0 0.0
        %1479 = vmatpush1.msra.mxu0 0.0
        %1480 = vmatprep.subr.mxu0 0.0
        %1481 = vmatpush1.msra.mxu0 0.0
        %1482 = vmatprep.subr.mxu0 0.0
        %1483 = vmatpush1.msra.mxu0 0.0
        %1484 = vmatprep.subr.mxu0 0.0
        %1485 = vmatpush1.msra.mxu0 0.0
        %1486 = vmatprep.subr.mxu0 0.0
        %1487 = vmatpush1.msra.mxu0 0.0
        %1488 = vmatprep.subr.mxu0 0.0
        %1489 = vmatpush1.msra.mxu0 0.0
        %1490 = vmatprep.subr.mxu0 0.0
        %1491 = vmatpush1.msra.mxu0 0.0
        %1492 = vmatprep.subr.mxu0 0.0
        %1493 = vmatpush1.msra.mxu0 0.0
        %1494 = vmatprep.subr.mxu0 0.0
        %1495 = vmatpush1.msra.mxu0 0.0
        %1496 = vmatprep.subr.mxu0 0.0
        %1497 = vmatpush1.msra.mxu0 0.0
        %1498 = vmatprep.subr.mxu0 0.0
        %1499 = vmatpush1.msra.mxu0 0.0
        %1500 = vmatprep.subr.mxu0 0.0
        %1501 = vmatpush1.msra.mxu0 0.0
        %1502 = vmatprep.subr.mxu0 0.0
        %1503 = vmatpush1.msra.mxu0 0.0
        %1504 = vmatprep.subr.mxu0 0.0
        %1505 = vmatpush1.msra.mxu0 0.0
        %1506 = vmatprep.subr.mxu0 0.0
        %1507 = vmatpush1.msra.mxu0 0.0
        %1508 = vmatprep.subr.mxu0 0.0
        %1509 = vmatpush1.msra.mxu0 0.0
        %1510 = vmatprep.subr.mxu0 0.0
        %1511 = vmatpush1.msra.mxu0 0.0
        %1512 = vmatprep.subr.mxu0 0.0
        %1513 = vmatpush1.msra.mxu0 0.0
        %1514 = vmatprep.subr.mxu0 0.0
        %1515 = vmatpush1.msra.mxu0 0.0
        %1516 = vmatprep.subr.mxu0 0.0
        %1517 = vmatpush1.msra.mxu0 0.0
        %1518 = vmatprep.subr.mxu0 0.0
        %1519 = vmatpush1.msra.mxu0 0.0
        %1520 = vmatprep.subr.mxu0 0.0
        %1521 = vmatpush1.msra.mxu0 0.0
        %1522 = vmatprep.subr.mxu0 0.0
        %1523 = vmatpush1.msra.mxu0 0.0
        %1524 = vmatprep.subr.mxu0 0.0
        %1525 = vmatpush1.msra.mxu0 0.0
        %1526 = vmatprep.subr.mxu0 0.0
        %1527 = vmatpush1.msra.mxu0 0.0
        %1528 = vmatprep.subr.mxu0 0.0
        %1529 = vmatpush1.msra.mxu0 0.0
        %1530 = vmatprep.subr.mxu0 0.0
        %1531 = vmatpush1.msra.mxu0 0.0
        %1532 = vmatprep.mubr.f32.mxu0 0.0
        %1533 = vmatmul.mubr.f32.gmra.mrb[0].mxu0 %v806
        %v1534 = vpop.f32.mrb[0].mxu0
        %v1535 = vadd.f32 0.0, %v1534
        %v1536 = vpop.f32.mrb[0].mxu0
        %1537 = vmatprep.mubr.f32.mxu0 0.0
        %1538 = vmatmul.mubr.f32.gmra.mrb[0].mxu0 %v809
        %v1539 = vpop.f32.mrb[0].mxu0
        %v1540 = vadd.f32 0.0, %v1539
        %v1541 = vpop.f32.mrb[0].mxu0
        %1542 = vdwg.mxu0
        %v1543 = vadd.f32 %v1466, %v1535
        %v1544 = vadd.f32 %v1467, %v1540
        %1545 = vmatprep.subr.mxu0 0.0
        %1546 = vmatpush1.msra.mxu0 %v1373
        %1547 = vmatprep.subr.mxu0 0.0
        %1548 = vmatpush1.msra.mxu0 %v1379
        %1549 = vmatprep.subr.mxu0 0.0
        %1550 = vmatpush1.msra.mxu0 0.0
        %1551 = vmatprep.subr.mxu0 0.0
        %1552 = vmatpush1.msra.mxu0 0.0
        %1553 = vmatprep.subr.mxu0 0.0
        %1554 = vmatpush1.msra.mxu0 0.0
        %1555 = vmatprep.subr.mxu0 0.0
        %1556 = vmatpush1.msra.mxu0 0.0
        %1557 = vmatprep.subr.mxu0 0.0
        %1558 = vmatpush1.msra.mxu0 0.0
        %1559 = vmatprep.subr.mxu0 0.0
        %1560 = vmatpush1.msra.mxu0 0.0
        %1561 = vmatprep.subr.mxu0 0.0
        %1562 = vmatpush1.msra.mxu0 0.0
        %1563 = vmatprep.subr.mxu0 0.0
        %1564 = vmatpush1.msra.mxu0 0.0
        %1565 = vmatprep.subr.mxu0 0.0
        %1566 = vmatpush1.msra.mxu0 0.0
        %1567 = vmatprep.subr.mxu0 0.0
        %1568 = vmatpush1.msra.mxu0 0.0
        %1569 = vmatprep.subr.mxu0 0.0
        %1570 = vmatpush1.msra.mxu0 0.0
        %1571 = vmatprep.subr.mxu0 0.0
        %1572 = vmatpush1.msra.mxu0 0.0
        %1573 = vmatprep.subr.mxu0 0.0
        %1574 = vmatpush1.msra.mxu0 0.0
        %1575 = vmatprep.subr.mxu0 0.0
        %1576 = vmatpush1.msra.mxu0 0.0
        %1577 = vmatprep.subr.mxu0 0.0
        %1578 = vmatpush1.msra.mxu0 0.0
        %1579 = vmatprep.subr.mxu0 0.0
        %1580 = vmatpush1.msra.mxu0 0.0
        %1581 = vmatprep.subr.mxu0 0.0
        %1582 = vmatpush1.msra.mxu0 0.0
        %1583 = vmatprep.subr.mxu0 0.0
        %1584 = vmatpush1.msra.mxu0 0.0
        %1585 = vmatprep.subr.mxu0 0.0
        %1586 = vmatpush1.msra.mxu0 0.0
        %1587 = vmatprep.subr.mxu0 0.0
        %1588 = vmatpush1.msra.mxu0 0.0
        %1589 = vmatprep.subr.mxu0 0.0
        %1590 = vmatpush1.msra.mxu0 0.0
        %1591 = vmatprep.subr.mxu0 0.0
        %1592 = vmatpush1.msra.mxu0 0.0
        %1593 = vmatprep.subr.mxu0 0.0
        %1594 = vmatpush1.msra.mxu0 0.0
        %1595 = vmatprep.subr.mxu0 0.0
        %1596 = vmatpush1.msra.mxu0 0.0
        %1597 = vmatprep.subr.mxu0 0.0
        %1598 = vmatpush1.msra.mxu0 0.0
        %1599 = vmatprep.subr.mxu0 0.0
        %1600 = vmatpush1.msra.mxu0 0.0
        %1601 = vmatprep.subr.mxu0 0.0
        %1602 = vmatpush1.msra.mxu0 0.0
        %1603 = vmatprep.subr.mxu0 0.0
        %1604 = vmatpush1.msra.mxu0 0.0
        %1605 = vmatprep.subr.mxu0 0.0
        %1606 = vmatpush1.msra.mxu0 0.0
        %1607 = vmatprep.subr.mxu0 0.0
        %1608 = vmatpush1.msra.mxu0 0.0
        %1609 = vmatprep.mubr.f32.mxu0 0.0
        %1610 = vmatmul.mubr.f32.gmra.mrb[0].mxu0 %v892
        %v1611 = vpop.f32.mrb[0].mxu0
        %v1612 = vadd.f32 0.0, %v1611
        %v1613 = vpop.f32.mrb[0].mxu0
        %1614 = vmatprep.mubr.f32.mxu0 0.0
        %1615 = vmatmul.mubr.f32.gmra.mrb[0].mxu0 %v895
        %v1616 = vpop.f32.mrb[0].mxu0
        %v1617 = vadd.f32 0.0, %v1616
        %v1618 = vpop.f32.mrb[0].mxu0
        %1619 = vdwg.mxu0
        %v1620 = vadd.f32 %v1543, %v1612
        %v1621 = vadd.f32 %v1544, %v1617
        %1622 = vmatprep.subr.mxu0 0.0
        %1623 = vmatpush1.msra.mxu0 %v1375
        %1624 = vmatprep.subr.mxu0 0.0
        %1625 = vmatpush1.msra.mxu0 %v1381
        %1626 = vmatprep.subr.mxu0 0.0
        %1627 = vmatpush1.msra.mxu0 0.0
        %1628 = vmatprep.subr.mxu0 0.0
        %1629 = vmatpush1.msra.mxu0 0.0
        %1630 = vmatprep.subr.mxu0 0.0
        %1631 = vmatpush1.msra.mxu0 0.0
        %1632 = vmatprep.subr.mxu0 0.0
        %1633 = vmatpush1.msra.mxu0 0.0
        %1634 = vmatprep.subr.mxu0 0.0
        %1635 = vmatpush1.msra.mxu0 0.0
        %1636 = vmatprep.subr.mxu0 0.0
        %1637 = vmatpush1.msra.mxu0 0.0
        %1638 = vmatprep.subr.mxu0 0.0
        %1639 = vmatpush1.msra.mxu0 0.0
        %1640 = vmatprep.subr.mxu0 0.0
        %1641 = vmatpush1.msra.mxu0 0.0
        %1642 = vmatprep.subr.mxu0 0.0
        %1643 = vmatpush1.msra.mxu0 0.0
        %1644 = vmatprep.subr.mxu0 0.0
        %1645 = vmatpush1.msra.mxu0 0.0
        %1646 = vmatprep.subr.mxu0 0.0
        %1647 = vmatpush1.msra.mxu0 0.0
        %1648 = vmatprep.subr.mxu0 0.0
        %1649 = vmatpush1.msra.mxu0 0.0
        %1650 = vmatprep.subr.mxu0 0.0
        %1651 = vmatpush1.msra.mxu0 0.0
        %1652 = vmatprep.subr.mxu0 0.0
        %1653 = vmatpush1.msra.mxu0 0.0
        %1654 = vmatprep.subr.mxu0 0.0
        %1655 = vmatpush1.msra.mxu0 0.0
        %1656 = vmatprep.subr.mxu0 0.0
        %1657 = vmatpush1.msra.mxu0 0.0
        %1658 = vmatprep.subr.mxu0 0.0
        %1659 = vmatpush1.msra.mxu0 0.0
        %1660 = vmatprep.subr.mxu0 0.0
        %1661 = vmatpush1.msra.mxu0 0.0
        %1662 = vmatprep.subr.mxu0 0.0
        %1663 = vmatpush1.msra.mxu0 0.0
        %1664 = vmatprep.subr.mxu0 0.0
        %1665 = vmatpush1.msra.mxu0 0.0
        %1666 = vmatprep.subr.mxu0 0.0
        %1667 = vmatpush1.msra.mxu0 0.0
        %1668 = vmatprep.subr.mxu0 0.0
        %1669 = vmatpush1.msra.mxu0 0.0
        %1670 = vmatprep.subr.mxu0 0.0
        %1671 = vmatpush1.msra.mxu0 0.0
        %1672 = vmatprep.subr.mxu0 0.0
        %1673 = vmatpush1.msra.mxu0 0.0
        %1674 = vmatprep.subr.mxu0 0.0
        %1675 = vmatpush1.msra.mxu0 0.0
        %1676 = vmatprep.subr.mxu0 0.0
        %1677 = vmatpush1.msra.mxu0 0.0
        %1678 = vmatprep.subr.mxu0 0.0
        %1679 = vmatpush1.msra.mxu0 0.0
        %1680 = vmatprep.subr.mxu0 0.0
        %1681 = vmatpush1.msra.mxu0 0.0
        %1682 = vmatprep.subr.mxu0 0.0
        %1683 = vmatpush1.msra.mxu0 0.0
        %1684 = vmatprep.subr.mxu0 0.0
        %1685 = vmatpush1.msra.mxu0 0.0
        %1686 = vmatprep.mubr.f32.mxu0 0.0
        %1687 = vmatmul.mubr.f32.gmra.mrb[0].mxu0 %v978
        %v1688 = vpop.f32.mrb[0].mxu0
        %v1689 = vadd.f32 0.0, %v1688
        %v1690 = vpop.f32.mrb[0].mxu0
        %1691 = vmatprep.mubr.f32.mxu0 0.0
        %1692 = vmatmul.mubr.f32.gmra.mrb[0].mxu0 %v981
        %v1693 = vpop.f32.mrb[0].mxu0
        %v1694 = vadd.f32 0.0, %v1693
        %v1695 = vpop.f32.mrb[0].mxu0
        %1696 = vdwg.mxu0
        %v1697 = vadd.f32 %v1620, %v1689
        %v1698 = vadd.f32 %v1621, %v1694
        %1699 = vmatprep.subr.mxu0 0.0
        %1700 = vmatpush1.msra.mxu0 %v1450
        %1701 = vmatprep.subr.mxu0 0.0
        %1702 = vmatpush1.msra.mxu0 %v1455
        %1703 = vmatprep.subr.mxu0 0.0
        %1704 = vmatpush1.msra.mxu0 0.0
        %1705 = vmatprep.subr.mxu0 0.0
        %1706 = vmatpush1.msra.mxu0 0.0
        %1707 = vmatprep.subr.mxu0 0.0
        %1708 = vmatpush1.msra.mxu0 0.0
        %1709 = vmatprep.subr.mxu0 0.0
        %1710 = vmatpush1.msra.mxu0 0.0
        %1711 = vmatprep.subr.mxu0 0.0
        %1712 = vmatpush1.msra.mxu0 0.0
        %1713 = vmatprep.subr.mxu0 0.0
        %1714 = vmatpush1.msra.mxu0 0.0
        %1715 = vmatprep.subr.mxu0 0.0
        %1716 = vmatpush1.msra.mxu0 0.0
        %1717 = vmatprep.subr.mxu0 0.0
        %1718 = vmatpush1.msra.mxu0 0.0
        %1719 = vmatprep.subr.mxu0 0.0
        %1720 = vmatpush1.msra.mxu0 0.0
        %1721 = vmatprep.subr.mxu0 0.0
        %1722 = vmatpush1.msra.mxu0 0.0
        %1723 = vmatprep.subr.mxu0 0.0
        %1724 = vmatpush1.msra.mxu0 0.0
        %1725 = vmatprep.subr.mxu0 0.0
        %1726 = vmatpush1.msra.mxu0 0.0
        %1727 = vmatprep.subr.mxu0 0.0
        %1728 = vmatpush1.msra.mxu0 0.0
        %1729 = vmatprep.subr.mxu0 0.0
        %1730 = vmatpush1.msra.mxu0 0.0
        %1731 = vmatprep.subr.mxu0 0.0
        %1732 = vmatpush1.msra.mxu0 0.0
        %1733 = vmatprep.subr.mxu0 0.0
        %1734 = vmatpush1.msra.mxu0 0.0
        %1735 = vmatprep.subr.mxu0 0.0
        %1736 = vmatpush1.msra.mxu0 0.0
        %1737 = vmatprep.subr.mxu0 0.0
        %1738 = vmatpush1.msra.mxu0 0.0
        %1739 = vmatprep.subr.mxu0 0.0
        %1740 = vmatpush1.msra.mxu0 0.0
        %1741 = vmatprep.subr.mxu0 0.0
        %1742 = vmatpush1.msra.mxu0 0.0
        %1743 = vmatprep.subr.mxu0 0.0
        %1744 = vmatpush1.msra.mxu0 0.0
        %1745 = vmatprep.subr.mxu0 0.0
        %1746 = vmatpush1.msra.mxu0 0.0
        %1747 = vmatprep.subr.mxu0 0.0
        %1748 = vmatpush1.msra.mxu0 0.0
        %1749 = vmatprep.subr.mxu0 0.0
        %1750 = vmatpush1.msra.mxu0 0.0
        %1751 = vmatprep.subr.mxu0 0.0
        %1752 = vmatpush1.msra.mxu0 0.0
        %1753 = vmatprep.subr.mxu0 0.0
        %1754 = vmatpush1.msra.mxu0 0.0
        %1755 = vmatprep.subr.mxu0 0.0
        %1756 = vmatpush1.msra.mxu0 0.0
        %1757 = vmatprep.subr.mxu0 0.0
        %1758 = vmatpush1.msra.mxu0 0.0
        %1759 = vmatprep.subr.mxu0 0.0
        %1760 = vmatpush1.msra.mxu0 0.0
        %1761 = vmatprep.subr.mxu0 0.0
        %1762 = vmatpush1.msra.mxu0 0.0
        %1763 = vmatprep.mubr.f32.mxu0 0.0
        %1764 = vmatmul.mubr.f32.gmra.mrb[0].mxu0 %v1064
        %v1765 = vpop.f32.mrb[0].mxu0
        %v1766 = vadd.f32 0.0, %v1765
        %v1767 = vpop.f32.mrb[0].mxu0
        %1768 = vmatprep.mubr.f32.mxu0 0.0
        %1769 = vmatmul.mubr.f32.gmra.mrb[0].mxu0 %v1067
        %v1770 = vpop.f32.mrb[0].mxu0
        %v1771 = vadd.f32 0.0, %v1770
        %v1772 = vpop.f32.mrb[0].mxu0
        %1773 = vdwg.mxu0
        %v1774 = vadd.f32 %v1697, %v1766
        %v1775 = vadd.f32 %v1698, %v1771
        %v1776 = vmax.f32 %v1774, 0.0
        %v1777 = vmax.f32 %v1775, 0.0
        %1778 = vst [vmem:[%s379] sm:$0xff] %v1776
        %1779 = vst [vmem:[%s379 + $0x8] sm:$0xff] %v1777
        %s1780 = sand.u32 %s193, 1
        %s1781 = scalar_lea.sflag [#allocation4], %s1780
        %s1782 = sand.u32 %s193, 1
        %s1783 = smul.addr %s1782, 16
        %s1784 = scalar_lea.vmem [#allocation11], %s1783
        // Predicated region
        $region69: #{tpu_custom_call.1} parent=47 // pred_check
          %p1785 = pneg %p203
        $region70: #{tpu_custom_call.1} parent=47 // pred_check_branch
          %1787 = sbr.rel (%p1785) target = $region72
        $region71: #{tpu_custom_call.1} parent=47 // pred_region
          %s1788 = smul.u32 2, %s28
          %s1790 = ssub.s32 256, 256
          %1791 = vsyncadd %s1781, %s1790
          %s1792 = smul.addr %s1788, 128
          %s1793 = scalar_lea.hbm %s7, %s1792
          %s1794 = sshll.u32 %s1784, 4
          %s1795 = int_to_ptr.vmem [resolvable:$true] %s1794
          %1800 = dma.vmem_to_hbm [thread:$0]  %s1795, 256, %s1793, %s1781, 128, 128, 8
        $region72: #{tpu_custom_call.1} parent=47 // pred_fallthru
          _
      $region48: #{tpu_custom_call.1} parent=5 // pred_fallthru
        _
      %p1801 = scmp.le.s32.totalorder 2, %s23
      // Predicated region
      $region73: #{tpu_custom_call.1} parent=5 // pred_check
        %p1802 = pneg %p1801
      $region74: #{tpu_custom_call.1} parent=5 // pred_check_branch
        %1804 = sbr.rel (%p1802) target = $region76
      $region75: #{tpu_custom_call.1} parent=5 // pred_region
        %s1805 = ssub.s32 %s23, 2
        // Predicated region
        $region77: #{tpu_custom_call.1} parent=75 // pred_check
          %p1806 = pneg %p209
        $region78: #{tpu_custom_call.1} parent=75 // pred_check_branch
          %1808 = sbr.rel (%p1806) target = $region80
        $region79: #{tpu_custom_call.1} parent=75 // pred_region
          %s1809 = sand.u32 %s194, 1
          %s1810 = scalar_lea.sflag [#allocation4], %s1809
          %s1811 = sand.u32 %s194, 1
          %s1812 = smul.addr %s1811, 16
          %s1813 = scalar_lea.vmem [#allocation11], %s1812
          %1814 = dma.done %s1810, 256
        $region80: #{tpu_custom_call.1} parent=75 // pred_fallthru
          _
      $region76: #{tpu_custom_call.1} parent=5 // pred_fallthru
        _
    $region6: #{tpu_custom_call.1} parent=1 // loop_footer
      %s27 = sadd.s32 1, %s23
    $region7: #{tpu_custom_call.1} parent=1 // loop_footer_branch
      %22 = sbr.rel target = $region3
    $region8: #{tpu_custom_call.1} parent=1 // loop_exit
      _
    %1815 = vsyncpa [#allocation3], 1
    %s1816 = scalar_lea.sflag [#allocation3], 1
    %1817 = vsyncpa %s1816, 1
    %1818 = vsyncpa [#allocation6], 1
    %s1819 = scalar_lea.sflag [#allocation6], 1
    %1820 = vsyncpa %s1819, 1
    %1821 = vsyncpa [#allocation9], 1
    %1822 = vsyncpa [#allocation4], 1
    %s1823 = scalar_lea.sflag [#allocation4], 1
    %1824 = vsyncpa %s1823, 1

</llo_original>
